<compile_context>
chip_gen: v6e
topology: v6e:2x2x1
jax: 0.10.0
libtpu: 0.0.40
codegen_flags: <defaults>
</compile_context>

<pallas_src>
import jax
import jax.numpy as jnp
import numpy as np
from jax import lax
from jax.experimental import pallas as pl
from jax.experimental.pallas import tpu as pltpu


def _round_up(x, m):
    return ((x + m - 1) // m) * m


# ----------------------------------------------------------------------------
# Pallas kernel: nearest-code search for one tile of rows.
# ----------------------------------------------------------------------------
def _vq_argmin_kernel(z_ref, cndk_ref, idx_ref):
    # z_ref   : (TILE_N, D)  pooled residual rows, f32
    # cndk_ref: (D, K)       L2-normalized projected codebook, pre-transposed
    #                        (lane-dense rhs, resident across the whole grid)
    # idx_ref : (TILE_N, 1)  nearest-code index per row, int32
    z_e = z_ref[...]
    K = cndk_ref.shape[1]

    # F.normalize(p=2, dim=-1, eps=1e-12): x * rsqrt(max(||x||^2, eps^2)) (EUP).
    ss = jnp.sum(z_e * z_e, axis=-1, keepdims=True)                # (TILE_N, 1)
    en = z_e * lax.rsqrt(jnp.maximum(ss, 1e-24))                   # (TILE_N, D)

    # dist = ||e||^2 - 2 e.c + ||c||^2.  ||e||^2 is constant per row and after
    # F.normalize ||c||^2 == 1 for every nonzero code, so argmin(dist) ==
    # argmax(e . c): rank on the similarity directly (no extra (N, K) tiles).
    # Guard: only invalid if a projected codebook row is exactly the zero
    # vector (measure zero with an affine cb_proj); re-add a -0.5*||c||^2 bias
    # if that can happen.
    # TODO(synk): optional bf16 cast of en / cndk for the MXU at LLM-scale K
    #             (~2-3x matmul rate) at the cost of exact index parity.
    sim = jnp.dot(en, cndk_ref[...], preferred_element_type=jnp.float32)  # (TILE_N, K)

    # argmax with first-index tie-breaking (matches torch (-dist).max(1)[1]).
    mx = jnp.max(sim, axis=-1, keepdims=True)                      # (TILE_N, 1) XLU
    iota = lax.broadcasted_iota(jnp.int32, sim.shape, 1)           # (TILE_N, K)
    idx = jnp.min(jnp.where(sim >= mx, iota, K), axis=-1, keepdims=True)
    # Clamp: a NaN row makes `sim >= mx` all-false -> idx == K; keep it valid.
    idx_ref[...] = jnp.minimum(idx, K - 1)
    # TODO(synk): lane-dense (1, TILE_N) idx packing would avoid the masked
    #             last-dim-1 stores; skipped because it needs an in-kernel
    #             sublane->lane relayout for a ~4*N-byte output.


def _resident_spec(block_shape, index_map):
    """BlockSpec for a grid-invariant operand; single-buffered when supported."""
    try:
        return pl.BlockSpec(block_shape, index_map, pipeline_mode=pl.Buffered(1))
    except Exception:  # pipeline_mode / Buffered not available in this jax
        return pl.BlockSpec(block_shape, index_map)


# ----------------------------------------------------------------------------
# pallas_call wrapper: row-tiled grid over all B*Ts rows of one quantizer.
# ----------------------------------------------------------------------------
def vq_nearest_code_pallas(z_e_flat, cn_dk, *, tile_n=256):
    """Nearest-code index for every row.

    z_e_flat: (N, D) f32 pooled residual rows (N = B*Ts).
    cn_dk   : (D, K) f32 L2-normalized projected codebook, pre-transposed.
    returns : (N,) int32 code indices.
    """
    N, D = z_e_flat.shape
    K = cn_dk.shape[1]

    tile_n = int(min(tile_n, _round_up(N, 8)))
    n_pad = _round_up(N, tile_n)
    if n_pad != N:
        # Zero pad rows normalize to zero -> sim == 0 -> idx 0; sliced off below.
        z_e_flat = jnp.pad(z_e_flat, ((0, n_pad - N), (0, 0)))
    n_tiles = n_pad // tile_n

    # Explicit scoped-VMEM budget: double-buffered z/idx tiles + resident
    # codebook (counted twice in case Buffered(1) is unavailable) + the
    # (TILE_N, K) sim/iota/mask temporaries + slack.  Floor at 32 MiB
    # (>= the v5e/v6e scoped defaults), cap at 64 MiB (v7x physical per core).
    est = (2 * tile_n * D * 4 + 2 * tile_n * 4
           + 2 * D * K * 4 + 4 * tile_n * K * 4 + (2 << 20))
    vmem_limit = int(min(max(est, 32 << 20), 64 << 20))

    idx = pl.pallas_call(
        _vq_argmin_kernel,
        out_shape=jax.ShapeDtypeStruct((n_pad, 1), jnp.int32),
        grid=(n_tiles,),
        in_specs=[
            pl.BlockSpec((tile_n, D), lambda i: (i, 0)),
            _resident_spec((D, K), lambda i: (0, 0)),
        ],
        out_specs=pl.BlockSpec((tile_n, 1), lambda i: (i, 0)),
        compiler_params=pltpu.CompilerParams(
            dimension_semantics=("parallel",),
            vmem_limit_bytes=vmem_limit),
    )(z_e_flat, cn_dk)
    return idx[:N, 0]


# ----------------------------------------------------------------------------
# One-shot per-quantizer codebook preparation (hoisted out of the kernel).
# ----------------------------------------------------------------------------
def _prep_codebook(ckpt, w, b):
    cb = jnp.dot(ckpt, w.T) + b[None, :]                  # cb_proj(codebook)  (K, D)
    ss = jnp.sum(cb * cb, axis=-1, keepdims=True)
    cn = cb * lax.rsqrt(jnp.maximum(ss, 1e-24))           # F.normalize
    return cb, cn.T                                       # (K, D) for gather, (D, K) rhs


# ----------------------------------------------------------------------------
# VectorQuantizeLLM forward (use_cblinear=True path) in (B, T, D) layout.
# ----------------------------------------------------------------------------
def single_vq_forward_btd(z_btd, stride, cb, cn_dk):
    B, T, D = z_btd.shape
    if stride > 1:
        Ts = T // stride
        # avg_pool1d(kernel=stride, stride=stride) along time, in BTD layout.
        z_e = z_btd[:, : Ts * stride, :].reshape(B, Ts, stride, D).mean(axis=2)
    else:
        Ts = T
        z_e = z_btd

    idx = vq_nearest_code_pallas(z_e.reshape(B * Ts, D), cn_dk).reshape(B, Ts)
    z_q = jnp.take(cb, idx, axis=0)                       # (B, Ts, D) exact-f32 gather

    # F.mse_loss(z_e, z_q, reduction='none').mean([1, 2]) -> per-batch scalar.
    # commitment and codebook losses are numerically identical in forward.
    loss = jnp.mean((z_e - z_q) ** 2, axis=(1, 2))

    # straight-through: z_e + (z_q - z_e).detach() == z_q numerically (forward)
    if stride > 1:
        z_q = jnp.repeat(z_q, stride, axis=1)             # repeat_interleave (time)
    return z_q, idx, loss, loss


# ----------------------------------------------------------------------------
# ResidualVectorQuantizeLLM forward (module interface: z in NCT = (B, D, T)).
# ----------------------------------------------------------------------------
def residual_vq_forward(z_nct, quantizer_params):
    z_btd = jnp.transpose(z_nct, (0, 2, 1))               # NCT -> BTD once
    z_q = jnp.zeros_like(z_btd)
    residual = z_btd
    codes = []
    commitment_loss = 0.0
    codebook_loss = 0.0
    for (stride, ckpt, w, b) in quantizer_params:
        cb, cn_dk = _prep_codebook(ckpt, w, b)            # once per quantizer
        zq_i, idx_i, c_i, cb_i = single_vq_forward_btd(residual, stride, cb, cn_dk)
        z_q = z_q + zq_i
        residual = residual - zq_i
        codes.append(idx_i)
        commitment_loss = commitment_loss + c_i
        codebook_loss = codebook_loss + cb_i
    # features / text_features are None -> semantic & consistency losses are 0
    semantic_loss = jnp.float32(0.0)
    consistency_loss = jnp.float32(0.0)
    z_q_nct = jnp.transpose(z_q, (0, 2, 1))               # BTD -> NCT once
    return z_q_nct, codes, commitment_loss, codebook_loss, semantic_loss, consistency_loss


# ----------------------------------------------------------------------------
# Pure-JAX reference in NCT layout (mirrors the PyTorch math) for checking.
# ----------------------------------------------------------------------------
def _single_vq_reference(z, stride, ckpt, w, b):
    B, D, T = z.shape
    if stride > 1:
        Ts = T // stride
        z_e = z[:, :, : Ts * stride].reshape(B, D, Ts, stride).mean(axis=3)
    else:
        Ts = T
        z_e = z
    cb = ckpt @ w.T + b                                   # (K, D)
    enc = jnp.transpose(z_e, (0, 2, 1)).reshape(B * Ts, D)
    en = enc / jnp.maximum(jnp.linalg.norm(enc, axis=1, keepdims=True), 1e-12)
    cn = cb / jnp.maximum(jnp.linalg.norm(cb, axis=1, keepdims=True), 1e-12)
    dist = (en ** 2).sum(1, keepdims=True) - 2 * en @ cn.T \
        + (cn ** 2).sum(1, keepdims=True).T
    idx = jnp.argmax(-dist, axis=1).reshape(B, Ts)
    zq_btd = cb[idx]                                      # (B, Ts, D)
    loss = jnp.mean((jnp.transpose(z_e, (0, 2, 1)) - zq_btd) ** 2, axis=(1, 2))
    z_q = jnp.transpose(zq_btd, (0, 2, 1))
    if stride > 1:
        z_q = jnp.repeat(z_q, stride, axis=-1)
    return z_q, idx, loss, loss


def residual_vq_reference(z, quantizer_params):
    z_q = jnp.zeros_like(z)
    residual = z
    codes = []
    commit = 0.0
    cbl = 0.0
    for (stride, ckpt, w, b) in quantizer_params:
        zq_i, idx_i, c_i, cb_i = _single_vq_reference(residual, stride, ckpt, w, b)
        z_q = z_q + zq_i
        residual = residual - zq_i
        codes.append(idx_i)
        commit = commit + c_i
        cbl = cbl + cb_i
    return z_q, codes, commit, cbl


# ----------------------------------------------------------------------------
if __name__ == "__main__":
    # Small, module-consistent shapes. T=160 makes the stride-1 quantizer use
    # N = B*T = 320 rows -> 2 row tiles (one full, one partial) so the tiled /
    # padded grid path is exercised.
    B, D, T = 2, 128, 160         # batch, input_dim (channels), time
    Dc = 64                       # codebook_dim (LLM embedding dim)
    K, Kg = 256, 192              # checkpoint / g_ckpt codebook sizes
    strides = [4, 2, 1]

    key = jax.random.PRNGKey(0)
    kz, kck, kg, kp = jax.random.split(key, 4)

    checkpoint = jax.random.normal(kck, (K, Dc), jnp.float32)
    g_ckpt = jax.random.normal(kg, (Kg, Dc), jnp.float32)
    ckpts = [g_ckpt, checkpoint, checkpoint]

    # Deterministic cb_proj (Linear(codebook_dim -> input_dim)) params per quantizer.
    bound = 1.0 / (Dc ** 0.5)
    quantizer_params = []
    proj_keys = jax.random.split(kp, len(strides) * 2)
    for i, stride in enumerate(strides):
        w = jax.random.uniform(proj_keys[2 * i], (D, Dc), jnp.float32, -bound, bound)
        b = jax.random.uniform(proj_keys[2 * i + 1], (D,), jnp.float32, -bound, bound)
        quantizer_params.append((stride, ckpts[i], w, b))

    # Input in PyTorch NCT layout: (B, D, T).
    z = jax.random.normal(kz, (B, D, T), jnp.float32)

    fwd = jax.jit(lambda zz: residual_vq_forward(zz, quantizer_params))
    z_q, codes, commit, cbl, sem, cons = fwd(z)
    jax.block_until_ready(z_q)

    # Verify against the pure-JAX reference (exact index parity is a soft
    # expectation in general; at these shapes/seed score gaps are >> rounding).
    z_q_ref, codes_ref, commit_ref, cbl_ref = residual_vq_reference(z, quantizer_params)
    assert np.allclose(np.asarray(z_q), np.asarray(z_q_ref), atol=1e-3, rtol=1e-3)
    assert np.allclose(np.asarray(commit), np.asarray(commit_ref), atol=1e-3, rtol=1e-3)
    assert np.allclose(np.asarray(cbl), np.asarray(cbl_ref), atol=1e-3, rtol=1e-3)
    for c, cr in zip(codes, codes_ref):
        assert np.array_equal(np.asarray(c), np.asarray(cr))

    print("KERNEL_OK")
</pallas_src>

<mosaic_0001>
module attributes {stable_mosaic.version = 11 : i64} {
  func.func @_vq_argmin_kernel(%arg0: i32, %arg1: memref<80x128xf32, #tpu.memory_space<vmem>>, %arg2: memref<128x192xf32, #tpu.memory_space<vmem>>, %arg3: memref<80x1xi32, #tpu.memory_space<vmem>>) attributes {dimension_semantics = [#tpu.dimension_semantics<parallel>], iteration_bounds = array<i64: 1>, scalar_prefetch = 0 : i64, scratch_operands = 0 : i64, tpu.core_type = #tpu.core_type<tc>, window_params = [{transform_indices = @transform_0, window_bounds = array<i64: 80, 128>}, {pipeline_mode = #tpu.pipeline_mode<synchronous>, transform_indices = @transform_1, window_bounds = array<i64: 128, 192>}, {transform_indices = @transform_2, window_bounds = array<i64: 80, 1>}]} {
    %c0 = arith.constant 0 : index
    %c0_0 = arith.constant 0 : index
    %0 = vector.load %arg1[%c0, %c0_0] : memref<80x128xf32, #tpu.memory_space<vmem>>, vector<80x128xf32>
    %1 = arith.mulf %0, %0 : vector<80x128xf32>
    %cst = arith.constant dense<0.000000e+00> : vector<80xf32>
    %2 = vector.multi_reduction <add>, %1, %cst [1] : vector<80x128xf32> to vector<80xf32>
    %3 = vector.shape_cast %2 : vector<80xf32> to vector<80x1xf32>
    %cst_1 = arith.constant 1.000000e-24 : f32
    %4 = vector.broadcast %cst_1 : f32 to vector<80x1xf32>
    %5 = arith.maximumf %3, %4 : vector<80x1xf32>
    %6 = math.rsqrt %5 : vector<80x1xf32>
    %7 = vector.broadcast %6 : vector<80x1xf32> to vector<80x128xf32>
    %8 = arith.mulf %0, %7 : vector<80x128xf32>
    %c0_2 = arith.constant 0 : index
    %c0_3 = arith.constant 0 : index
    %9 = vector.load %arg2[%c0_2, %c0_3] : memref<128x192xf32, #tpu.memory_space<vmem>>, vector<128x192xf32>
    %cst_4 = arith.constant dense<0.000000e+00> : vector<80x192xf32>
    %10 = tpu.matmul %8, %9, %cst_4 {dimension_numbers = #tpu.dot_dimension_numbers<[1], [0], [0], [1], [0, 0, 1, 1], [], []>} : vector<80x128xf32>, vector<128x192xf32>, vector<80x192xf32> -> vector<80x192xf32>
    %cst_5 = arith.constant dense<0xFF800000> : vector<80xf32>
    %11 = vector.multi_reduction <maximumf>, %10, %cst_5 [1] : vector<80x192xf32> to vector<80xf32>
    %12 = vector.shape_cast %11 : vector<80xf32> to vector<80x1xf32>
    %13 = tpu.iota {dimensions = array<i32: 1>} : vector<80x192xi32>
    %14 = vector.broadcast %12 : vector<80x1xf32> to vector<80x192xf32>
    %15 = arith.cmpf oge, %10, %14 : vector<80x192xf32>
    %c192_i32 = arith.constant 192 : i32
    %16 = vector.broadcast %c192_i32 : i32 to vector<80x192xi32>
    %17 = arith.select %15, %13, %16 : vector<80x192xi1>, vector<80x192xi32>
    %cst_6 = arith.constant dense<2147483647> : vector<80xi32>
    %18 = vector.multi_reduction <minsi>, %17, %cst_6 [1] : vector<80x192xi32> to vector<80xi32>
    %19 = vector.shape_cast %18 : vector<80xi32> to vector<80x1xi32>
    %c191_i32 = arith.constant 191 : i32
    %20 = vector.broadcast %c191_i32 : i32 to vector<80x1xi32>
    %21 = arith.minsi %19, %20 : vector<80x1xi32>
    %c0_7 = arith.constant 0 : index
    %c0_8 = arith.constant 0 : index
    %22 = vector.load %arg3[%c0_7, %c0_8] : memref<80x1xi32, #tpu.memory_space<vmem>>, vector<80x1xi32>
    tpu.vector_store %arg3[%c0_7, %c0_8], %21 {strides = array<i32>} : memref<80x1xi32, #tpu.memory_space<vmem>>, vector<80x1xi32>,
    return
  }
  func.func @transform_0(%arg0: i32) -> (i32, i32) {
    %c0_i32 = arith.constant 0 : i32
    %c0_i32_0 = arith.constant 0 : i32
    return %arg0, %c0_i32 : i32, i32
  }
  func.func @transform_1(%arg0: i32) -> (i32, i32) {
    %c0_i32 = arith.constant 0 : i32
    %c0_i32_0 = arith.constant 0 : i32
    %c0_i32_1 = arith.constant 0 : i32
    return %c0_i32, %c0_i32_0 : i32, i32
  }
  func.func @transform_2(%arg0: i32) -> (i32, i32) {
    %c0_i32 = arith.constant 0 : i32
    %c0_i32_0 = arith.constant 0 : i32
    return %arg0, %c0_i32 : i32, i32
  }
}

module attributes {stable_mosaic.version = 11 : i64} {
  func.func @_vq_argmin_kernel(%arg0: i32, %arg1: memref<160x128xf32, #tpu.memory_space<vmem>>, %arg2: memref<128x256xf32, #tpu.memory_space<vmem>>, %arg3: memref<160x1xi32, #tpu.memory_space<vmem>>) attributes {dimension_semantics = [#tpu.dimension_semantics<parallel>], iteration_bounds = array<i64: 1>, scalar_prefetch = 0 : i64, scratch_operands = 0 : i64, tpu.core_type = #tpu.core_type<tc>, window_params = [{transform_indices = @transform_0, window_bounds = array<i64: 160, 128>}, {pipeline_mode = #tpu.pipeline_mode<synchronous>, transform_indices = @transform_1, window_bounds = array<i64: 128, 256>}, {transform_indices = @transform_2, window_bounds = array<i64: 160, 1>}]} {
    %c0 = arith.constant 0 : index
    %c0_0 = arith.constant 0 : index
    %0 = vector.load %arg1[%c0, %c0_0] : memref<160x128xf32, #tpu.memory_space<vmem>>, vector<160x128xf32>
    %1 = arith.mulf %0, %0 : vector<160x128xf32>
    %cst = arith.constant dense<0.000000e+00> : vector<160xf32>
    %2 = vector.multi_reduction <add>, %1, %cst [1] : vector<160x128xf32> to vector<160xf32>
    %3 = vector.shape_cast %2 : vector<160xf32> to vector<160x1xf32>
    %cst_1 = arith.constant 1.000000e-24 : f32
    %4 = vector.broadcast %cst_1 : f32 to vector<160x1xf32>
    %5 = arith.maximumf %3, %4 : vector<160x1xf32>
    %6 = math.rsqrt %5 : vector<160x1xf32>
    %7 = vector.broadcast %6 : vector<160x1xf32> to vector<160x128xf32>
    %8 = arith.mulf %0, %7 : vector<160x128xf32>
    %c0_2 = arith.constant 0 : index
    %c0_3 = arith.constant 0 : index
    %9 = vector.load %arg2[%c0_2, %c0_3] : memref<128x256xf32, #tpu.memory_space<vmem>>, vector<128x256xf32>
    %cst_4 = arith.constant dense<0.000000e+00> : vector<160x256xf32>
    %10 = tpu.matmul %8, %9, %cst_4 {dimension_numbers = #tpu.dot_dimension_numbers<[1], [0], [0], [1], [0, 0, 1, 1], [], []>} : vector<160x128xf32>, vector<128x256xf32>, vector<160x256xf32> -> vector<160x256xf32>
    %cst_5 = arith.constant dense<0xFF800000> : vector<160xf32>
    %11 = vector.multi_reduction <maximumf>, %10, %cst_5 [1] : vector<160x256xf32> to vector<160xf32>
    %12 = vector.shape_cast %11 : vector<160xf32> to vector<160x1xf32>
    %13 = tpu.iota {dimensions = array<i32: 1>} : vector<160x256xi32>
    %14 = vector.broadcast %12 : vector<160x1xf32> to vector<160x256xf32>
    %15 = arith.cmpf oge, %10, %14 : vector<160x256xf32>
    %c256_i32 = arith.constant 256 : i32
    %16 = vector.broadcast %c256_i32 : i32 to vector<160x256xi32>
    %17 = arith.select %15, %13, %16 : vector<160x256xi1>, vector<160x256xi32>
    %cst_6 = arith.constant dense<2147483647> : vector<160xi32>
    %18 = vector.multi_reduction <minsi>, %17, %cst_6 [1] : vector<160x256xi32> to vector<160xi32>
    %19 = vector.shape_cast %18 : vector<160xi32> to vector<160x1xi32>
    %c255_i32 = arith.constant 255 : i32
    %20 = vector.broadcast %c255_i32 : i32 to vector<160x1xi32>
    %21 = arith.minsi %19, %20 : vector<160x1xi32>
    %c0_7 = arith.constant 0 : index
    %c0_8 = arith.constant 0 : index
    %22 = vector.load %arg3[%c0_7, %c0_8] : memref<160x1xi32, #tpu.memory_space<vmem>>, vector<160x1xi32>
    tpu.vector_store %arg3[%c0_7, %c0_8], %21 {strides = array<i32>} : memref<160x1xi32, #tpu.memory_space<vmem>>, vector<160x1xi32>,
    return
  }
  func.func @transform_0(%arg0: i32) -> (i32, i32) {
    %c0_i32 = arith.constant 0 : i32
    %c0_i32_0 = arith.constant 0 : i32
    return %arg0, %c0_i32 : i32, i32
  }
  func.func @transform_1(%arg0: i32) -> (i32, i32) {
    %c0_i32 = arith.constant 0 : i32
    %c0_i32_0 = arith.constant 0 : i32
    %c0_i32_1 = arith.constant 0 : i32
    return %c0_i32, %c0_i32_0 : i32, i32
  }
  func.func @transform_2(%arg0: i32) -> (i32, i32) {
    %c0_i32 = arith.constant 0 : i32
    %c0_i32_0 = arith.constant 0 : i32
    return %arg0, %c0_i32 : i32, i32
  }
}

module attributes {stable_mosaic.version = 11 : i64} {
  func.func @_vq_argmin_kernel(%arg0: i32, %arg1: memref<256x128xf32, #tpu.memory_space<vmem>>, %arg2: memref<128x256xf32, #tpu.memory_space<vmem>>, %arg3: memref<256x1xi32, #tpu.memory_space<vmem>>) attributes {dimension_semantics = [#tpu.dimension_semantics<parallel>], iteration_bounds = array<i64: 2>, scalar_prefetch = 0 : i64, scratch_operands = 0 : i64, tpu.core_type = #tpu.core_type<tc>, window_params = [{transform_indices = @transform_0, window_bounds = array<i64: 256, 128>}, {pipeline_mode = #tpu.pipeline_mode<synchronous>, transform_indices = @transform_1, window_bounds = array<i64: 128, 256>}, {transform_indices = @transform_2, window_bounds = array<i64: 256, 1>}]} {
    %c0 = arith.constant 0 : index
    %c0_0 = arith.constant 0 : index
    %0 = vector.load %arg1[%c0, %c0_0] : memref<256x128xf32, #tpu.memory_space<vmem>>, vector<256x128xf32>
    %1 = arith.mulf %0, %0 : vector<256x128xf32>
    %cst = arith.constant dense<0.000000e+00> : vector<256xf32>
    %2 = vector.multi_reduction <add>, %1, %cst [1] : vector<256x128xf32> to vector<256xf32>
    %3 = vector.shape_cast %2 : vector<256xf32> to vector<256x1xf32>
    %cst_1 = arith.constant 1.000000e-24 : f32
    %4 = vector.broadcast %cst_1 : f32 to vector<256x1xf32>
    %5 = arith.maximumf %3, %4 : vector<256x1xf32>
    %6 = math.rsqrt %5 : vector<256x1xf32>
    %7 = vector.broadcast %6 : vector<256x1xf32> to vector<256x128xf32>
    %8 = arith.mulf %0, %7 : vector<256x128xf32>
    %c0_2 = arith.constant 0 : index
    %c0_3 = arith.constant 0 : index
    %9 = vector.load %arg2[%c0_2, %c0_3] : memref<128x256xf32, #tpu.memory_space<vmem>>, vector<128x256xf32>
    %cst_4 = arith.constant dense<0.000000e+00> : vector<256x256xf32>
    %10 = tpu.matmul %8, %9, %cst_4 {dimension_numbers = #tpu.dot_dimension_numbers<[1], [0], [0], [1], [0, 0, 1, 1], [], []>} : vector<256x128xf32>, vector<128x256xf32>, vector<256x256xf32> -> vector<256x256xf32>
    %cst_5 = arith.constant dense<0xFF800000> : vector<256xf32>
    %11 = vector.multi_reduction <maximumf>, %10, %cst_5 [1] : vector<256x256xf32> to vector<256xf32>
    %12 = vector.shape_cast %11 : vector<256xf32> to vector<256x1xf32>
    %13 = tpu.iota {dimensions = array<i32: 1>} : vector<256x256xi32>
    %14 = vector.broadcast %12 : vector<256x1xf32> to vector<256x256xf32>
    %15 = arith.cmpf oge, %10, %14 : vector<256x256xf32>
    %c256_i32 = arith.constant 256 : i32
    %16 = vector.broadcast %c256_i32 : i32 to vector<256x256xi32>
    %17 = arith.select %15, %13, %16 : vector<256x256xi1>, vector<256x256xi32>
    %cst_6 = arith.constant dense<2147483647> : vector<256xi32>
    %18 = vector.multi_reduction <minsi>, %17, %cst_6 [1] : vector<256x256xi32> to vector<256xi32>
    %19 = vector.shape_cast %18 : vector<256xi32> to vector<256x1xi32>
    %c255_i32 = arith.constant 255 : i32
    %20 = vector.broadcast %c255_i32 : i32 to vector<256x1xi32>
    %21 = arith.minsi %19, %20 : vector<256x1xi32>
    %c0_7 = arith.constant 0 : index
    %c0_8 = arith.constant 0 : index
    %22 = vector.load %arg3[%c0_7, %c0_8] : memref<256x1xi32, #tpu.memory_space<vmem>>, vector<256x1xi32>
    tpu.vector_store %arg3[%c0_7, %c0_8], %21 {strides = array<i32>} : memref<256x1xi32, #tpu.memory_space<vmem>>, vector<256x1xi32>,
    return
  }
  func.func @transform_0(%arg0: i32) -> (i32, i32) {
    %c0_i32 = arith.constant 0 : i32
    %c0_i32_0 = arith.constant 0 : i32
    return %arg0, %c0_i32 : i32, i32
  }
  func.func @transform_1(%arg0: i32) -> (i32, i32) {
    %c0_i32 = arith.constant 0 : i32
    %c0_i32_0 = arith.constant 0 : i32
    %c0_i32_1 = arith.constant 0 : i32
    return %c0_i32, %c0_i32_0 : i32, i32
  }
  func.func @transform_2(%arg0: i32) -> (i32, i32) {
    %c0_i32 = arith.constant 0 : i32
    %c0_i32_0 = arith.constant 0 : i32
    return %arg0, %c0_i32 : i32, i32
  }
}

</mosaic_0001>

<llo_original>
// kernel: _lambda_.3
$region0: #{_lambda_.3}
  #allocation0 [shape = 'u32[]', space=smem, size = 0x4, offset = 0x4, fixed_abs, tag = 'smem constant byte address 0x4 - core index']
  #allocation1 [shape = 'u32[144,128]{1,0:T(1,128)}', space=vmem, size = 0x12000, scoped, tag = 'internal scratch']
  %s0 = inlined_call_operand.vmem [shape: f32[80,128], index: 0, kind: input, shape index: {}]
  %s1 = inlined_call_operand.vmem [shape: f32[128,192], index: 1, kind: input, shape index: {}]
  %s2 = inlined_call_operand.vmem [shape: s32[80,1], index: 2, kind: output, shape index: {}]
  %s3 = sld [smem:[#allocation0]]
  $region18: #{_lambda_.3} parent=0
    _
  %s5 = ssub.s32 1, %s3
  %s6 = scalar_select 0, %s5, %s3
  // Predicated region
  $region2: #{_lambda_.3} parent=0 // pred_check
    _
  $region3: #{_lambda_.3} parent=0 // pred_check_branch
    %8 = sbr.rel (0) target = $region5
  $region4: #{_lambda_.3} parent=0 // pred_region
    _
  $region5: #{_lambda_.3} parent=0 // pred_fallthru
    _
  // Predicated region
  $region6: #{_lambda_.3} parent=0 // pred_check
    _
  $region7: #{_lambda_.3} parent=0 // pred_check_branch
    %10 = sbr.rel (0) target = $region9
  $region8: #{_lambda_.3} parent=0 // pred_region
    _
  $region9: #{_lambda_.3} parent=0 // pred_fallthru
    _
  %v11 = vld [vmem:[%s0] sm:$0xff]
  %v12 = vld [vmem:[%s0 + $0x8] sm:$0xff]
  %v13 = vld [vmem:[%s0 + $0x10] sm:$0xff]
  %v14 = vld [vmem:[%s0 + $0x18] sm:$0xff]
  %v15 = vld [vmem:[%s0 + $0x20] sm:$0xff]
  %v16 = vld [vmem:[%s0 + $0x28] sm:$0xff]
  %v17 = vld [vmem:[%s0 + $0x30] sm:$0xff]
  %v18 = vld [vmem:[%s0 + $0x38] sm:$0xff]
  %v19 = vld [vmem:[%s0 + $0x40] sm:$0xff]
  %v20 = vld [vmem:[%s0 + $0x48] sm:$0xff]
  %v21 = vmul.f32 %v11, %v11
  %v22 = vmul.f32 %v12, %v12
  %v23 = vmul.f32 %v13, %v13
  %v24 = vmul.f32 %v14, %v14
  %v25 = vmul.f32 %v15, %v15
  %v26 = vmul.f32 %v16, %v16
  %v27 = vmul.f32 %v17, %v17
  %v28 = vmul.f32 %v18, %v18
  %v29 = vmul.f32 %v19, %v19
  %v30 = vmul.f32 %v20, %v20
  %31 = vadd.xlane.f32.xlu0 %v21
  %v32 = vpop.xlane.xlu0 %31
  %33 = vadd.xlane.f32.xlu0 %v22
  %v34 = vpop.xlane.xlu0 %33
  %35 = vadd.xlane.f32.xlu0 %v23
  %v36 = vpop.xlane.xlu0 %35
  %37 = vadd.xlane.f32.xlu0 %v24
  %v38 = vpop.xlane.xlu0 %37
  %39 = vadd.xlane.f32.xlu0 %v25
  %v40 = vpop.xlane.xlu0 %39
  %41 = vadd.xlane.f32.xlu0 %v26
  %v42 = vpop.xlane.xlu0 %41
  %43 = vadd.xlane.f32.xlu0 %v27
  %v44 = vpop.xlane.xlu0 %43
  %45 = vadd.xlane.f32.xlu0 %v28
  %v46 = vpop.xlane.xlu0 %45
  %47 = vadd.xlane.f32.xlu0 %v29
  %v48 = vpop.xlane.xlu0 %47
  %49 = vadd.xlane.f32.xlu0 %v30
  %v50 = vpop.xlane.xlu0 %49
  %v51 = vmax.f32 %v32, 1e-24
  %v52 = vmax.f32 %v34, 1e-24
  %v53 = vmax.f32 %v36, 1e-24
  %v54 = vmax.f32 %v38, 1e-24
  %v55 = vmax.f32 %v40, 1e-24
  %v56 = vmax.f32 %v42, 1e-24
  %v57 = vmax.f32 %v44, 1e-24
  %v58 = vmax.f32 %v46, 1e-24
  %v59 = vmax.f32 %v48, 1e-24
  %v60 = vmax.f32 %v50, 1e-24
  %v61 = vrsqrt.pop %v51
  %v62 = vrsqrt.pop %v52
  %v63 = vrsqrt.pop %v53
  %v64 = vrsqrt.pop %v54
  %v65 = vrsqrt.pop %v55
  %v66 = vrsqrt.pop %v56
  %v67 = vrsqrt.pop %v57
  %v68 = vrsqrt.pop %v58
  %v69 = vrsqrt.pop %v59
  %v70 = vrsqrt.pop %v60
  %v71 = vmul.f32 %v11, %v61
  %v72 = vmul.f32 %v12, %v62
  %v73 = vmul.f32 %v13, %v63
  %v74 = vmul.f32 %v14, %v64
  %v75 = vmul.f32 %v15, %v65
  %v76 = vmul.f32 %v16, %v66
  %v77 = vmul.f32 %v17, %v67
  %v78 = vmul.f32 %v18, %v68
  %v79 = vmul.f32 %v19, %v69
  %v80 = vmul.f32 %v20, %v70
  %v81 = vld [vmem:[%s1] sm:$0xff]
  %v82 = vld [vmem:[%s1 + $0x8] sm:$0xff]
  %v83 = vld [vmem:[%s1 + $0x10] sm:$0xff]
  %v84 = vld [vmem:[%s1 + $0x18] sm:$0xff]
  %v85 = vld [vmem:[%s1 + $0x20] sm:$0xff]
  %v86 = vld [vmem:[%s1 + $0x28] sm:$0xff]
  %v87 = vld [vmem:[%s1 + $0x30] sm:$0xff]
  %v88 = vld [vmem:[%s1 + $0x38] sm:$0xff]
  %v89 = vld [vmem:[%s1 + $0x40] sm:$0xff]
  %v90 = vld [vmem:[%s1 + $0x48] sm:$0xff]
  %v91 = vld [vmem:[%s1 + $0x50] sm:$0xff]
  %v92 = vld [vmem:[%s1 + $0x58] sm:$0xff]
  %v93 = vld [vmem:[%s1 + $0x60] sm:$0xff]
  %v94 = vld [vmem:[%s1 + $0x68] sm:$0xff]
  %v95 = vld [vmem:[%s1 + $0x70] sm:$0xff]
  %v96 = vld [vmem:[%s1 + $0x78] sm:$0xff]
  %v97 = vld [vmem:[%s1 + $0x80] sm:$0xff]
  %v98 = vld [vmem:[%s1 + $0x88] sm:$0xff]
  %v99 = vld [vmem:[%s1 + $0x90] sm:$0xff]
  %v100 = vld [vmem:[%s1 + $0x98] sm:$0xff]
  %v101 = vld [vmem:[%s1 + $0xa0] sm:$0xff]
  %v102 = vld [vmem:[%s1 + $0xa8] sm:$0xff]
  %v103 = vld [vmem:[%s1 + $0xb0] sm:$0xff]
  %v104 = vld [vmem:[%s1 + $0xb8] sm:$0xff]
  %v105 = vld [vmem:[%s1 + $0xc0] sm:$0xff]
  %v106 = vld [vmem:[%s1 + $0xc8] sm:$0xff]
  %v107 = vld [vmem:[%s1 + $0xd0] sm:$0xff]
  %v108 = vld [vmem:[%s1 + $0xd8] sm:$0xff]
  %v109 = vld [vmem:[%s1 + $0xe0] sm:$0xff]
  %v110 = vld [vmem:[%s1 + $0xe8] sm:$0xff]
  %v111 = vld [vmem:[%s1 + $0xf0] sm:$0xff]
  %v112 = vld [vmem:[%s1 + $0xf8] sm:$0xff]
  %113 = vmatprep.subr.mxu0 %v112
  %114 = vmatpush1.msra.mxu0 %v111
  %115 = vmatprep.subr.mxu0 %v110
  %116 = vmatpush1.msra.mxu0 %v109
  %117 = vmatprep.subr.mxu0 %v108
  %118 = vmatpush1.msra.mxu0 %v107
  %119 = vmatprep.subr.mxu0 %v106
  %120 = vmatpush1.msra.mxu0 %v105
  %121 = vmatprep.subr.mxu0 %v104
  %122 = vmatpush1.msra.mxu0 %v103
  %123 = vmatprep.subr.mxu0 %v102
  %124 = vmatpush1.msra.mxu0 %v101
  %125 = vmatprep.subr.mxu0 %v100
  %126 = vmatpush1.msra.mxu0 %v99
  %127 = vmatprep.subr.mxu0 %v98
  %128 = vmatpush1.msra.mxu0 %v97
  %129 = vmatprep.subr.mxu0 %v96
  %130 = vmatpush1.msra.mxu0 %v95
  %131 = vmatprep.subr.mxu0 %v94
  %132 = vmatpush1.msra.mxu0 %v93
  %133 = vmatprep.subr.mxu0 %v92
  %134 = vmatpush1.msra.mxu0 %v91
  %135 = vmatprep.subr.mxu0 %v90
  %136 = vmatpush1.msra.mxu0 %v89
  %137 = vmatprep.subr.mxu0 %v88
  %138 = vmatpush1.msra.mxu0 %v87
  %139 = vmatprep.subr.mxu0 %v86
  %140 = vmatpush1.msra.mxu0 %v85
  %141 = vmatprep.subr.mxu0 %v84
  %142 = vmatpush1.msra.mxu0 %v83
  %143 = vmatprep.subr.mxu0 %v82
  %144 = vmatpush1.msra.mxu0 %v81
  %145 = vmatprep.subr.mxu0 0.0
  %146 = vmatpush2.msra.mxu0 0.0
  %147 = vmatprep.subr.mxu0 0.0
  %148 = vmatpush2.msra.mxu0 0.0
  %149 = vmatprep.subr.mxu0 0.0
  %150 = vmatpush2.msra.mxu0 0.0
  %151 = vmatprep.subr.mxu0 0.0
  %152 = vmatpush2.msra.mxu0 0.0
  %153 = vmatprep.subr.mxu0 0.0
  %154 = vmatpush2.msra.mxu0 0.0
  %155 = vmatprep.subr.mxu0 0.0
  %156 = vmatpush2.msra.mxu0 0.0
  %157 = vmatprep.subr.mxu0 0.0
  %158 = vmatpush2.msra.mxu0 0.0
  %159 = vmatprep.subr.mxu0 0.0
  %160 = vmatpush2.msra.mxu0 0.0
  %161 = vmatprep.subr.mxu0 0.0
  %162 = vmatpush2.msra.mxu0 0.0
  %163 = vmatprep.subr.mxu0 0.0
  %164 = vmatpush2.msra.mxu0 0.0
  %165 = vmatprep.subr.mxu0 0.0
  %166 = vmatpush2.msra.mxu0 0.0
  %167 = vmatprep.subr.mxu0 0.0
  %168 = vmatpush2.msra.mxu0 0.0
  %169 = vmatprep.subr.mxu0 0.0
  %170 = vmatpush2.msra.mxu0 0.0
  %171 = vmatprep.subr.mxu0 0.0
  %172 = vmatpush2.msra.mxu0 0.0
  %173 = vmatprep.subr.mxu0 0.0
  %174 = vmatpush2.msra.mxu0 0.0
  %175 = vmatprep.subr.mxu0 0.0
  %176 = vmatpush2.msra.mxu0 0.0
  %177 = vmatprep.mubr.f32.mxu0 0.0
  %178 = vmatmul.mubr.f32.gmra.mxu0 %v71
  %v179 = vpop.f32.mrf.mxu0
  %v180 = vadd.f32 0.0, %v179
  %v181 = vpop.f32.mrf.mxu0
  %v182 = vadd.f32 0.0, %v181
  %183 = vmatprep.mubr.f32.mxu0 0.0
  %184 = vmatmul.mubr.f32.gmra.mxu0 %v72
  %v185 = vpop.f32.mrf.mxu0
  %v186 = vadd.f32 0.0, %v185
  %v187 = vpop.f32.mrf.mxu0
  %v188 = vadd.f32 0.0, %v187
  %189 = vmatprep.mubr.f32.mxu0 0.0
  %190 = vmatmul.mubr.f32.gmra.mxu0 %v73
  %v191 = vpop.f32.mrf.mxu0
  %v192 = vadd.f32 0.0, %v191
  %v193 = vpop.f32.mrf.mxu0
  %v194 = vadd.f32 0.0, %v193
  %195 = vmatprep.mubr.f32.mxu0 0.0
  %196 = vmatmul.mubr.f32.gmra.mxu0 %v74
  %v197 = vpop.f32.mrf.mxu0
  %v198 = vadd.f32 0.0, %v197
  %v199 = vpop.f32.mrf.mxu0
  %v200 = vadd.f32 0.0, %v199
  %201 = vmatprep.mubr.f32.mxu0 0.0
  %202 = vmatmul.mubr.f32.gmra.mxu0 %v75
  %v203 = vpop.f32.mrf.mxu0
  %v204 = vadd.f32 0.0, %v203
  %v205 = vpop.f32.mrf.mxu0
  %v206 = vadd.f32 0.0, %v205
  %207 = vmatprep.mubr.f32.mxu0 0.0
  %208 = vmatmul.mubr.f32.gmra.mxu0 %v76
  %v209 = vpop.f32.mrf.mxu0
  %v210 = vadd.f32 0.0, %v209
  %v211 = vpop.f32.mrf.mxu0
  %v212 = vadd.f32 0.0, %v211
  %213 = vmatprep.mubr.f32.mxu0 0.0
  %214 = vmatmul.mubr.f32.gmra.mxu0 %v77
  %v215 = vpop.f32.mrf.mxu0
  %v216 = vadd.f32 0.0, %v215
  %v217 = vpop.f32.mrf.mxu0
  %v218 = vadd.f32 0.0, %v217
  %219 = vmatprep.mubr.f32.mxu0 0.0
  %220 = vmatmul.mubr.f32.gmra.mxu0 %v78
  %v221 = vpop.f32.mrf.mxu0
  %v222 = vadd.f32 0.0, %v221
  %v223 = vpop.f32.mrf.mxu0
  %v224 = vadd.f32 0.0, %v223
  %225 = vmatprep.mubr.f32.mxu0 0.0
  %226 = vmatmul.mubr.f32.gmra.mxu0 %v79
  %v227 = vpop.f32.mrf.mxu0
  %v228 = vadd.f32 0.0, %v227
  %v229 = vpop.f32.mrf.mxu0
  %v230 = vadd.f32 0.0, %v229
  %231 = vmatprep.mubr.f32.mxu0 0.0
  %232 = vmatmul.mubr.f32.gmra.mxu0 %v80
  %v233 = vpop.f32.mrf.mxu0
  %v234 = vadd.f32 0.0, %v233
  %v235 = vpop.f32.mrf.mxu0
  %v236 = vadd.f32 0.0, %v235
  %237 = vdwg.mxu0
  %vm238 = vcmask 523264
  %v239 = vsel %vm238, %v182, -inf
  %v240 = vmax.f32 %v180, %v239
  %241 = vmax.xlane.f32.xlu0 %v240
  %v242 = vpop.xlane.xlu0 %241
  %v243 = vsel %vm238, %v188, -inf
  %v244 = vmax.f32 %v186, %v243
  %245 = vmax.xlane.f32.xlu0 %v244
  %v246 = vpop.xlane.xlu0 %245
  %v247 = vsel %vm238, %v194, -inf
  %v248 = vmax.f32 %v192, %v247
  %249 = vmax.xlane.f32.xlu0 %v248
  %v250 = vpop.xlane.xlu0 %249
  %v251 = vsel %vm238, %v200, -inf
  %v252 = vmax.f32 %v198, %v251
  %253 = vmax.xlane.f32.xlu0 %v252
  %v254 = vpop.xlane.xlu0 %253
  %v255 = vsel %vm238, %v206, -inf
  %v256 = vmax.f32 %v204, %v255
  %257 = vmax.xlane.f32.xlu0 %v256
  %v258 = vpop.xlane.xlu0 %257
  %v259 = vsel %vm238, %v212, -inf
  %v260 = vmax.f32 %v210, %v259
  %261 = vmax.xlane.f32.xlu0 %v260
  %v262 = vpop.xlane.xlu0 %261
  %v263 = vsel %vm238, %v218, -inf
  %v264 = vmax.f32 %v216, %v263
  %265 = vmax.xlane.f32.xlu0 %v264
  %v266 = vpop.xlane.xlu0 %265
  %v267 = vsel %vm238, %v224, -inf
  %v268 = vmax.f32 %v222, %v267
  %269 = vmax.xlane.f32.xlu0 %v268
  %v270 = vpop.xlane.xlu0 %269
  %v271 = vsel %vm238, %v230, -inf
  %v272 = vmax.f32 %v228, %v271
  %273 = vmax.xlane.f32.xlu0 %v272
  %v274 = vpop.xlane.xlu0 %273
  %v275 = vsel %vm238, %v236, -inf
  %v276 = vmax.f32 %v234, %v275
  %277 = vmax.xlane.f32.xlu0 %v276
  %v278 = vpop.xlane.xlu0 %277
  %v279 = vlaneseq
  %v280 = vand.u32 %v279, 127
  %v281 = vadd.s32 %v280, 128
  %vm282 = vcmp.ge.f32.partialorder %v180, %v242
  %vm283 = vcmp.ge.f32.partialorder %v182, %v242
  %vm284 = vcmp.ge.f32.partialorder %v186, %v246
  %vm285 = vcmp.ge.f32.partialorder %v188, %v246
  %vm286 = vcmp.ge.f32.partialorder %v192, %v250
  %vm287 = vcmp.ge.f32.partialorder %v194, %v250
  %vm288 = vcmp.ge.f32.partialorder %v198, %v254
  %vm289 = vcmp.ge.f32.partialorder %v200, %v254
  %vm290 = vcmp.ge.f32.partialorder %v204, %v258
  %vm291 = vcmp.ge.f32.partialorder %v206, %v258
  %vm292 = vcmp.ge.f32.partialorder %v210, %v262
  %vm293 = vcmp.ge.f32.partialorder %v212, %v262
  %vm294 = vcmp.ge.f32.partialorder %v216, %v266
  %vm295 = vcmp.ge.f32.partialorder %v218, %v266
  %vm296 = vcmp.ge.f32.partialorder %v222, %v270
  %vm297 = vcmp.ge.f32.partialorder %v224, %v270
  %vm298 = vcmp.ge.f32.partialorder %v228, %v274
  %vm299 = vcmp.ge.f32.partialorder %v230, %v274
  %vm300 = vcmp.ge.f32.partialorder %v234, %v278
  %vm301 = vcmp.ge.f32.partialorder %v236, %v278
  %v302 = vsel %vm282, %v280, 192
  %v303 = vsel %vm283, %v281, 192
  %v304 = vsel %vm284, %v280, 192
  %v305 = vsel %vm285, %v281, 192
  %v306 = vsel %vm286, %v280, 192
  %v307 = vsel %vm287, %v281, 192
  %v308 = vsel %vm288, %v280, 192
  %v309 = vsel %vm289, %v281, 192
  %v310 = vsel %vm290, %v280, 192
  %v311 = vsel %vm291, %v281, 192
  %v312 = vsel %vm292, %v280, 192
  %v313 = vsel %vm293, %v281, 192
  %v314 = vsel %vm294, %v280, 192
  %v315 = vsel %vm295, %v281, 192
  %v316 = vsel %vm296, %v280, 192
  %v317 = vsel %vm297, %v281, 192
  %v318 = vsel %vm298, %v280, 192
  %v319 = vsel %vm299, %v281, 192
  %v320 = vsel %vm300, %v280, 192
  %v321 = vsel %vm301, %v281, 192
  %v322 = vsel %vm238, %v303, 2147483647
  %vm323 = vcmp.lt.s32.totalorder %v302, %v322
  %v324 = vsel %vm323, %v302, %v322
  %v325 = vand.u32 %v324, 65535
  %v326 = vshra.s32 %v324, 16
  %v327 = vcvt.s32.f32 %v325
  %v328 = vcvt.s32.f32 %v326
  %329 = vmin.xlane.f32.xlu0 %v328
  %v330 = vpop.xlane.xlu0 %329
  %vm331 = vcmp.eq.f32.partialorder %v328, %v330
  %v332 = vsel %vm331, %v327, inf
  %333 = vmin.xlane.f32.xlu0 %v332
  %v334 = vpop.xlane.xlu0 %333
  %v335 = vcvt.f32.s32 %v334
  %v336 = vcvt.f32.s32 %v330
  %v337 = vshll.u32 %v336, 16
  %v338 = vadd.s32 %v337, %v335
  %v339 = vsel %vm238, %v305, 2147483647
  %vm340 = vcmp.lt.s32.totalorder %v304, %v339
  %v341 = vsel %vm340, %v304, %v339
  %v342 = vand.u32 %v341, 65535
  %v343 = vshra.s32 %v341, 16
  %v344 = vcvt.s32.f32 %v342
  %v345 = vcvt.s32.f32 %v343
  %346 = vmin.xlane.f32.xlu0 %v345
  %v347 = vpop.xlane.xlu0 %346
  %vm348 = vcmp.eq.f32.partialorder %v345, %v347
  %v349 = vsel %vm348, %v344, inf
  %350 = vmin.xlane.f32.xlu0 %v349
  %v351 = vpop.xlane.xlu0 %350
  %v352 = vcvt.f32.s32 %v351
  %v353 = vcvt.f32.s32 %v347
  %v354 = vshll.u32 %v353, 16
  %v355 = vadd.s32 %v354, %v352
  %v356 = vsel %vm238, %v307, 2147483647
  %vm357 = vcmp.lt.s32.totalorder %v306, %v356
  %v358 = vsel %vm357, %v306, %v356
  %v359 = vand.u32 %v358, 65535
  %v360 = vshra.s32 %v358, 16
  %v361 = vcvt.s32.f32 %v359
  %v362 = vcvt.s32.f32 %v360
  %363 = vmin.xlane.f32.xlu0 %v362
  %v364 = vpop.xlane.xlu0 %363
  %vm365 = vcmp.eq.f32.partialorder %v362, %v364
  %v366 = vsel %vm365, %v361, inf
  %367 = vmin.xlane.f32.xlu0 %v366
  %v368 = vpop.xlane.xlu0 %367
  %v369 = vcvt.f32.s32 %v368
  %v370 = vcvt.f32.s32 %v364
  %v371 = vshll.u32 %v370, 16
  %v372 = vadd.s32 %v371, %v369
  %v373 = vsel %vm238, %v309, 2147483647
  %vm374 = vcmp.lt.s32.totalorder %v308, %v373
  %v375 = vsel %vm374, %v308, %v373
  %v376 = vand.u32 %v375, 65535
  %v377 = vshra.s32 %v375, 16
  %v378 = vcvt.s32.f32 %v376
  %v379 = vcvt.s32.f32 %v377
  %380 = vmin.xlane.f32.xlu0 %v379
  %v381 = vpop.xlane.xlu0 %380
  %vm382 = vcmp.eq.f32.partialorder %v379, %v381
  %v383 = vsel %vm382, %v378, inf
  %384 = vmin.xlane.f32.xlu0 %v383
  %v385 = vpop.xlane.xlu0 %384
  %v386 = vcvt.f32.s32 %v385
  %v387 = vcvt.f32.s32 %v381
  %v388 = vshll.u32 %v387, 16
  %v389 = vadd.s32 %v388, %v386
  %v390 = vsel %vm238, %v311, 2147483647
  %vm391 = vcmp.lt.s32.totalorder %v310, %v390
  %v392 = vsel %vm391, %v310, %v390
  %v393 = vand.u32 %v392, 65535
  %v394 = vshra.s32 %v392, 16
  %v395 = vcvt.s32.f32 %v393
  %v396 = vcvt.s32.f32 %v394
  %397 = vmin.xlane.f32.xlu0 %v396
  %v398 = vpop.xlane.xlu0 %397
  %vm399 = vcmp.eq.f32.partialorder %v396, %v398
  %v400 = vsel %vm399, %v395, inf
  %401 = vmin.xlane.f32.xlu0 %v400
  %v402 = vpop.xlane.xlu0 %401
  %v403 = vcvt.f32.s32 %v402
  %v404 = vcvt.f32.s32 %v398
  %v405 = vshll.u32 %v404, 16
  %v406 = vadd.s32 %v405, %v403
  %v407 = vsel %vm238, %v313, 2147483647
  %vm408 = vcmp.lt.s32.totalorder %v312, %v407
  %v409 = vsel %vm408, %v312, %v407
  %v410 = vand.u32 %v409, 65535
  %v411 = vshra.s32 %v409, 16
  %v412 = vcvt.s32.f32 %v410
  %v413 = vcvt.s32.f32 %v411
  %414 = vmin.xlane.f32.xlu0 %v413
  %v415 = vpop.xlane.xlu0 %414
  %vm416 = vcmp.eq.f32.partialorder %v413, %v415
  %v417 = vsel %vm416, %v412, inf
  %418 = vmin.xlane.f32.xlu0 %v417
  %v419 = vpop.xlane.xlu0 %418
  %v420 = vcvt.f32.s32 %v419
  %v421 = vcvt.f32.s32 %v415
  %v422 = vshll.u32 %v421, 16
  %v423 = vadd.s32 %v422, %v420
  %v424 = vsel %vm238, %v315, 2147483647
  %vm425 = vcmp.lt.s32.totalorder %v314, %v424
  %v426 = vsel %vm425, %v314, %v424
  %v427 = vand.u32 %v426, 65535
  %v428 = vshra.s32 %v426, 16
  %v429 = vcvt.s32.f32 %v427
  %v430 = vcvt.s32.f32 %v428
  %431 = vmin.xlane.f32.xlu0 %v430
  %v432 = vpop.xlane.xlu0 %431
  %vm433 = vcmp.eq.f32.partialorder %v430, %v432
  %v434 = vsel %vm433, %v429, inf
  %435 = vmin.xlane.f32.xlu0 %v434
  %v436 = vpop.xlane.xlu0 %435
  %v437 = vcvt.f32.s32 %v436
  %v438 = vcvt.f32.s32 %v432
  %v439 = vshll.u32 %v438, 16
  %v440 = vadd.s32 %v439, %v437
  %v441 = vsel %vm238, %v317, 2147483647
  %vm442 = vcmp.lt.s32.totalorder %v316, %v441
  %v443 = vsel %vm442, %v316, %v441
  %v444 = vand.u32 %v443, 65535
  %v445 = vshra.s32 %v443, 16
  %v446 = vcvt.s32.f32 %v444
  %v447 = vcvt.s32.f32 %v445
  %448 = vmin.xlane.f32.xlu0 %v447
  %v449 = vpop.xlane.xlu0 %448
  %vm450 = vcmp.eq.f32.partialorder %v447, %v449
  %v451 = vsel %vm450, %v446, inf
  %452 = vmin.xlane.f32.xlu0 %v451
  %v453 = vpop.xlane.xlu0 %452
  %v454 = vcvt.f32.s32 %v453
  %v455 = vcvt.f32.s32 %v449
  %v456 = vshll.u32 %v455, 16
  %v457 = vadd.s32 %v456, %v454
  %v458 = vsel %vm238, %v319, 2147483647
  %vm459 = vcmp.lt.s32.totalorder %v318, %v458
  %v460 = vsel %vm459, %v318, %v458
  %v461 = vand.u32 %v460, 65535
  %v462 = vshra.s32 %v460, 16
  %v463 = vcvt.s32.f32 %v461
  %v464 = vcvt.s32.f32 %v462
  %465 = vmin.xlane.f32.xlu0 %v464
  %v466 = vpop.xlane.xlu0 %465
  %vm467 = vcmp.eq.f32.partialorder %v464, %v466
  %v468 = vsel %vm467, %v463, inf
  %469 = vmin.xlane.f32.xlu0 %v468
  %v470 = vpop.xlane.xlu0 %469
  %v471 = vcvt.f32.s32 %v470
  %v472 = vcvt.f32.s32 %v466
  %v473 = vshll.u32 %v472, 16
  %v474 = vadd.s32 %v473, %v471
  %v475 = vsel %vm238, %v321, 2147483647
  %vm476 = vcmp.lt.s32.totalorder %v320, %v475
  %v477 = vsel %vm476, %v320, %v475
  %v478 = vand.u32 %v477, 65535
  %v479 = vshra.s32 %v477, 16
  %v480 = vcvt.s32.f32 %v478
  %v481 = vcvt.s32.f32 %v479
  %482 = vmin.xlane.f32.xlu0 %v481
  %v483 = vpop.xlane.xlu0 %482
  %vm484 = vcmp.eq.f32.partialorder %v481, %v483
  %v485 = vsel %vm484, %v480, inf
  %486 = vmin.xlane.f32.xlu0 %v485
  %v487 = vpop.xlane.xlu0 %486
  %v488 = vcvt.f32.s32 %v487
  %v489 = vcvt.f32.s32 %v483
  %v490 = vshll.u32 %v489, 16
  %v491 = vadd.s32 %v490, %v488
  %vm492 = vcmp.lt.s32.totalorder %v338, 191
  %v493 = vsel %vm492, %v338, 191
  %vm494 = vcmp.lt.s32.totalorder %v355, 191
  %v495 = vsel %vm494, %v355, 191
  %vm496 = vcmp.lt.s32.totalorder %v372, 191
  %v497 = vsel %vm496, %v372, 191
  %vm498 = vcmp.lt.s32.totalorder %v389, 191
  %v499 = vsel %vm498, %v389, 191
  %vm500 = vcmp.lt.s32.totalorder %v406, 191
  %v501 = vsel %vm500, %v406, 191
  %vm502 = vcmp.lt.s32.totalorder %v423, 191
  %v503 = vsel %vm502, %v423, 191
  %vm504 = vcmp.lt.s32.totalorder %v440, 191
  %v505 = vsel %vm504, %v440, 191
  %vm506 = vcmp.lt.s32.totalorder %v457, 191
  %v507 = vsel %vm506, %v457, 191
  %vm508 = vcmp.lt.s32.totalorder %v474, 191
  %v509 = vsel %vm508, %v474, 191
  %vm510 = vcmp.lt.s32.totalorder %v491, 191
  %v511 = vsel %vm510, %v491, 191
  %vm512 = vcmask 7168
  %513 = vst.msk [vmem:[%s2] sm:$0xff] %vm512, %v493
  %514 = vst.msk [vmem:[%s2 + $0x8] sm:$0xff] %vm512, %v495
  %515 = vst.msk [vmem:[%s2 + $0x10] sm:$0xff] %vm512, %v497
  %516 = vst.msk [vmem:[%s2 + $0x18] sm:$0xff] %vm512, %v499
  %517 = vst.msk [vmem:[%s2 + $0x20] sm:$0xff] %vm512, %v501
  %518 = vst.msk [vmem:[%s2 + $0x28] sm:$0xff] %vm512, %v503
  %519 = vst.msk [vmem:[%s2 + $0x30] sm:$0xff] %vm512, %v505
  %520 = vst.msk [vmem:[%s2 + $0x38] sm:$0xff] %vm512, %v507
  %521 = vst.msk [vmem:[%s2 + $0x40] sm:$0xff] %vm512, %v509
  %522 = vst.msk [vmem:[%s2 + $0x48] sm:$0xff] %vm512, %v511
  // Predicated region
  $region10: #{_lambda_.3} parent=0 // pred_check
    _
  $region11: #{_lambda_.3} parent=0 // pred_check_branch
    %524 = sbr.rel (0) target = $region13
  $region12: #{_lambda_.3} parent=0 // pred_region
    _
  $region13: #{_lambda_.3} parent=0 // pred_fallthru
    _
  // Predicated region
  $region14: #{_lambda_.3} parent=0 // pred_check
    _
  $region15: #{_lambda_.3} parent=0 // pred_check_branch
    %526 = sbr.rel (0) target = $region17
  $region16: #{_lambda_.3} parent=0 // pred_region
    _
  $region17: #{_lambda_.3} parent=0 // pred_fallthru
    _

// kernel: sub.8
$region0: #{sub.8}
  #allocation0 [shape = 's32[1]{0}', space=sflag, size = 0x4, scoped, tag = 'scoped memory for sub.8']
  %s0 = inlined_call_operand.vmem [shape: f32[2,160,128], index: 0, kind: input, shape index: {}]
  %s1 = inlined_call_operand.vmem [shape: f32[2,160,128], index: 1, kind: input, shape index: {}]
  %s2 = inlined_call_operand.vmem [shape: f32[2,160,128], index: 2, kind: output, shape index: {}]
  %v3 = vld [vmem:[%s0] sm:$0xff]
  %v4 = vld [vmem:[%s1] sm:$0xff]
  %5 = xla_tuple %v3, %v4
  %6 = xla_tuple %5
  %v7 = vsub.f32 %v3, %v4
  %8 = xla_tuple %v7
  %9 = vst [vmem:[%s2] sm:$0xff] %v7
  %s10 = scalar_lea.vmem %s0, 160
  %v11 = vld [vmem:[%s10] sm:$0xff]
  %s12 = scalar_lea.vmem %s1, 160
  %v13 = vld [vmem:[%s12] sm:$0xff]
  %14 = xla_tuple %v11, %v13
  %15 = xla_tuple %14
  %v16 = vsub.f32 %v11, %v13
  %17 = xla_tuple %v16
  %s18 = scalar_lea.vmem %s2, 160
  %19 = vst [vmem:[%s18] sm:$0xff] %v16
  %s20 = scalar_lea.vmem %s0, 8
  %v21 = vld [vmem:[%s20] sm:$0xff]
  %s22 = scalar_lea.vmem %s1, 8
  %v23 = vld [vmem:[%s22] sm:$0xff]
  %24 = xla_tuple %v21, %v23
  %25 = xla_tuple %24
  %v26 = vsub.f32 %v21, %v23
  %27 = xla_tuple %v26
  %s28 = scalar_lea.vmem %s2, 8
  %29 = vst [vmem:[%s28] sm:$0xff] %v26
  %s30 = scalar_lea.vmem %s0, 168
  %v31 = vld [vmem:[%s30] sm:$0xff]
  %s32 = scalar_lea.vmem %s1, 168
  %v33 = vld [vmem:[%s32] sm:$0xff]
  %34 = xla_tuple %v31, %v33
  %35 = xla_tuple %34
  %v36 = vsub.f32 %v31, %v33
  %37 = xla_tuple %v36
  %s38 = scalar_lea.vmem %s2, 168
  %39 = vst [vmem:[%s38] sm:$0xff] %v36
  %s40 = scalar_lea.vmem %s0, 16
  %v41 = vld [vmem:[%s40] sm:$0xff]
  %s42 = scalar_lea.vmem %s1, 16
  %v43 = vld [vmem:[%s42] sm:$0xff]
  %44 = xla_tuple %v41, %v43
  %45 = xla_tuple %44
  %v46 = vsub.f32 %v41, %v43
  %47 = xla_tuple %v46
  %s48 = scalar_lea.vmem %s2, 16
  %49 = vst [vmem:[%s48] sm:$0xff] %v46
  %s50 = scalar_lea.vmem %s0, 176
  %v51 = vld [vmem:[%s50] sm:$0xff]
  %s52 = scalar_lea.vmem %s1, 176
  %v53 = vld [vmem:[%s52] sm:$0xff]
  %54 = xla_tuple %v51, %v53
  %55 = xla_tuple %54
  %v56 = vsub.f32 %v51, %v53
  %57 = xla_tuple %v56
  %s58 = scalar_lea.vmem %s2, 176
  %59 = vst [vmem:[%s58] sm:$0xff] %v56
  %s60 = scalar_lea.vmem %s0, 24
  %v61 = vld [vmem:[%s60] sm:$0xff]
  %s62 = scalar_lea.vmem %s1, 24
  %v63 = vld [vmem:[%s62] sm:$0xff]
  %64 = xla_tuple %v61, %v63
  %65 = xla_tuple %64
  %v66 = vsub.f32 %v61, %v63
  %67 = xla_tuple %v66
  %s68 = scalar_lea.vmem %s2, 24
  %69 = vst [vmem:[%s68] sm:$0xff] %v66
  %s70 = scalar_lea.vmem %s0, 184
  %v71 = vld [vmem:[%s70] sm:$0xff]
  %s72 = scalar_lea.vmem %s1, 184
  %v73 = vld [vmem:[%s72] sm:$0xff]
  %74 = xla_tuple %v71, %v73
  %75 = xla_tuple %74
  %v76 = vsub.f32 %v71, %v73
  %77 = xla_tuple %v76
  %s78 = scalar_lea.vmem %s2, 184
  %79 = vst [vmem:[%s78] sm:$0xff] %v76
  %s80 = scalar_lea.vmem %s0, 32
  %v81 = vld [vmem:[%s80] sm:$0xff]
  %s82 = scalar_lea.vmem %s1, 32
  %v83 = vld [vmem:[%s82] sm:$0xff]
  %84 = xla_tuple %v81, %v83
  %85 = xla_tuple %84
  %v86 = vsub.f32 %v81, %v83
  %87 = xla_tuple %v86
  %s88 = scalar_lea.vmem %s2, 32
  %89 = vst [vmem:[%s88] sm:$0xff] %v86
  %s90 = scalar_lea.vmem %s0, 192
  %v91 = vld [vmem:[%s90] sm:$0xff]
  %s92 = scalar_lea.vmem %s1, 192
  %v93 = vld [vmem:[%s92] sm:$0xff]
  %94 = xla_tuple %v91, %v93
  %95 = xla_tuple %94
  %v96 = vsub.f32 %v91, %v93
  %97 = xla_tuple %v96
  %s98 = scalar_lea.vmem %s2, 192
  %99 = vst [vmem:[%s98] sm:$0xff] %v96
  %s100 = scalar_lea.vmem %s0, 40
  %v101 = vld [vmem:[%s100] sm:$0xff]
  %s102 = scalar_lea.vmem %s1, 40
  %v103 = vld [vmem:[%s102] sm:$0xff]
  %104 = xla_tuple %v101, %v103
  %105 = xla_tuple %104
  %v106 = vsub.f32 %v101, %v103
  %107 = xla_tuple %v106
  %s108 = scalar_lea.vmem %s2, 40
  %109 = vst [vmem:[%s108] sm:$0xff] %v106
  %s110 = scalar_lea.vmem %s0, 200
  %v111 = vld [vmem:[%s110] sm:$0xff]
  %s112 = scalar_lea.vmem %s1, 200
  %v113 = vld [vmem:[%s112] sm:$0xff]
  %114 = xla_tuple %v111, %v113
  %115 = xla_tuple %114
  %v116 = vsub.f32 %v111, %v113
  %117 = xla_tuple %v116
  %s118 = scalar_lea.vmem %s2, 200
  %119 = vst [vmem:[%s118] sm:$0xff] %v116
  %s120 = scalar_lea.vmem %s0, 48
  %v121 = vld [vmem:[%s120] sm:$0xff]
  %s122 = scalar_lea.vmem %s1, 48
  %v123 = vld [vmem:[%s122] sm:$0xff]
  %124 = xla_tuple %v121, %v123
  %125 = xla_tuple %124
  %v126 = vsub.f32 %v121, %v123
  %127 = xla_tuple %v126
  %s128 = scalar_lea.vmem %s2, 48
  %129 = vst [vmem:[%s128] sm:$0xff] %v126
  %s130 = scalar_lea.vmem %s0, 208
  %v131 = vld [vmem:[%s130] sm:$0xff]
  %s132 = scalar_lea.vmem %s1, 208
  %v133 = vld [vmem:[%s132] sm:$0xff]
  %134 = xla_tuple %v131, %v133
  %135 = xla_tuple %134
  %v136 = vsub.f32 %v131, %v133
  %137 = xla_tuple %v136
  %s138 = scalar_lea.vmem %s2, 208
  %139 = vst [vmem:[%s138] sm:$0xff] %v136
  %s140 = scalar_lea.vmem %s0, 56
  %v141 = vld [vmem:[%s140] sm:$0xff]
  %s142 = scalar_lea.vmem %s1, 56
  %v143 = vld [vmem:[%s142] sm:$0xff]
  %144 = xla_tuple %v141, %v143
  %145 = xla_tuple %144
  %v146 = vsub.f32 %v141, %v143
  %147 = xla_tuple %v146
  %s148 = scalar_lea.vmem %s2, 56
  %149 = vst [vmem:[%s148] sm:$0xff] %v146
  %s150 = scalar_lea.vmem %s0, 216
  %v151 = vld [vmem:[%s150] sm:$0xff]
  %s152 = scalar_lea.vmem %s1, 216
  %v153 = vld [vmem:[%s152] sm:$0xff]
  %154 = xla_tuple %v151, %v153
  %155 = xla_tuple %154
  %v156 = vsub.f32 %v151, %v153
  %157 = xla_tuple %v156
  %s158 = scalar_lea.vmem %s2, 216
  %159 = vst [vmem:[%s158] sm:$0xff] %v156
  %s160 = scalar_lea.vmem %s0, 64
  %v161 = vld [vmem:[%s160] sm:$0xff]
  %s162 = scalar_lea.vmem %s1, 64
  %v163 = vld [vmem:[%s162] sm:$0xff]
  %164 = xla_tuple %v161, %v163
  %165 = xla_tuple %164
  %v166 = vsub.f32 %v161, %v163
  %167 = xla_tuple %v166
  %s168 = scalar_lea.vmem %s2, 64
  %169 = vst [vmem:[%s168] sm:$0xff] %v166
  %s170 = scalar_lea.vmem %s0, 224
  %v171 = vld [vmem:[%s170] sm:$0xff]
  %s172 = scalar_lea.vmem %s1, 224
  %v173 = vld [vmem:[%s172] sm:$0xff]
  %174 = xla_tuple %v171, %v173
  %175 = xla_tuple %174
  %v176 = vsub.f32 %v171, %v173
  %177 = xla_tuple %v176
  %s178 = scalar_lea.vmem %s2, 224
  %179 = vst [vmem:[%s178] sm:$0xff] %v176
  %s180 = scalar_lea.vmem %s0, 72
  %v181 = vld [vmem:[%s180] sm:$0xff]
  %s182 = scalar_lea.vmem %s1, 72
  %v183 = vld [vmem:[%s182] sm:$0xff]
  %184 = xla_tuple %v181, %v183
  %185 = xla_tuple %184
  %v186 = vsub.f32 %v181, %v183
  %187 = xla_tuple %v186
  %s188 = scalar_lea.vmem %s2, 72
  %189 = vst [vmem:[%s188] sm:$0xff] %v186
  %s190 = scalar_lea.vmem %s0, 232
  %v191 = vld [vmem:[%s190] sm:$0xff]
  %s192 = scalar_lea.vmem %s1, 232
  %v193 = vld [vmem:[%s192] sm:$0xff]
  %194 = xla_tuple %v191, %v193
  %195 = xla_tuple %194
  %v196 = vsub.f32 %v191, %v193
  %197 = xla_tuple %v196
  %s198 = scalar_lea.vmem %s2, 232
  %199 = vst [vmem:[%s198] sm:$0xff] %v196
  %s200 = scalar_lea.vmem %s0, 80
  %v201 = vld [vmem:[%s200] sm:$0xff]
  %s202 = scalar_lea.vmem %s1, 80
  %v203 = vld [vmem:[%s202] sm:$0xff]
  %204 = xla_tuple %v201, %v203
  %205 = xla_tuple %204
  %v206 = vsub.f32 %v201, %v203
  %207 = xla_tuple %v206
  %s208 = scalar_lea.vmem %s2, 80
  %209 = vst [vmem:[%s208] sm:$0xff] %v206
  %s210 = scalar_lea.vmem %s0, 240
  %v211 = vld [vmem:[%s210] sm:$0xff]
  %s212 = scalar_lea.vmem %s1, 240
  %v213 = vld [vmem:[%s212] sm:$0xff]
  %214 = xla_tuple %v211, %v213
  %215 = xla_tuple %214
  %v216 = vsub.f32 %v211, %v213
  %217 = xla_tuple %v216
  %s218 = scalar_lea.vmem %s2, 240
  %219 = vst [vmem:[%s218] sm:$0xff] %v216
  %s220 = scalar_lea.vmem %s0, 88
  %v221 = vld [vmem:[%s220] sm:$0xff]
  %s222 = scalar_lea.vmem %s1, 88
  %v223 = vld [vmem:[%s222] sm:$0xff]
  %224 = xla_tuple %v221, %v223
  %225 = xla_tuple %224
  %v226 = vsub.f32 %v221, %v223
  %227 = xla_tuple %v226
  %s228 = scalar_lea.vmem %s2, 88
  %229 = vst [vmem:[%s228] sm:$0xff] %v226
  %s230 = scalar_lea.vmem %s0, 248
  %v231 = vld [vmem:[%s230] sm:$0xff]
  %s232 = scalar_lea.vmem %s1, 248
  %v233 = vld [vmem:[%s232] sm:$0xff]
  %234 = xla_tuple %v231, %v233
  %235 = xla_tuple %234
  %v236 = vsub.f32 %v231, %v233
  %237 = xla_tuple %v236
  %s238 = scalar_lea.vmem %s2, 248
  %239 = vst [vmem:[%s238] sm:$0xff] %v236
  %s240 = scalar_lea.vmem %s0, 96
  %v241 = vld [vmem:[%s240] sm:$0xff]
  %s242 = scalar_lea.vmem %s1, 96
  %v243 = vld [vmem:[%s242] sm:$0xff]
  %244 = xla_tuple %v241, %v243
  %245 = xla_tuple %244
  %v246 = vsub.f32 %v241, %v243
  %247 = xla_tuple %v246
  %s248 = scalar_lea.vmem %s2, 96
  %249 = vst [vmem:[%s248] sm:$0xff] %v246
  %s250 = scalar_lea.vmem %s0, 256
  %v251 = vld [vmem:[%s250] sm:$0xff]
  %s252 = scalar_lea.vmem %s1, 256
  %v253 = vld [vmem:[%s252] sm:$0xff]
  %254 = xla_tuple %v251, %v253
  %255 = xla_tuple %254
  %v256 = vsub.f32 %v251, %v253
  %257 = xla_tuple %v256
  %s258 = scalar_lea.vmem %s2, 256
  %259 = vst [vmem:[%s258] sm:$0xff] %v256
  %s260 = scalar_lea.vmem %s0, 104
  %v261 = vld [vmem:[%s260] sm:$0xff]
  %s262 = scalar_lea.vmem %s1, 104
  %v263 = vld [vmem:[%s262] sm:$0xff]
  %264 = xla_tuple %v261, %v263
  %265 = xla_tuple %264
  %v266 = vsub.f32 %v261, %v263
  %267 = xla_tuple %v266
  %s268 = scalar_lea.vmem %s2, 104
  %269 = vst [vmem:[%s268] sm:$0xff] %v266
  %s270 = scalar_lea.vmem %s0, 264
  %v271 = vld [vmem:[%s270] sm:$0xff]
  %s272 = scalar_lea.vmem %s1, 264
  %v273 = vld [vmem:[%s272] sm:$0xff]
  %274 = xla_tuple %v271, %v273
  %275 = xla_tuple %274
  %v276 = vsub.f32 %v271, %v273
  %277 = xla_tuple %v276
  %s278 = scalar_lea.vmem %s2, 264
  %279 = vst [vmem:[%s278] sm:$0xff] %v276
  %s280 = scalar_lea.vmem %s0, 112
  %v281 = vld [vmem:[%s280] sm:$0xff]
  %s282 = scalar_lea.vmem %s1, 112
  %v283 = vld [vmem:[%s282] sm:$0xff]
  %284 = xla_tuple %v281, %v283
  %285 = xla_tuple %284
  %v286 = vsub.f32 %v281, %v283
  %287 = xla_tuple %v286
  %s288 = scalar_lea.vmem %s2, 112
  %289 = vst [vmem:[%s288] sm:$0xff] %v286
  %s290 = scalar_lea.vmem %s0, 272
  %v291 = vld [vmem:[%s290] sm:$0xff]
  %s292 = scalar_lea.vmem %s1, 272
  %v293 = vld [vmem:[%s292] sm:$0xff]
  %294 = xla_tuple %v291, %v293
  %295 = xla_tuple %294
  %v296 = vsub.f32 %v291, %v293
  %297 = xla_tuple %v296
  %s298 = scalar_lea.vmem %s2, 272
  %299 = vst [vmem:[%s298] sm:$0xff] %v296
  %s300 = scalar_lea.vmem %s0, 120
  %v301 = vld [vmem:[%s300] sm:$0xff]
  %s302 = scalar_lea.vmem %s1, 120
  %v303 = vld [vmem:[%s302] sm:$0xff]
  %304 = xla_tuple %v301, %v303
  %305 = xla_tuple %304
  %v306 = vsub.f32 %v301, %v303
  %307 = xla_tuple %v306
  %s308 = scalar_lea.vmem %s2, 120
  %309 = vst [vmem:[%s308] sm:$0xff] %v306
  %s310 = scalar_lea.vmem %s0, 280
  %v311 = vld [vmem:[%s310] sm:$0xff]
  %s312 = scalar_lea.vmem %s1, 280
  %v313 = vld [vmem:[%s312] sm:$0xff]
  %314 = xla_tuple %v311, %v313
  %315 = xla_tuple %314
  %v316 = vsub.f32 %v311, %v313
  %317 = xla_tuple %v316
  %s318 = scalar_lea.vmem %s2, 280
  %319 = vst [vmem:[%s318] sm:$0xff] %v316
  %s320 = scalar_lea.vmem %s0, 128
  %v321 = vld [vmem:[%s320] sm:$0xff]
  %s322 = scalar_lea.vmem %s1, 128
  %v323 = vld [vmem:[%s322] sm:$0xff]
  %324 = xla_tuple %v321, %v323
  %325 = xla_tuple %324
  %v326 = vsub.f32 %v321, %v323
  %327 = xla_tuple %v326
  %s328 = scalar_lea.vmem %s2, 128
  %329 = vst [vmem:[%s328] sm:$0xff] %v326
  %s330 = scalar_lea.vmem %s0, 288
  %v331 = vld [vmem:[%s330] sm:$0xff]
  %s332 = scalar_lea.vmem %s1, 288
  %v333 = vld [vmem:[%s332] sm:$0xff]
  %334 = xla_tuple %v331, %v333
  %335 = xla_tuple %334
  %v336 = vsub.f32 %v331, %v333
  %337 = xla_tuple %v336
  %s338 = scalar_lea.vmem %s2, 288
  %339 = vst [vmem:[%s338] sm:$0xff] %v336
  %s340 = scalar_lea.vmem %s0, 136
  %v341 = vld [vmem:[%s340] sm:$0xff]
  %s342 = scalar_lea.vmem %s1, 136
  %v343 = vld [vmem:[%s342] sm:$0xff]
  %344 = xla_tuple %v341, %v343
  %345 = xla_tuple %344
  %v346 = vsub.f32 %v341, %v343
  %347 = xla_tuple %v346
  %s348 = scalar_lea.vmem %s2, 136
  %349 = vst [vmem:[%s348] sm:$0xff] %v346
  %s350 = scalar_lea.vmem %s0, 296
  %v351 = vld [vmem:[%s350] sm:$0xff]
  %s352 = scalar_lea.vmem %s1, 296
  %v353 = vld [vmem:[%s352] sm:$0xff]
  %354 = xla_tuple %v351, %v353
  %355 = xla_tuple %354
  %v356 = vsub.f32 %v351, %v353
  %357 = xla_tuple %v356
  %s358 = scalar_lea.vmem %s2, 296
  %359 = vst [vmem:[%s358] sm:$0xff] %v356
  %s360 = scalar_lea.vmem %s0, 144
  %v361 = vld [vmem:[%s360] sm:$0xff]
  %s362 = scalar_lea.vmem %s1, 144
  %v363 = vld [vmem:[%s362] sm:$0xff]
  %364 = xla_tuple %v361, %v363
  %365 = xla_tuple %364
  %v366 = vsub.f32 %v361, %v363
  %367 = xla_tuple %v366
  %s368 = scalar_lea.vmem %s2, 144
  %369 = vst [vmem:[%s368] sm:$0xff] %v366
  %s370 = scalar_lea.vmem %s0, 304
  %v371 = vld [vmem:[%s370] sm:$0xff]
  %s372 = scalar_lea.vmem %s1, 304
  %v373 = vld [vmem:[%s372] sm:$0xff]
  %374 = xla_tuple %v371, %v373
  %375 = xla_tuple %374
  %v376 = vsub.f32 %v371, %v373
  %377 = xla_tuple %v376
  %s378 = scalar_lea.vmem %s2, 304
  %379 = vst [vmem:[%s378] sm:$0xff] %v376
  %s380 = scalar_lea.vmem %s0, 152
  %v381 = vld [vmem:[%s380] sm:$0xff]
  %s382 = scalar_lea.vmem %s1, 152
  %v383 = vld [vmem:[%s382] sm:$0xff]
  %384 = xla_tuple %v381, %v383
  %385 = xla_tuple %384
  %v386 = vsub.f32 %v381, %v383
  %387 = xla_tuple %v386
  %s388 = scalar_lea.vmem %s2, 152
  %389 = vst [vmem:[%s388] sm:$0xff] %v386
  %s390 = scalar_lea.vmem %s0, 312
  %v391 = vld [vmem:[%s390] sm:$0xff]
  %s392 = scalar_lea.vmem %s1, 312
  %v393 = vld [vmem:[%s392] sm:$0xff]
  %394 = xla_tuple %v391, %v393
  %395 = xla_tuple %394
  %v396 = vsub.f32 %v391, %v393
  %397 = xla_tuple %v396
  %s398 = scalar_lea.vmem %s2, 312
  %399 = vst [vmem:[%s398] sm:$0xff] %v396

// kernel: _lambda_.4
$region0: #{_lambda_.4}
  #allocation0 [shape = 'u32[]', space=smem, size = 0x4, offset = 0x4, fixed_abs, tag = 'smem constant byte address 0x4 - core index']
  #allocation1 [shape = 'u32[144,128]{1,0:T(1,128)}', space=vmem, size = 0x12000, scoped, tag = 'internal scratch']
  %s0 = inlined_call_operand.vmem [shape: f32[160,128], index: 0, kind: input, shape index: {}]
  %s1 = inlined_call_operand.vmem [shape: f32[128,256], index: 1, kind: input, shape index: {}]
  %s2 = inlined_call_operand.vmem [shape: s32[160,1], index: 2, kind: output, shape index: {}]
  %s3 = sld [smem:[#allocation0]]
  $region18: #{_lambda_.4} parent=0
    _
  %s5 = ssub.s32 1, %s3
  %s6 = scalar_select 0, %s5, %s3
  // Predicated region
  $region2: #{_lambda_.4} parent=0 // pred_check
    _
  $region3: #{_lambda_.4} parent=0 // pred_check_branch
    %8 = sbr.rel (0) target = $region5
  $region4: #{_lambda_.4} parent=0 // pred_region
    _
  $region5: #{_lambda_.4} parent=0 // pred_fallthru
    _
  // Predicated region
  $region6: #{_lambda_.4} parent=0 // pred_check
    _
  $region7: #{_lambda_.4} parent=0 // pred_check_branch
    %10 = sbr.rel (0) target = $region9
  $region8: #{_lambda_.4} parent=0 // pred_region
    _
  $region9: #{_lambda_.4} parent=0 // pred_fallthru
    _
  %v11 = vld [vmem:[%s0] sm:$0xff]
  %v12 = vld [vmem:[%s0 + $0x8] sm:$0xff]
  %v13 = vld [vmem:[%s0 + $0x10] sm:$0xff]
  %v14 = vld [vmem:[%s0 + $0x18] sm:$0xff]
  %v15 = vld [vmem:[%s0 + $0x20] sm:$0xff]
  %v16 = vld [vmem:[%s0 + $0x28] sm:$0xff]
  %v17 = vld [vmem:[%s0 + $0x30] sm:$0xff]
  %v18 = vld [vmem:[%s0 + $0x38] sm:$0xff]
  %v19 = vld [vmem:[%s0 + $0x40] sm:$0xff]
  %v20 = vld [vmem:[%s0 + $0x48] sm:$0xff]
  %v21 = vld [vmem:[%s0 + $0x50] sm:$0xff]
  %v22 = vld [vmem:[%s0 + $0x58] sm:$0xff]
  %v23 = vld [vmem:[%s0 + $0x60] sm:$0xff]
  %v24 = vld [vmem:[%s0 + $0x68] sm:$0xff]
  %v25 = vld [vmem:[%s0 + $0x70] sm:$0xff]
  %v26 = vld [vmem:[%s0 + $0x78] sm:$0xff]
  %v27 = vld [vmem:[%s0 + $0x80] sm:$0xff]
  %v28 = vld [vmem:[%s0 + $0x88] sm:$0xff]
  %v29 = vld [vmem:[%s0 + $0x90] sm:$0xff]
  %v30 = vld [vmem:[%s0 + $0x98] sm:$0xff]
  %v31 = vmul.f32 %v11, %v11
  %v32 = vmul.f32 %v12, %v12
  %v33 = vmul.f32 %v13, %v13
  %v34 = vmul.f32 %v14, %v14
  %v35 = vmul.f32 %v15, %v15
  %v36 = vmul.f32 %v16, %v16
  %v37 = vmul.f32 %v17, %v17
  %v38 = vmul.f32 %v18, %v18
  %v39 = vmul.f32 %v19, %v19
  %v40 = vmul.f32 %v20, %v20
  %v41 = vmul.f32 %v21, %v21
  %v42 = vmul.f32 %v22, %v22
  %v43 = vmul.f32 %v23, %v23
  %v44 = vmul.f32 %v24, %v24
  %v45 = vmul.f32 %v25, %v25
  %v46 = vmul.f32 %v26, %v26
  %v47 = vmul.f32 %v27, %v27
  %v48 = vmul.f32 %v28, %v28
  %v49 = vmul.f32 %v29, %v29
  %v50 = vmul.f32 %v30, %v30
  %51 = vadd.xlane.f32.xlu0 %v31
  %v52 = vpop.xlane.xlu0 %51
  %53 = vadd.xlane.f32.xlu0 %v32
  %v54 = vpop.xlane.xlu0 %53
  %55 = vadd.xlane.f32.xlu0 %v33
  %v56 = vpop.xlane.xlu0 %55
  %57 = vadd.xlane.f32.xlu0 %v34
  %v58 = vpop.xlane.xlu0 %57
  %59 = vadd.xlane.f32.xlu0 %v35
  %v60 = vpop.xlane.xlu0 %59
  %61 = vadd.xlane.f32.xlu0 %v36
  %v62 = vpop.xlane.xlu0 %61
  %63 = vadd.xlane.f32.xlu0 %v37
  %v64 = vpop.xlane.xlu0 %63
  %65 = vadd.xlane.f32.xlu0 %v38
  %v66 = vpop.xlane.xlu0 %65
  %67 = vadd.xlane.f32.xlu0 %v39
  %v68 = vpop.xlane.xlu0 %67
  %69 = vadd.xlane.f32.xlu0 %v40
  %v70 = vpop.xlane.xlu0 %69
  %71 = vadd.xlane.f32.xlu0 %v41
  %v72 = vpop.xlane.xlu0 %71
  %73 = vadd.xlane.f32.xlu0 %v42
  %v74 = vpop.xlane.xlu0 %73
  %75 = vadd.xlane.f32.xlu0 %v43
  %v76 = vpop.xlane.xlu0 %75
  %77 = vadd.xlane.f32.xlu0 %v44
  %v78 = vpop.xlane.xlu0 %77
  %79 = vadd.xlane.f32.xlu0 %v45
  %v80 = vpop.xlane.xlu0 %79
  %81 = vadd.xlane.f32.xlu0 %v46
  %v82 = vpop.xlane.xlu0 %81
  %83 = vadd.xlane.f32.xlu0 %v47
  %v84 = vpop.xlane.xlu0 %83
  %85 = vadd.xlane.f32.xlu0 %v48
  %v86 = vpop.xlane.xlu0 %85
  %87 = vadd.xlane.f32.xlu0 %v49
  %v88 = vpop.xlane.xlu0 %87
  %89 = vadd.xlane.f32.xlu0 %v50
  %v90 = vpop.xlane.xlu0 %89
  %v91 = vmax.f32 %v52, 1e-24
  %v92 = vmax.f32 %v54, 1e-24
  %v93 = vmax.f32 %v56, 1e-24
  %v94 = vmax.f32 %v58, 1e-24
  %v95 = vmax.f32 %v60, 1e-24
  %v96 = vmax.f32 %v62, 1e-24
  %v97 = vmax.f32 %v64, 1e-24
  %v98 = vmax.f32 %v66, 1e-24
  %v99 = vmax.f32 %v68, 1e-24
  %v100 = vmax.f32 %v70, 1e-24
  %v101 = vmax.f32 %v72, 1e-24
  %v102 = vmax.f32 %v74, 1e-24
  %v103 = vmax.f32 %v76, 1e-24
  %v104 = vmax.f32 %v78, 1e-24
  %v105 = vmax.f32 %v80, 1e-24
  %v106 = vmax.f32 %v82, 1e-24
  %v107 = vmax.f32 %v84, 1e-24
  %v108 = vmax.f32 %v86, 1e-24
  %v109 = vmax.f32 %v88, 1e-24
  %v110 = vmax.f32 %v90, 1e-24
  %v111 = vrsqrt.pop %v91
  %v112 = vrsqrt.pop %v92
  %v113 = vrsqrt.pop %v93
  %v114 = vrsqrt.pop %v94
  %v115 = vrsqrt.pop %v95
  %v116 = vrsqrt.pop %v96
  %v117 = vrsqrt.pop %v97
  %v118 = vrsqrt.pop %v98
  %v119 = vrsqrt.pop %v99
  %v120 = vrsqrt.pop %v100
  %v121 = vrsqrt.pop %v101
  %v122 = vrsqrt.pop %v102
  %v123 = vrsqrt.pop %v103
  %v124 = vrsqrt.pop %v104
  %v125 = vrsqrt.pop %v105
  %v126 = vrsqrt.pop %v106
  %v127 = vrsqrt.pop %v107
  %v128 = vrsqrt.pop %v108
  %v129 = vrsqrt.pop %v109
  %v130 = vrsqrt.pop %v110
  %v131 = vmul.f32 %v11, %v111
  %v132 = vmul.f32 %v12, %v112
  %v133 = vmul.f32 %v13, %v113
  %v134 = vmul.f32 %v14, %v114
  %v135 = vmul.f32 %v15, %v115
  %v136 = vmul.f32 %v16, %v116
  %v137 = vmul.f32 %v17, %v117
  %v138 = vmul.f32 %v18, %v118
  %v139 = vmul.f32 %v19, %v119
  %v140 = vmul.f32 %v20, %v120
  %v141 = vmul.f32 %v21, %v121
  %v142 = vmul.f32 %v22, %v122
  %v143 = vmul.f32 %v23, %v123
  %v144 = vmul.f32 %v24, %v124
  %v145 = vmul.f32 %v25, %v125
  %v146 = vmul.f32 %v26, %v126
  %v147 = vmul.f32 %v27, %v127
  %v148 = vmul.f32 %v28, %v128
  %v149 = vmul.f32 %v29, %v129
  %v150 = vmul.f32 %v30, %v130
  %v151 = vld [vmem:[%s1] sm:$0xff]
  %v152 = vld [vmem:[%s1 + $0x8] sm:$0xff]
  %v153 = vld [vmem:[%s1 + $0x10] sm:$0xff]
  %v154 = vld [vmem:[%s1 + $0x18] sm:$0xff]
  %v155 = vld [vmem:[%s1 + $0x20] sm:$0xff]
  %v156 = vld [vmem:[%s1 + $0x28] sm:$0xff]
  %v157 = vld [vmem:[%s1 + $0x30] sm:$0xff]
  %v158 = vld [vmem:[%s1 + $0x38] sm:$0xff]
  %v159 = vld [vmem:[%s1 + $0x40] sm:$0xff]
  %v160 = vld [vmem:[%s1 + $0x48] sm:$0xff]
  %v161 = vld [vmem:[%s1 + $0x50] sm:$0xff]
  %v162 = vld [vmem:[%s1 + $0x58] sm:$0xff]
  %v163 = vld [vmem:[%s1 + $0x60] sm:$0xff]
  %v164 = vld [vmem:[%s1 + $0x68] sm:$0xff]
  %v165 = vld [vmem:[%s1 + $0x70] sm:$0xff]
  %v166 = vld [vmem:[%s1 + $0x78] sm:$0xff]
  %v167 = vld [vmem:[%s1 + $0x80] sm:$0xff]
  %v168 = vld [vmem:[%s1 + $0x88] sm:$0xff]
  %v169 = vld [vmem:[%s1 + $0x90] sm:$0xff]
  %v170 = vld [vmem:[%s1 + $0x98] sm:$0xff]
  %v171 = vld [vmem:[%s1 + $0xa0] sm:$0xff]
  %v172 = vld [vmem:[%s1 + $0xa8] sm:$0xff]
  %v173 = vld [vmem:[%s1 + $0xb0] sm:$0xff]
  %v174 = vld [vmem:[%s1 + $0xb8] sm:$0xff]
  %v175 = vld [vmem:[%s1 + $0xc0] sm:$0xff]
  %v176 = vld [vmem:[%s1 + $0xc8] sm:$0xff]
  %v177 = vld [vmem:[%s1 + $0xd0] sm:$0xff]
  %v178 = vld [vmem:[%s1 + $0xd8] sm:$0xff]
  %v179 = vld [vmem:[%s1 + $0xe0] sm:$0xff]
  %v180 = vld [vmem:[%s1 + $0xe8] sm:$0xff]
  %v181 = vld [vmem:[%s1 + $0xf0] sm:$0xff]
  %v182 = vld [vmem:[%s1 + $0xf8] sm:$0xff]
  %183 = vmatprep.subr.mxu0 %v182
  %184 = vmatpush1.msra.mxu0 %v181
  %185 = vmatprep.subr.mxu0 %v180
  %186 = vmatpush1.msra.mxu0 %v179
  %187 = vmatprep.subr.mxu0 %v178
  %188 = vmatpush1.msra.mxu0 %v177
  %189 = vmatprep.subr.mxu0 %v176
  %190 = vmatpush1.msra.mxu0 %v175
  %191 = vmatprep.subr.mxu0 %v174
  %192 = vmatpush1.msra.mxu0 %v173
  %193 = vmatprep.subr.mxu0 %v172
  %194 = vmatpush1.msra.mxu0 %v171
  %195 = vmatprep.subr.mxu0 %v170
  %196 = vmatpush1.msra.mxu0 %v169
  %197 = vmatprep.subr.mxu0 %v168
  %198 = vmatpush1.msra.mxu0 %v167
  %199 = vmatprep.subr.mxu0 %v166
  %200 = vmatpush1.msra.mxu0 %v165
  %201 = vmatprep.subr.mxu0 %v164
  %202 = vmatpush1.msra.mxu0 %v163
  %203 = vmatprep.subr.mxu0 %v162
  %204 = vmatpush1.msra.mxu0 %v161
  %205 = vmatprep.subr.mxu0 %v160
  %206 = vmatpush1.msra.mxu0 %v159
  %207 = vmatprep.subr.mxu0 %v158
  %208 = vmatpush1.msra.mxu0 %v157
  %209 = vmatprep.subr.mxu0 %v156
  %210 = vmatpush1.msra.mxu0 %v155
  %211 = vmatprep.subr.mxu0 %v154
  %212 = vmatpush1.msra.mxu0 %v153
  %213 = vmatprep.subr.mxu0 %v152
  %214 = vmatpush1.msra.mxu0 %v151
  %215 = vmatprep.subr.mxu0 0.0
  %216 = vmatpush2.msra.mxu0 0.0
  %217 = vmatprep.subr.mxu0 0.0
  %218 = vmatpush2.msra.mxu0 0.0
  %219 = vmatprep.subr.mxu0 0.0
  %220 = vmatpush2.msra.mxu0 0.0
  %221 = vmatprep.subr.mxu0 0.0
  %222 = vmatpush2.msra.mxu0 0.0
  %223 = vmatprep.subr.mxu0 0.0
  %224 = vmatpush2.msra.mxu0 0.0
  %225 = vmatprep.subr.mxu0 0.0
  %226 = vmatpush2.msra.mxu0 0.0
  %227 = vmatprep.subr.mxu0 0.0
  %228 = vmatpush2.msra.mxu0 0.0
  %229 = vmatprep.subr.mxu0 0.0
  %230 = vmatpush2.msra.mxu0 0.0
  %231 = vmatprep.subr.mxu0 0.0
  %232 = vmatpush2.msra.mxu0 0.0
  %233 = vmatprep.subr.mxu0 0.0
  %234 = vmatpush2.msra.mxu0 0.0
  %235 = vmatprep.subr.mxu0 0.0
  %236 = vmatpush2.msra.mxu0 0.0
  %237 = vmatprep.subr.mxu0 0.0
  %238 = vmatpush2.msra.mxu0 0.0
  %239 = vmatprep.subr.mxu0 0.0
  %240 = vmatpush2.msra.mxu0 0.0
  %241 = vmatprep.subr.mxu0 0.0
  %242 = vmatpush2.msra.mxu0 0.0
  %243 = vmatprep.subr.mxu0 0.0
  %244 = vmatpush2.msra.mxu0 0.0
  %245 = vmatprep.subr.mxu0 0.0
  %246 = vmatpush2.msra.mxu0 0.0
  %247 = vmatprep.mubr.f32.mxu0 0.0
  %248 = vmatmul.mubr.f32.gmra.mxu0 %v131
  %v249 = vpop.f32.mrf.mxu0
  %v250 = vadd.f32 0.0, %v249
  %v251 = vpop.f32.mrf.mxu0
  %v252 = vadd.f32 0.0, %v251
  %253 = vmatprep.mubr.f32.mxu0 0.0
  %254 = vmatmul.mubr.f32.gmra.mxu0 %v132
  %v255 = vpop.f32.mrf.mxu0
  %v256 = vadd.f32 0.0, %v255
  %v257 = vpop.f32.mrf.mxu0
  %v258 = vadd.f32 0.0, %v257
  %259 = vmatprep.mubr.f32.mxu0 0.0
  %260 = vmatmul.mubr.f32.gmra.mxu0 %v133
  %v261 = vpop.f32.mrf.mxu0
  %v262 = vadd.f32 0.0, %v261
  %v263 = vpop.f32.mrf.mxu0
  %v264 = vadd.f32 0.0, %v263
  %265 = vmatprep.mubr.f32.mxu0 0.0
  %266 = vmatmul.mubr.f32.gmra.mxu0 %v134
  %v267 = vpop.f32.mrf.mxu0
  %v268 = vadd.f32 0.0, %v267
  %v269 = vpop.f32.mrf.mxu0
  %v270 = vadd.f32 0.0, %v269
  %271 = vmatprep.mubr.f32.mxu0 0.0
  %272 = vmatmul.mubr.f32.gmra.mxu0 %v135
  %v273 = vpop.f32.mrf.mxu0
  %v274 = vadd.f32 0.0, %v273
  %v275 = vpop.f32.mrf.mxu0
  %v276 = vadd.f32 0.0, %v275
  %277 = vmatprep.mubr.f32.mxu0 0.0
  %278 = vmatmul.mubr.f32.gmra.mxu0 %v136
  %v279 = vpop.f32.mrf.mxu0
  %v280 = vadd.f32 0.0, %v279
  %v281 = vpop.f32.mrf.mxu0
  %v282 = vadd.f32 0.0, %v281
  %283 = vmatprep.mubr.f32.mxu0 0.0
  %284 = vmatmul.mubr.f32.gmra.mxu0 %v137
  %v285 = vpop.f32.mrf.mxu0
  %v286 = vadd.f32 0.0, %v285
  %v287 = vpop.f32.mrf.mxu0
  %v288 = vadd.f32 0.0, %v287
  %289 = vmatprep.mubr.f32.mxu0 0.0
  %290 = vmatmul.mubr.f32.gmra.mxu0 %v138
  %v291 = vpop.f32.mrf.mxu0
  %v292 = vadd.f32 0.0, %v291
  %v293 = vpop.f32.mrf.mxu0
  %v294 = vadd.f32 0.0, %v293
  %295 = vmatprep.mubr.f32.mxu0 0.0
  %296 = vmatmul.mubr.f32.gmra.mxu0 %v139
  %v297 = vpop.f32.mrf.mxu0
  %v298 = vadd.f32 0.0, %v297
  %v299 = vpop.f32.mrf.mxu0
  %v300 = vadd.f32 0.0, %v299
  %301 = vmatprep.mubr.f32.mxu0 0.0
  %302 = vmatmul.mubr.f32.gmra.mxu0 %v140
  %v303 = vpop.f32.mrf.mxu0
  %v304 = vadd.f32 0.0, %v303
  %v305 = vpop.f32.mrf.mxu0
  %v306 = vadd.f32 0.0, %v305
  %307 = vmatprep.mubr.f32.mxu0 0.0
  %308 = vmatmul.mubr.f32.gmra.mxu0 %v141
  %v309 = vpop.f32.mrf.mxu0
  %v310 = vadd.f32 0.0, %v309
  %v311 = vpop.f32.mrf.mxu0
  %v312 = vadd.f32 0.0, %v311
  %313 = vmatprep.mubr.f32.mxu0 0.0
  %314 = vmatmul.mubr.f32.gmra.mxu0 %v142
  %v315 = vpop.f32.mrf.mxu0
  %v316 = vadd.f32 0.0, %v315
  %v317 = vpop.f32.mrf.mxu0
  %v318 = vadd.f32 0.0, %v317
  %319 = vmatprep.mubr.f32.mxu0 0.0
  %320 = vmatmul.mubr.f32.gmra.mxu0 %v143
  %v321 = vpop.f32.mrf.mxu0
  %v322 = vadd.f32 0.0, %v321
  %v323 = vpop.f32.mrf.mxu0
  %v324 = vadd.f32 0.0, %v323
  %325 = vmatprep.mubr.f32.mxu0 0.0
  %326 = vmatmul.mubr.f32.gmra.mxu0 %v144
  %v327 = vpop.f32.mrf.mxu0
  %v328 = vadd.f32 0.0, %v327
  %v329 = vpop.f32.mrf.mxu0
  %v330 = vadd.f32 0.0, %v329
  %331 = vmatprep.mubr.f32.mxu0 0.0
  %332 = vmatmul.mubr.f32.gmra.mxu0 %v145
  %v333 = vpop.f32.mrf.mxu0
  %v334 = vadd.f32 0.0, %v333
  %v335 = vpop.f32.mrf.mxu0
  %v336 = vadd.f32 0.0, %v335
  %337 = vmatprep.mubr.f32.mxu0 0.0
  %338 = vmatmul.mubr.f32.gmra.mxu0 %v146
  %v339 = vpop.f32.mrf.mxu0
  %v340 = vadd.f32 0.0, %v339
  %v341 = vpop.f32.mrf.mxu0
  %v342 = vadd.f32 0.0, %v341
  %343 = vmatprep.mubr.f32.mxu0 0.0
  %344 = vmatmul.mubr.f32.gmra.mxu0 %v147
  %v345 = vpop.f32.mrf.mxu0
  %v346 = vadd.f32 0.0, %v345
  %v347 = vpop.f32.mrf.mxu0
  %v348 = vadd.f32 0.0, %v347
  %349 = vmatprep.mubr.f32.mxu0 0.0
  %350 = vmatmul.mubr.f32.gmra.mxu0 %v148
  %v351 = vpop.f32.mrf.mxu0
  %v352 = vadd.f32 0.0, %v351
  %v353 = vpop.f32.mrf.mxu0
  %v354 = vadd.f32 0.0, %v353
  %355 = vmatprep.mubr.f32.mxu0 0.0
  %356 = vmatmul.mubr.f32.gmra.mxu0 %v149
  %v357 = vpop.f32.mrf.mxu0
  %v358 = vadd.f32 0.0, %v357
  %v359 = vpop.f32.mrf.mxu0
  %v360 = vadd.f32 0.0, %v359
  %361 = vmatprep.mubr.f32.mxu0 0.0
  %362 = vmatmul.mubr.f32.gmra.mxu0 %v150
  %v363 = vpop.f32.mrf.mxu0
  %v364 = vadd.f32 0.0, %v363
  %v365 = vpop.f32.mrf.mxu0
  %v366 = vadd.f32 0.0, %v365
  %367 = vdwg.mxu0
  %v368 = vmax.f32 %v250, %v252
  %369 = vmax.xlane.f32.xlu0 %v368
  %v370 = vpop.xlane.xlu0 %369
  %v371 = vmax.f32 %v256, %v258
  %372 = vmax.xlane.f32.xlu0 %v371
  %v373 = vpop.xlane.xlu0 %372
  %v374 = vmax.f32 %v262, %v264
  %375 = vmax.xlane.f32.xlu0 %v374
  %v376 = vpop.xlane.xlu0 %375
  %v377 = vmax.f32 %v268, %v270
  %378 = vmax.xlane.f32.xlu0 %v377
  %v379 = vpop.xlane.xlu0 %378
  %v380 = vmax.f32 %v274, %v276
  %381 = vmax.xlane.f32.xlu0 %v380
  %v382 = vpop.xlane.xlu0 %381
  %v383 = vmax.f32 %v280, %v282
  %384 = vmax.xlane.f32.xlu0 %v383
  %v385 = vpop.xlane.xlu0 %384
  %v386 = vmax.f32 %v286, %v288
  %387 = vmax.xlane.f32.xlu0 %v386
  %v388 = vpop.xlane.xlu0 %387
  %v389 = vmax.f32 %v292, %v294
  %390 = vmax.xlane.f32.xlu0 %v389
  %v391 = vpop.xlane.xlu0 %390
  %v392 = vmax.f32 %v298, %v300
  %393 = vmax.xlane.f32.xlu0 %v392
  %v394 = vpop.xlane.xlu0 %393
  %v395 = vmax.f32 %v304, %v306
  %396 = vmax.xlane.f32.xlu0 %v395
  %v397 = vpop.xlane.xlu0 %396
  %v398 = vmax.f32 %v310, %v312
  %399 = vmax.xlane.f32.xlu0 %v398
  %v400 = vpop.xlane.xlu0 %399
  %v401 = vmax.f32 %v316, %v318
  %402 = vmax.xlane.f32.xlu0 %v401
  %v403 = vpop.xlane.xlu0 %402
  %v404 = vmax.f32 %v322, %v324
  %405 = vmax.xlane.f32.xlu0 %v404
  %v406 = vpop.xlane.xlu0 %405
  %v407 = vmax.f32 %v328, %v330
  %408 = vmax.xlane.f32.xlu0 %v407
  %v409 = vpop.xlane.xlu0 %408
  %v410 = vmax.f32 %v334, %v336
  %411 = vmax.xlane.f32.xlu0 %v410
  %v412 = vpop.xlane.xlu0 %411
  %v413 = vmax.f32 %v340, %v342
  %414 = vmax.xlane.f32.xlu0 %v413
  %v415 = vpop.xlane.xlu0 %414
  %v416 = vmax.f32 %v346, %v348
  %417 = vmax.xlane.f32.xlu0 %v416
  %v418 = vpop.xlane.xlu0 %417
  %v419 = vmax.f32 %v352, %v354
  %420 = vmax.xlane.f32.xlu0 %v419
  %v421 = vpop.xlane.xlu0 %420
  %v422 = vmax.f32 %v358, %v360
  %423 = vmax.xlane.f32.xlu0 %v422
  %v424 = vpop.xlane.xlu0 %423
  %v425 = vmax.f32 %v364, %v366
  %426 = vmax.xlane.f32.xlu0 %v425
  %v427 = vpop.xlane.xlu0 %426
  %v428 = vlaneseq
  %v429 = vand.u32 %v428, 127
  %v430 = vadd.s32 %v429, 128
  %vm431 = vcmp.ge.f32.partialorder %v250, %v370
  %vm432 = vcmp.ge.f32.partialorder %v252, %v370
  %vm433 = vcmp.ge.f32.partialorder %v256, %v373
  %vm434 = vcmp.ge.f32.partialorder %v258, %v373
  %vm435 = vcmp.ge.f32.partialorder %v262, %v376
  %vm436 = vcmp.ge.f32.partialorder %v264, %v376
  %vm437 = vcmp.ge.f32.partialorder %v268, %v379
  %vm438 = vcmp.ge.f32.partialorder %v270, %v379
  %vm439 = vcmp.ge.f32.partialorder %v274, %v382
  %vm440 = vcmp.ge.f32.partialorder %v276, %v382
  %vm441 = vcmp.ge.f32.partialorder %v280, %v385
  %vm442 = vcmp.ge.f32.partialorder %v282, %v385
  %vm443 = vcmp.ge.f32.partialorder %v286, %v388
  %vm444 = vcmp.ge.f32.partialorder %v288, %v388
  %vm445 = vcmp.ge.f32.partialorder %v292, %v391
  %vm446 = vcmp.ge.f32.partialorder %v294, %v391
  %vm447 = vcmp.ge.f32.partialorder %v298, %v394
  %vm448 = vcmp.ge.f32.partialorder %v300, %v394
  %vm449 = vcmp.ge.f32.partialorder %v304, %v397
  %vm450 = vcmp.ge.f32.partialorder %v306, %v397
  %vm451 = vcmp.ge.f32.partialorder %v310, %v400
  %vm452 = vcmp.ge.f32.partialorder %v312, %v400
  %vm453 = vcmp.ge.f32.partialorder %v316, %v403
  %vm454 = vcmp.ge.f32.partialorder %v318, %v403
  %vm455 = vcmp.ge.f32.partialorder %v322, %v406
  %vm456 = vcmp.ge.f32.partialorder %v324, %v406
  %vm457 = vcmp.ge.f32.partialorder %v328, %v409
  %vm458 = vcmp.ge.f32.partialorder %v330, %v409
  %vm459 = vcmp.ge.f32.partialorder %v334, %v412
  %vm460 = vcmp.ge.f32.partialorder %v336, %v412
  %vm461 = vcmp.ge.f32.partialorder %v340, %v415
  %vm462 = vcmp.ge.f32.partialorder %v342, %v415
  %vm463 = vcmp.ge.f32.partialorder %v346, %v418
  %vm464 = vcmp.ge.f32.partialorder %v348, %v418
  %vm465 = vcmp.ge.f32.partialorder %v352, %v421
  %vm466 = vcmp.ge.f32.partialorder %v354, %v421
  %vm467 = vcmp.ge.f32.partialorder %v358, %v424
  %vm468 = vcmp.ge.f32.partialorder %v360, %v424
  %vm469 = vcmp.ge.f32.partialorder %v364, %v427
  %vm470 = vcmp.ge.f32.partialorder %v366, %v427
  %v471 = vsel %vm431, %v429, 256
  %v472 = vsel %vm432, %v430, 256
  %v473 = vsel %vm433, %v429, 256
  %v474 = vsel %vm434, %v430, 256
  %v475 = vsel %vm435, %v429, 256
  %v476 = vsel %vm436, %v430, 256
  %v477 = vsel %vm437, %v429, 256
  %v478 = vsel %vm438, %v430, 256
  %v479 = vsel %vm439, %v429, 256
  %v480 = vsel %vm440, %v430, 256
  %v481 = vsel %vm441, %v429, 256
  %v482 = vsel %vm442, %v430, 256
  %v483 = vsel %vm443, %v429, 256
  %v484 = vsel %vm444, %v430, 256
  %v485 = vsel %vm445, %v429, 256
  %v486 = vsel %vm446, %v430, 256
  %v487 = vsel %vm447, %v429, 256
  %v488 = vsel %vm448, %v430, 256
  %v489 = vsel %vm449, %v429, 256
  %v490 = vsel %vm450, %v430, 256
  %v491 = vsel %vm451, %v429, 256
  %v492 = vsel %vm452, %v430, 256
  %v493 = vsel %vm453, %v429, 256
  %v494 = vsel %vm454, %v430, 256
  %v495 = vsel %vm455, %v429, 256
  %v496 = vsel %vm456, %v430, 256
  %v497 = vsel %vm457, %v429, 256
  %v498 = vsel %vm458, %v430, 256
  %v499 = vsel %vm459, %v429, 256
  %v500 = vsel %vm460, %v430, 256
  %v501 = vsel %vm461, %v429, 256
  %v502 = vsel %vm462, %v430, 256
  %v503 = vsel %vm463, %v429, 256
  %v504 = vsel %vm464, %v430, 256
  %v505 = vsel %vm465, %v429, 256
  %v506 = vsel %vm466, %v430, 256
  %v507 = vsel %vm467, %v429, 256
  %v508 = vsel %vm468, %v430, 256
  %v509 = vsel %vm469, %v429, 256
  %v510 = vsel %vm470, %v430, 256
  %vm511 = vcmp.lt.s32.totalorder %v471, %v472
  %v512 = vsel %vm511, %v471, %v472
  %v513 = vand.u32 %v512, 65535
  %v514 = vshra.s32 %v512, 16
  %v515 = vcvt.s32.f32 %v513
  %v516 = vcvt.s32.f32 %v514
  %517 = vmin.xlane.f32.xlu0 %v516
  %v518 = vpop.xlane.xlu0 %517
  %vm519 = vcmp.eq.f32.partialorder %v516, %v518
  %v520 = vsel %vm519, %v515, inf
  %521 = vmin.xlane.f32.xlu0 %v520
  %v522 = vpop.xlane.xlu0 %521
  %v523 = vcvt.f32.s32 %v522
  %v524 = vcvt.f32.s32 %v518
  %v525 = vshll.u32 %v524, 16
  %v526 = vadd.s32 %v525, %v523
  %vm527 = vcmp.lt.s32.totalorder %v473, %v474
  %v528 = vsel %vm527, %v473, %v474
  %v529 = vand.u32 %v528, 65535
  %v530 = vshra.s32 %v528, 16
  %v531 = vcvt.s32.f32 %v529
  %v532 = vcvt.s32.f32 %v530
  %533 = vmin.xlane.f32.xlu0 %v532
  %v534 = vpop.xlane.xlu0 %533
  %vm535 = vcmp.eq.f32.partialorder %v532, %v534
  %v536 = vsel %vm535, %v531, inf
  %537 = vmin.xlane.f32.xlu0 %v536
  %v538 = vpop.xlane.xlu0 %537
  %v539 = vcvt.f32.s32 %v538
  %v540 = vcvt.f32.s32 %v534
  %v541 = vshll.u32 %v540, 16
  %v542 = vadd.s32 %v541, %v539
  %vm543 = vcmp.lt.s32.totalorder %v475, %v476
  %v544 = vsel %vm543, %v475, %v476
  %v545 = vand.u32 %v544, 65535
  %v546 = vshra.s32 %v544, 16
  %v547 = vcvt.s32.f32 %v545
  %v548 = vcvt.s32.f32 %v546
  %549 = vmin.xlane.f32.xlu0 %v548
  %v550 = vpop.xlane.xlu0 %549
  %vm551 = vcmp.eq.f32.partialorder %v548, %v550
  %v552 = vsel %vm551, %v547, inf
  %553 = vmin.xlane.f32.xlu0 %v552
  %v554 = vpop.xlane.xlu0 %553
  %v555 = vcvt.f32.s32 %v554
  %v556 = vcvt.f32.s32 %v550
  %v557 = vshll.u32 %v556, 16
  %v558 = vadd.s32 %v557, %v555
  %vm559 = vcmp.lt.s32.totalorder %v477, %v478
  %v560 = vsel %vm559, %v477, %v478
  %v561 = vand.u32 %v560, 65535
  %v562 = vshra.s32 %v560, 16
  %v563 = vcvt.s32.f32 %v561
  %v564 = vcvt.s32.f32 %v562
  %565 = vmin.xlane.f32.xlu0 %v564
  %v566 = vpop.xlane.xlu0 %565
  %vm567 = vcmp.eq.f32.partialorder %v564, %v566
  %v568 = vsel %vm567, %v563, inf
  %569 = vmin.xlane.f32.xlu0 %v568
  %v570 = vpop.xlane.xlu0 %569
  %v571 = vcvt.f32.s32 %v570
  %v572 = vcvt.f32.s32 %v566
  %v573 = vshll.u32 %v572, 16
  %v574 = vadd.s32 %v573, %v571
  %vm575 = vcmp.lt.s32.totalorder %v479, %v480
  %v576 = vsel %vm575, %v479, %v480
  %v577 = vand.u32 %v576, 65535
  %v578 = vshra.s32 %v576, 16
  %v579 = vcvt.s32.f32 %v577
  %v580 = vcvt.s32.f32 %v578
  %581 = vmin.xlane.f32.xlu0 %v580
  %v582 = vpop.xlane.xlu0 %581
  %vm583 = vcmp.eq.f32.partialorder %v580, %v582
  %v584 = vsel %vm583, %v579, inf
  %585 = vmin.xlane.f32.xlu0 %v584
  %v586 = vpop.xlane.xlu0 %585
  %v587 = vcvt.f32.s32 %v586
  %v588 = vcvt.f32.s32 %v582
  %v589 = vshll.u32 %v588, 16
  %v590 = vadd.s32 %v589, %v587
  %vm591 = vcmp.lt.s32.totalorder %v481, %v482
  %v592 = vsel %vm591, %v481, %v482
  %v593 = vand.u32 %v592, 65535
  %v594 = vshra.s32 %v592, 16
  %v595 = vcvt.s32.f32 %v593
  %v596 = vcvt.s32.f32 %v594
  %597 = vmin.xlane.f32.xlu0 %v596
  %v598 = vpop.xlane.xlu0 %597
  %vm599 = vcmp.eq.f32.partialorder %v596, %v598
  %v600 = vsel %vm599, %v595, inf
  %601 = vmin.xlane.f32.xlu0 %v600
  %v602 = vpop.xlane.xlu0 %601
  %v603 = vcvt.f32.s32 %v602
  %v604 = vcvt.f32.s32 %v598
  %v605 = vshll.u32 %v604, 16
  %v606 = vadd.s32 %v605, %v603
  %vm607 = vcmp.lt.s32.totalorder %v483, %v484
  %v608 = vsel %vm607, %v483, %v484
  %v609 = vand.u32 %v608, 65535
  %v610 = vshra.s32 %v608, 16
  %v611 = vcvt.s32.f32 %v609
  %v612 = vcvt.s32.f32 %v610
  %613 = vmin.xlane.f32.xlu0 %v612
  %v614 = vpop.xlane.xlu0 %613
  %vm615 = vcmp.eq.f32.partialorder %v612, %v614
  %v616 = vsel %vm615, %v611, inf
  %617 = vmin.xlane.f32.xlu0 %v616
  %v618 = vpop.xlane.xlu0 %617
  %v619 = vcvt.f32.s32 %v618
  %v620 = vcvt.f32.s32 %v614
  %v621 = vshll.u32 %v620, 16
  %v622 = vadd.s32 %v621, %v619
  %vm623 = vcmp.lt.s32.totalorder %v485, %v486
  %v624 = vsel %vm623, %v485, %v486
  %v625 = vand.u32 %v624, 65535
  %v626 = vshra.s32 %v624, 16
  %v627 = vcvt.s32.f32 %v625
  %v628 = vcvt.s32.f32 %v626
  %629 = vmin.xlane.f32.xlu0 %v628
  %v630 = vpop.xlane.xlu0 %629
  %vm631 = vcmp.eq.f32.partialorder %v628, %v630
  %v632 = vsel %vm631, %v627, inf
  %633 = vmin.xlane.f32.xlu0 %v632
  %v634 = vpop.xlane.xlu0 %633
  %v635 = vcvt.f32.s32 %v634
  %v636 = vcvt.f32.s32 %v630
  %v637 = vshll.u32 %v636, 16
  %v638 = vadd.s32 %v637, %v635
  %vm639 = vcmp.lt.s32.totalorder %v487, %v488
  %v640 = vsel %vm639, %v487, %v488
  %v641 = vand.u32 %v640, 65535
  %v642 = vshra.s32 %v640, 16
  %v643 = vcvt.s32.f32 %v641
  %v644 = vcvt.s32.f32 %v642
  %645 = vmin.xlane.f32.xlu0 %v644
  %v646 = vpop.xlane.xlu0 %645
  %vm647 = vcmp.eq.f32.partialorder %v644, %v646
  %v648 = vsel %vm647, %v643, inf
  %649 = vmin.xlane.f32.xlu0 %v648
  %v650 = vpop.xlane.xlu0 %649
  %v651 = vcvt.f32.s32 %v650
  %v652 = vcvt.f32.s32 %v646
  %v653 = vshll.u32 %v652, 16
  %v654 = vadd.s32 %v653, %v651
  %vm655 = vcmp.lt.s32.totalorder %v489, %v490
  %v656 = vsel %vm655, %v489, %v490
  %v657 = vand.u32 %v656, 65535
  %v658 = vshra.s32 %v656, 16
  %v659 = vcvt.s32.f32 %v657
  %v660 = vcvt.s32.f32 %v658
  %661 = vmin.xlane.f32.xlu0 %v660
  %v662 = vpop.xlane.xlu0 %661
  %vm663 = vcmp.eq.f32.partialorder %v660, %v662
  %v664 = vsel %vm663, %v659, inf
  %665 = vmin.xlane.f32.xlu0 %v664
  %v666 = vpop.xlane.xlu0 %665
  %v667 = vcvt.f32.s32 %v666
  %v668 = vcvt.f32.s32 %v662
  %v669 = vshll.u32 %v668, 16
  %v670 = vadd.s32 %v669, %v667
  %vm671 = vcmp.lt.s32.totalorder %v491, %v492
  %v672 = vsel %vm671, %v491, %v492
  %v673 = vand.u32 %v672, 65535
  %v674 = vshra.s32 %v672, 16
  %v675 = vcvt.s32.f32 %v673
  %v676 = vcvt.s32.f32 %v674
  %677 = vmin.xlane.f32.xlu0 %v676
  %v678 = vpop.xlane.xlu0 %677
  %vm679 = vcmp.eq.f32.partialorder %v676, %v678
  %v680 = vsel %vm679, %v675, inf
  %681 = vmin.xlane.f32.xlu0 %v680
  %v682 = vpop.xlane.xlu0 %681
  %v683 = vcvt.f32.s32 %v682
  %v684 = vcvt.f32.s32 %v678
  %v685 = vshll.u32 %v684, 16
  %v686 = vadd.s32 %v685, %v683
  %vm687 = vcmp.lt.s32.totalorder %v493, %v494
  %v688 = vsel %vm687, %v493, %v494
  %v689 = vand.u32 %v688, 65535
  %v690 = vshra.s32 %v688, 16
  %v691 = vcvt.s32.f32 %v689
  %v692 = vcvt.s32.f32 %v690
  %693 = vmin.xlane.f32.xlu0 %v692
  %v694 = vpop.xlane.xlu0 %693
  %vm695 = vcmp.eq.f32.partialorder %v692, %v694
  %v696 = vsel %vm695, %v691, inf
  %697 = vmin.xlane.f32.xlu0 %v696
  %v698 = vpop.xlane.xlu0 %697
  %v699 = vcvt.f32.s32 %v698
  %v700 = vcvt.f32.s32 %v694
  %v701 = vshll.u32 %v700, 16
  %v702 = vadd.s32 %v701, %v699
  %vm703 = vcmp.lt.s32.totalorder %v495, %v496
  %v704 = vsel %vm703, %v495, %v496
  %v705 = vand.u32 %v704, 65535
  %v706 = vshra.s32 %v704, 16
  %v707 = vcvt.s32.f32 %v705
  %v708 = vcvt.s32.f32 %v706
  %709 = vmin.xlane.f32.xlu0 %v708
  %v710 = vpop.xlane.xlu0 %709
  %vm711 = vcmp.eq.f32.partialorder %v708, %v710
  %v712 = vsel %vm711, %v707, inf
  %713 = vmin.xlane.f32.xlu0 %v712
  %v714 = vpop.xlane.xlu0 %713
  %v715 = vcvt.f32.s32 %v714
  %v716 = vcvt.f32.s32 %v710
  %v717 = vshll.u32 %v716, 16
  %v718 = vadd.s32 %v717, %v715
  %vm719 = vcmp.lt.s32.totalorder %v497, %v498
  %v720 = vsel %vm719, %v497, %v498
  %v721 = vand.u32 %v720, 65535
  %v722 = vshra.s32 %v720, 16
  %v723 = vcvt.s32.f32 %v721
  %v724 = vcvt.s32.f32 %v722
  %725 = vmin.xlane.f32.xlu0 %v724
  %v726 = vpop.xlane.xlu0 %725
  %vm727 = vcmp.eq.f32.partialorder %v724, %v726
  %v728 = vsel %vm727, %v723, inf
  %729 = vmin.xlane.f32.xlu0 %v728
  %v730 = vpop.xlane.xlu0 %729
  %v731 = vcvt.f32.s32 %v730
  %v732 = vcvt.f32.s32 %v726
  %v733 = vshll.u32 %v732, 16
  %v734 = vadd.s32 %v733, %v731
  %vm735 = vcmp.lt.s32.totalorder %v499, %v500
  %v736 = vsel %vm735, %v499, %v500
  %v737 = vand.u32 %v736, 65535
  %v738 = vshra.s32 %v736, 16
  %v739 = vcvt.s32.f32 %v737
  %v740 = vcvt.s32.f32 %v738
  %741 = vmin.xlane.f32.xlu0 %v740
  %v742 = vpop.xlane.xlu0 %741
  %vm743 = vcmp.eq.f32.partialorder %v740, %v742
  %v744 = vsel %vm743, %v739, inf
  %745 = vmin.xlane.f32.xlu0 %v744
  %v746 = vpop.xlane.xlu0 %745
  %v747 = vcvt.f32.s32 %v746
  %v748 = vcvt.f32.s32 %v742
  %v749 = vshll.u32 %v748, 16
  %v750 = vadd.s32 %v749, %v747
  %vm751 = vcmp.lt.s32.totalorder %v501, %v502
  %v752 = vsel %vm751, %v501, %v502
  %v753 = vand.u32 %v752, 65535
  %v754 = vshra.s32 %v752, 16
  %v755 = vcvt.s32.f32 %v753
  %v756 = vcvt.s32.f32 %v754
  %757 = vmin.xlane.f32.xlu0 %v756
  %v758 = vpop.xlane.xlu0 %757
  %vm759 = vcmp.eq.f32.partialorder %v756, %v758
  %v760 = vsel %vm759, %v755, inf
  %761 = vmin.xlane.f32.xlu0 %v760
  %v762 = vpop.xlane.xlu0 %761
  %v763 = vcvt.f32.s32 %v762
  %v764 = vcvt.f32.s32 %v758
  %v765 = vshll.u32 %v764, 16
  %v766 = vadd.s32 %v765, %v763
  %vm767 = vcmp.lt.s32.totalorder %v503, %v504
  %v768 = vsel %vm767, %v503, %v504
  %v769 = vand.u32 %v768, 65535
  %v770 = vshra.s32 %v768, 16
  %v771 = vcvt.s32.f32 %v769
  %v772 = vcvt.s32.f32 %v770
  %773 = vmin.xlane.f32.xlu0 %v772
  %v774 = vpop.xlane.xlu0 %773
  %vm775 = vcmp.eq.f32.partialorder %v772, %v774
  %v776 = vsel %vm775, %v771, inf
  %777 = vmin.xlane.f32.xlu0 %v776
  %v778 = vpop.xlane.xlu0 %777
  %v779 = vcvt.f32.s32 %v778
  %v780 = vcvt.f32.s32 %v774
  %v781 = vshll.u32 %v780, 16
  %v782 = vadd.s32 %v781, %v779
  %vm783 = vcmp.lt.s32.totalorder %v505, %v506
  %v784 = vsel %vm783, %v505, %v506
  %v785 = vand.u32 %v784, 65535
  %v786 = vshra.s32 %v784, 16
  %v787 = vcvt.s32.f32 %v785
  %v788 = vcvt.s32.f32 %v786
  %789 = vmin.xlane.f32.xlu0 %v788
  %v790 = vpop.xlane.xlu0 %789
  %vm791 = vcmp.eq.f32.partialorder %v788, %v790
  %v792 = vsel %vm791, %v787, inf
  %793 = vmin.xlane.f32.xlu0 %v792
  %v794 = vpop.xlane.xlu0 %793
  %v795 = vcvt.f32.s32 %v794
  %v796 = vcvt.f32.s32 %v790
  %v797 = vshll.u32 %v796, 16
  %v798 = vadd.s32 %v797, %v795
  %vm799 = vcmp.lt.s32.totalorder %v507, %v508
  %v800 = vsel %vm799, %v507, %v508
  %v801 = vand.u32 %v800, 65535
  %v802 = vshra.s32 %v800, 16
  %v803 = vcvt.s32.f32 %v801
  %v804 = vcvt.s32.f32 %v802
  %805 = vmin.xlane.f32.xlu0 %v804
  %v806 = vpop.xlane.xlu0 %805
  %vm807 = vcmp.eq.f32.partialorder %v804, %v806
  %v808 = vsel %vm807, %v803, inf
  %809 = vmin.xlane.f32.xlu0 %v808
  %v810 = vpop.xlane.xlu0 %809
  %v811 = vcvt.f32.s32 %v810
  %v812 = vcvt.f32.s32 %v806
  %v813 = vshll.u32 %v812, 16
  %v814 = vadd.s32 %v813, %v811
  %vm815 = vcmp.lt.s32.totalorder %v509, %v510
  %v816 = vsel %vm815, %v509, %v510
  %v817 = vand.u32 %v816, 65535
  %v818 = vshra.s32 %v816, 16
  %v819 = vcvt.s32.f32 %v817
  %v820 = vcvt.s32.f32 %v818
  %821 = vmin.xlane.f32.xlu0 %v820
  %v822 = vpop.xlane.xlu0 %821
  %vm823 = vcmp.eq.f32.partialorder %v820, %v822
  %v824 = vsel %vm823, %v819, inf
  %825 = vmin.xlane.f32.xlu0 %v824
  %v826 = vpop.xlane.xlu0 %825
  %v827 = vcvt.f32.s32 %v826
  %v828 = vcvt.f32.s32 %v822
  %v829 = vshll.u32 %v828, 16
  %v830 = vadd.s32 %v829, %v827
  %vm831 = vcmp.lt.s32.totalorder %v526, 255
  %v832 = vsel %vm831, %v526, 255
  %vm833 = vcmp.lt.s32.totalorder %v542, 255
  %v834 = vsel %vm833, %v542, 255
  %vm835 = vcmp.lt.s32.totalorder %v558, 255
  %v836 = vsel %vm835, %v558, 255
  %vm837 = vcmp.lt.s32.totalorder %v574, 255
  %v838 = vsel %vm837, %v574, 255
  %vm839 = vcmp.lt.s32.totalorder %v590, 255
  %v840 = vsel %vm839, %v590, 255
  %vm841 = vcmp.lt.s32.totalorder %v606, 255
  %v842 = vsel %vm841, %v606, 255
  %vm843 = vcmp.lt.s32.totalorder %v622, 255
  %v844 = vsel %vm843, %v622, 255
  %vm845 = vcmp.lt.s32.totalorder %v638, 255
  %v846 = vsel %vm845, %v638, 255
  %vm847 = vcmp.lt.s32.totalorder %v654, 255
  %v848 = vsel %vm847, %v654, 255
  %vm849 = vcmp.lt.s32.totalorder %v670, 255
  %v850 = vsel %vm849, %v670, 255
  %vm851 = vcmp.lt.s32.totalorder %v686, 255
  %v852 = vsel %vm851, %v686, 255
  %vm853 = vcmp.lt.s32.totalorder %v702, 255
  %v854 = vsel %vm853, %v702, 255
  %vm855 = vcmp.lt.s32.totalorder %v718, 255
  %v856 = vsel %vm855, %v718, 255
  %vm857 = vcmp.lt.s32.totalorder %v734, 255
  %v858 = vsel %vm857, %v734, 255
  %vm859 = vcmp.lt.s32.totalorder %v750, 255
  %v860 = vsel %vm859, %v750, 255
  %vm861 = vcmp.lt.s32.totalorder %v766, 255
  %v862 = vsel %vm861, %v766, 255
  %vm863 = vcmp.lt.s32.totalorder %v782, 255
  %v864 = vsel %vm863, %v782, 255
  %vm865 = vcmp.lt.s32.totalorder %v798, 255
  %v866 = vsel %vm865, %v798, 255
  %vm867 = vcmp.lt.s32.totalorder %v814, 255
  %v868 = vsel %vm867, %v814, 255
  %vm869 = vcmp.lt.s32.totalorder %v830, 255
  %v870 = vsel %vm869, %v830, 255
  %vm871 = vcmask 7168
  %872 = vst.msk [vmem:[%s2] sm:$0xff] %vm871, %v832
  %873 = vst.msk [vmem:[%s2 + $0x8] sm:$0xff] %vm871, %v834
  %874 = vst.msk [vmem:[%s2 + $0x10] sm:$0xff] %vm871, %v836
  %875 = vst.msk [vmem:[%s2 + $0x18] sm:$0xff] %vm871, %v838
  %876 = vst.msk [vmem:[%s2 + $0x20] sm:$0xff] %vm871, %v840
  %877 = vst.msk [vmem:[%s2 + $0x28] sm:$0xff] %vm871, %v842
  %878 = vst.msk [vmem:[%s2 + $0x30] sm:$0xff] %vm871, %v844
  %879 = vst.msk [vmem:[%s2 + $0x38] sm:$0xff] %vm871, %v846
  %880 = vst.msk [vmem:[%s2 + $0x40] sm:$0xff] %vm871, %v848
  %881 = vst.msk [vmem:[%s2 + $0x48] sm:$0xff] %vm871, %v850
  %882 = vst.msk [vmem:[%s2 + $0x50] sm:$0xff] %vm871, %v852
  %883 = vst.msk [vmem:[%s2 + $0x58] sm:$0xff] %vm871, %v854
  %884 = vst.msk [vmem:[%s2 + $0x60] sm:$0xff] %vm871, %v856
  %885 = vst.msk [vmem:[%s2 + $0x68] sm:$0xff] %vm871, %v858
  %886 = vst.msk [vmem:[%s2 + $0x70] sm:$0xff] %vm871, %v860
  %887 = vst.msk [vmem:[%s2 + $0x78] sm:$0xff] %vm871, %v862
  %888 = vst.msk [vmem:[%s2 + $0x80] sm:$0xff] %vm871, %v864
  %889 = vst.msk [vmem:[%s2 + $0x88] sm:$0xff] %vm871, %v866
  %890 = vst.msk [vmem:[%s2 + $0x90] sm:$0xff] %vm871, %v868
  %891 = vst.msk [vmem:[%s2 + $0x98] sm:$0xff] %vm871, %v870
  // Predicated region
  $region10: #{_lambda_.4} parent=0 // pred_check
    _
  $region11: #{_lambda_.4} parent=0 // pred_check_branch
    %893 = sbr.rel (0) target = $region13
  $region12: #{_lambda_.4} parent=0 // pred_region
    _
  $region13: #{_lambda_.4} parent=0 // pred_fallthru
    _
  // Predicated region
  $region14: #{_lambda_.4} parent=0 // pred_check
    _
  $region15: #{_lambda_.4} parent=0 // pred_check_branch
    %895 = sbr.rel (0) target = $region17
  $region16: #{_lambda_.4} parent=0 // pred_region
    _
  $region17: #{_lambda_.4} parent=0 // pred_fallthru
    _

// kernel: _lambda_.5
$region0: #{_lambda_.5}
  #allocation0 [shape = 'u32[]', space=smem, size = 0x4, offset = 0x4, fixed_abs, tag = 'smem constant byte address 0x4 - core index']
  #allocation1 [shape = 'u32[144,128]{1,0:T(1,128)}', space=vmem, size = 0x12000, scoped, tag = 'internal scratch']
  %s0 = inlined_call_operand.vmem [shape: f32[512,128], index: 0, kind: input, shape index: {}]
  %s1 = inlined_call_operand.vmem [shape: f32[128,256], index: 1, kind: input, shape index: {}]
  %s2 = inlined_call_operand.vmem [shape: s32[512,1], index: 2, kind: output, shape index: {}]
  %s3 = sld [smem:[#allocation0]]
  $region41: #{_lambda_.5} parent=0
    _
  %s5 = ssub.s32 1, %s3
  %s6 = scalar_select 0, %s5, %s3
  loop: start=0, step=1, limit=4
  $region2: #{_lambda_.5} parent=0 // loop_pre_header
    _
  $region3: #{_lambda_.5} parent=0 // loop_header
    %s8 = sphi 0, %s12
    %p9 = scmp.ge.s32.totalorder %s8, 4
    %s18 = sphi 0, %s20
    %s21 = sphi 0, %s18
    %s22 = sphi 0, %s21
    %s38 = sphi 0, %s22
    %s42 = sphi 0, %s42
    %s44 = sphi 0, %s42
    %s45 = sphi 0, %s44
    %s59 = sphi 0, %s45
    %s65 = sphi 0, %s67
    %s68 = sphi 0, %s65
    %s69 = sphi 0, %s68
    %s85 = sphi 0, %s69
  $region4: #{_lambda_.5} parent=0 // loop_header_branch
    %11 = sbr.rel (%p9) target = $region8
  $region5: #{_lambda_.5} parent=0 // loop_body
    %s13 = ssub.s32 %s8, 1
    %s14 = ssub.s32 %s8, 2
    %s15 = sadd.s32 %s8, 1
    %s16 = ssub.s32 %s8, %s15
    %p17 = scmp.eq.s32.totalorder %s16, 0
    %s19 = sadd.s32 %s18, 1
    %s20 = scalar_select %p17, %s18, %s19
    %p23 = pneg %p17
    %p24 = scmp.eq.s32.totalorder %s8, 1
    %p25 = por %p23, %p24
    %p26 = scmp.ne.s32.totalorder %s18, %s21
    %p27 = scmp.eq.s32.totalorder %s8, 0
    %p28 = por %p26, %p27
    %p29 = scmp.ne.s32.totalorder %s18, %s21
    %p30 = scmp.eq.s32.totalorder %s13, 1
    %p31 = por %p29, %p30
    %p32 = scmp.ne.s32.totalorder %s21, %s22
    %p33 = scmp.eq.s32.totalorder %s13, 0
    %p34 = por %p32, %p33
    %p35 = scmp.ne.s32.totalorder %s21, %s22
    %p36 = scmp.eq.s32.totalorder %s14, 1
    %p37 = por %p35, %p36
    %p39 = scmp.ne.s32.totalorder %s22, %s38
    %p40 = scmp.eq.s32.totalorder %s14, 0
    %p41 = por %p39, %p40
    %s43 = sadd.s32 %s42, 1
    %p46 = scmp.eq.s32.totalorder %s8, 1
    %p47 = scmp.ne.s32.totalorder %s42, %s44
    %p48 = scmp.eq.s32.totalorder %s8, 0
    %p49 = por %p47, %p48
    %p50 = scmp.ne.s32.totalorder %s42, %s44
    %p51 = scmp.eq.s32.totalorder %s13, 1
    %p52 = por %p50, %p51
    %p53 = scmp.ne.s32.totalorder %s44, %s45
    %p54 = scmp.eq.s32.totalorder %s13, 0
    %p55 = por %p53, %p54
    %p56 = scmp.ne.s32.totalorder %s44, %s45
    %p57 = scmp.eq.s32.totalorder %s14, 1
    %p58 = por %p56, %p57
    %p60 = scmp.ne.s32.totalorder %s45, %s59
    %p61 = scmp.eq.s32.totalorder %s14, 0
    %p62 = por %p60, %p61
    %s63 = ssub.s32 %s8, %s15
    %p64 = scmp.eq.s32.totalorder %s63, 0
    %s66 = sadd.s32 %s65, 1
    %s67 = scalar_select %p64, %s65, %s66
    %p70 = pneg %p64
    %p71 = scmp.eq.s32.totalorder %s8, 1
    %p72 = por %p70, %p71
    %p73 = scmp.ne.s32.totalorder %s65, %s68
    %p74 = scmp.eq.s32.totalorder %s8, 0
    %p75 = por %p73, %p74
    %p76 = scmp.ne.s32.totalorder %s65, %s68
    %p77 = scmp.eq.s32.totalorder %s13, 1
    %p78 = por %p76, %p77
    %p79 = scmp.ne.s32.totalorder %s68, %s69
    %p80 = scmp.eq.s32.totalorder %s13, 0
    %p81 = por %p79, %p80
    %p82 = scmp.ne.s32.totalorder %s68, %s69
    %p83 = scmp.eq.s32.totalorder %s14, 1
    %p84 = por %p82, %p83
    %p86 = scmp.ne.s32.totalorder %s69, %s85
    %p87 = scmp.eq.s32.totalorder %s14, 0
    %p88 = por %p86, %p87
    %p89 = scmp.le.s32.totalorder 1, %s8
    %p90 = scmp.lt.s32.totalorder %s8, 3
    %p91 = pnand %p89, %p90
    %p92 = pneg %p91
    // Predicated region
    $region9: #{_lambda_.5} parent=5 // pred_check
      _
    $region10: #{_lambda_.5} parent=5 // pred_check_branch
      %94 = sbr.rel (%p91) target = $region12
    $region11: #{_lambda_.5} parent=5 // pred_region
      %s95 = ssub.s32 %s8, 1
      // Predicated region
      $region13: #{_lambda_.5} parent=11 // pred_check
        %p96 = pneg %p55
      $region14: #{_lambda_.5} parent=11 // pred_check_branch
        %98 = sbr.rel (%p96) target = $region16
      $region15: #{_lambda_.5} parent=11 // pred_region
        _
      $region16: #{_lambda_.5} parent=11 // pred_fallthru
        _
    $region12: #{_lambda_.5} parent=5 // pred_fallthru
      _
    %p99 = scmp.lt.s32.totalorder %s8, 2
    // Predicated region
    $region17: #{_lambda_.5} parent=5 // pred_check
      %p100 = pneg %p99
    $region18: #{_lambda_.5} parent=5 // pred_check_branch
      %102 = sbr.rel (%p100) target = $region20
    $region19: #{_lambda_.5} parent=5 // pred_region
      // Predicated region
      $region21: #{_lambda_.5} parent=19 // pred_check
        %p103 = pneg %p28
      $region22: #{_lambda_.5} parent=19 // pred_check_branch
        %105 = sbr.rel (%p103) target = $region24
      $region23: #{_lambda_.5} parent=19 // pred_region
        %s106 = smul.u32 32, %s8
        %p107 = scmp.lt.s32.totalorder %s106, 63
        %s108 = scalar_select %p107, %s106, 63
        %s109 = smul.addr %s108, 8
        %s110 = scalar_lea.vmem %s0, %s109
        %s111 = smul.u32 32, %s8
      $region24: #{_lambda_.5} parent=19 // pred_fallthru
        _
    $region20: #{_lambda_.5} parent=5 // pred_fallthru
      _
    %p112 = scmp.le.s32.totalorder 1, %s8
    %p113 = scmp.lt.s32.totalorder %s8, 3
    %p114 = pnand %p112, %p113
    %p115 = pneg %p114
    // Predicated region
    $region25: #{_lambda_.5} parent=5 // pred_check
      _
    $region26: #{_lambda_.5} parent=5 // pred_check_branch
      %117 = sbr.rel (%p114) target = $region28
    $region27: #{_lambda_.5} parent=5 // pred_region
      %s118 = ssub.s32 %s8, 1
      %s119 = smul.u32 32, %s13
      %p120 = scmp.lt.s32.totalorder %s119, 63
      %s121 = scalar_select %p120, %s119, 63
      %s122 = smul.addr %s121, 8
      %s123 = scalar_lea.vmem %s0, %s122
      %p124 = pneg %p34
      %p125 = pneg %p31
      %p126 = pneg %p55
      %p127 = pneg %p52
      %p128 = pneg %p81
      %p129 = pneg %p78
      %s130 = smul.u32 32, %s13
      %p131 = scmp.lt.s32.totalorder %s130, 63
      %s132 = scalar_select %p131, %s130, 63
      %s133 = smul.addr %s132, 8
      %s134 = scalar_lea.vmem %s2, %s133
      %s135 = smul.u32 32, %s13
      %p136 = scmp.lt.s32.totalorder %s135, 63
      %s137 = scalar_select %p136, %s135, 63
      %s138 = smul.addr %s137, 8
      %s139 = scalar_lea.vmem %s0, %s138
      %s140 = smul.u32 32, %s13
      %s141 = smul.u32 32, %s13
      %p142 = scmp.lt.s32.totalorder %s141, 63
      %s143 = scalar_select %p142, %s141, 63
      %s144 = smul.addr %s143, 8
      %s145 = scalar_lea.vmem %s2, %s144
      %s146 = smul.u32 32, %s13
      %v147 = vld [vmem:[%s139] sm:$0xff]
      %v148 = vld [vmem:[%s139 + $0x8] sm:$0xff]
      %v149 = vld [vmem:[%s139 + $0x10] sm:$0xff]
      %v150 = vld [vmem:[%s139 + $0x18] sm:$0xff]
      %v151 = vld [vmem:[%s139 + $0x20] sm:$0xff]
      %v152 = vld [vmem:[%s139 + $0x28] sm:$0xff]
      %v153 = vld [vmem:[%s139 + $0x30] sm:$0xff]
      %v154 = vld [vmem:[%s139 + $0x38] sm:$0xff]
      %v155 = vld [vmem:[%s139 + $0x40] sm:$0xff]
      %v156 = vld [vmem:[%s139 + $0x48] sm:$0xff]
      %v157 = vld [vmem:[%s139 + $0x50] sm:$0xff]
      %v158 = vld [vmem:[%s139 + $0x58] sm:$0xff]
      %v159 = vld [vmem:[%s139 + $0x60] sm:$0xff]
      %v160 = vld [vmem:[%s139 + $0x68] sm:$0xff]
      %v161 = vld [vmem:[%s139 + $0x70] sm:$0xff]
      %v162 = vld [vmem:[%s139 + $0x78] sm:$0xff]
      %v163 = vld [vmem:[%s139 + $0x80] sm:$0xff]
      %v164 = vld [vmem:[%s139 + $0x88] sm:$0xff]
      %v165 = vld [vmem:[%s139 + $0x90] sm:$0xff]
      %v166 = vld [vmem:[%s139 + $0x98] sm:$0xff]
      %v167 = vld [vmem:[%s139 + $0xa0] sm:$0xff]
      %v168 = vld [vmem:[%s139 + $0xa8] sm:$0xff]
      %v169 = vld [vmem:[%s139 + $0xb0] sm:$0xff]
      %v170 = vld [vmem:[%s139 + $0xb8] sm:$0xff]
      %v171 = vld [vmem:[%s139 + $0xc0] sm:$0xff]
      %v172 = vld [vmem:[%s139 + $0xc8] sm:$0xff]
      %v173 = vld [vmem:[%s139 + $0xd0] sm:$0xff]
      %v174 = vld [vmem:[%s139 + $0xd8] sm:$0xff]
      %v175 = vld [vmem:[%s139 + $0xe0] sm:$0xff]
      %v176 = vld [vmem:[%s139 + $0xe8] sm:$0xff]
      %v177 = vld [vmem:[%s139 + $0xf0] sm:$0xff]
      %v178 = vld [vmem:[%s139 + $0xf8] sm:$0xff]
      %v179 = vmul.f32 %v147, %v147
      %v180 = vmul.f32 %v148, %v148
      %v181 = vmul.f32 %v149, %v149
      %v182 = vmul.f32 %v150, %v150
      %v183 = vmul.f32 %v151, %v151
      %v184 = vmul.f32 %v152, %v152
      %v185 = vmul.f32 %v153, %v153
      %v186 = vmul.f32 %v154, %v154
      %v187 = vmul.f32 %v155, %v155
      %v188 = vmul.f32 %v156, %v156
      %v189 = vmul.f32 %v157, %v157
      %v190 = vmul.f32 %v158, %v158
      %v191 = vmul.f32 %v159, %v159
      %v192 = vmul.f32 %v160, %v160
      %v193 = vmul.f32 %v161, %v161
      %v194 = vmul.f32 %v162, %v162
      %v195 = vmul.f32 %v163, %v163
      %v196 = vmul.f32 %v164, %v164
      %v197 = vmul.f32 %v165, %v165
      %v198 = vmul.f32 %v166, %v166
      %v199 = vmul.f32 %v167, %v167
      %v200 = vmul.f32 %v168, %v168
      %v201 = vmul.f32 %v169, %v169
      %v202 = vmul.f32 %v170, %v170
      %v203 = vmul.f32 %v171, %v171
      %v204 = vmul.f32 %v172, %v172
      %v205 = vmul.f32 %v173, %v173
      %v206 = vmul.f32 %v174, %v174
      %v207 = vmul.f32 %v175, %v175
      %v208 = vmul.f32 %v176, %v176
      %v209 = vmul.f32 %v177, %v177
      %v210 = vmul.f32 %v178, %v178
      %211 = vadd.xlane.f32.xlu0 %v179
      %v212 = vpop.xlane.xlu0 %211
      %213 = vadd.xlane.f32.xlu0 %v180
      %v214 = vpop.xlane.xlu0 %213
      %215 = vadd.xlane.f32.xlu0 %v181
      %v216 = vpop.xlane.xlu0 %215
      %217 = vadd.xlane.f32.xlu0 %v182
      %v218 = vpop.xlane.xlu0 %217
      %219 = vadd.xlane.f32.xlu0 %v183
      %v220 = vpop.xlane.xlu0 %219
      %221 = vadd.xlane.f32.xlu0 %v184
      %v222 = vpop.xlane.xlu0 %221
      %223 = vadd.xlane.f32.xlu0 %v185
      %v224 = vpop.xlane.xlu0 %223
      %225 = vadd.xlane.f32.xlu0 %v186
      %v226 = vpop.xlane.xlu0 %225
      %227 = vadd.xlane.f32.xlu0 %v187
      %v228 = vpop.xlane.xlu0 %227
      %229 = vadd.xlane.f32.xlu0 %v188
      %v230 = vpop.xlane.xlu0 %229
      %231 = vadd.xlane.f32.xlu0 %v189
      %v232 = vpop.xlane.xlu0 %231
      %233 = vadd.xlane.f32.xlu0 %v190
      %v234 = vpop.xlane.xlu0 %233
      %235 = vadd.xlane.f32.xlu0 %v191
      %v236 = vpop.xlane.xlu0 %235
      %237 = vadd.xlane.f32.xlu0 %v192
      %v238 = vpop.xlane.xlu0 %237
      %239 = vadd.xlane.f32.xlu0 %v193
      %v240 = vpop.xlane.xlu0 %239
      %241 = vadd.xlane.f32.xlu0 %v194
      %v242 = vpop.xlane.xlu0 %241
      %243 = vadd.xlane.f32.xlu0 %v195
      %v244 = vpop.xlane.xlu0 %243
      %245 = vadd.xlane.f32.xlu0 %v196
      %v246 = vpop.xlane.xlu0 %245
      %247 = vadd.xlane.f32.xlu0 %v197
      %v248 = vpop.xlane.xlu0 %247
      %249 = vadd.xlane.f32.xlu0 %v198
      %v250 = vpop.xlane.xlu0 %249
      %251 = vadd.xlane.f32.xlu0 %v199
      %v252 = vpop.xlane.xlu0 %251
      %253 = vadd.xlane.f32.xlu0 %v200
      %v254 = vpop.xlane.xlu0 %253
      %255 = vadd.xlane.f32.xlu0 %v201
      %v256 = vpop.xlane.xlu0 %255
      %257 = vadd.xlane.f32.xlu0 %v202
      %v258 = vpop.xlane.xlu0 %257
      %259 = vadd.xlane.f32.xlu0 %v203
      %v260 = vpop.xlane.xlu0 %259
      %261 = vadd.xlane.f32.xlu0 %v204
      %v262 = vpop.xlane.xlu0 %261
      %263 = vadd.xlane.f32.xlu0 %v205
      %v264 = vpop.xlane.xlu0 %263
      %265 = vadd.xlane.f32.xlu0 %v206
      %v266 = vpop.xlane.xlu0 %265
      %267 = vadd.xlane.f32.xlu0 %v207
      %v268 = vpop.xlane.xlu0 %267
      %269 = vadd.xlane.f32.xlu0 %v208
      %v270 = vpop.xlane.xlu0 %269
      %271 = vadd.xlane.f32.xlu0 %v209
      %v272 = vpop.xlane.xlu0 %271
      %273 = vadd.xlane.f32.xlu0 %v210
      %v274 = vpop.xlane.xlu0 %273
      %v275 = vmax.f32 %v212, 1e-24
      %v276 = vmax.f32 %v214, 1e-24
      %v277 = vmax.f32 %v216, 1e-24
      %v278 = vmax.f32 %v218, 1e-24
      %v279 = vmax.f32 %v220, 1e-24
      %v280 = vmax.f32 %v222, 1e-24
      %v281 = vmax.f32 %v224, 1e-24
      %v282 = vmax.f32 %v226, 1e-24
      %v283 = vmax.f32 %v228, 1e-24
      %v284 = vmax.f32 %v230, 1e-24
      %v285 = vmax.f32 %v232, 1e-24
      %v286 = vmax.f32 %v234, 1e-24
      %v287 = vmax.f32 %v236, 1e-24
      %v288 = vmax.f32 %v238, 1e-24
      %v289 = vmax.f32 %v240, 1e-24
      %v290 = vmax.f32 %v242, 1e-24
      %v291 = vmax.f32 %v244, 1e-24
      %v292 = vmax.f32 %v246, 1e-24
      %v293 = vmax.f32 %v248, 1e-24
      %v294 = vmax.f32 %v250, 1e-24
      %v295 = vmax.f32 %v252, 1e-24
      %v296 = vmax.f32 %v254, 1e-24
      %v297 = vmax.f32 %v256, 1e-24
      %v298 = vmax.f32 %v258, 1e-24
      %v299 = vmax.f32 %v260, 1e-24
      %v300 = vmax.f32 %v262, 1e-24
      %v301 = vmax.f32 %v264, 1e-24
      %v302 = vmax.f32 %v266, 1e-24
      %v303 = vmax.f32 %v268, 1e-24
      %v304 = vmax.f32 %v270, 1e-24
      %v305 = vmax.f32 %v272, 1e-24
      %v306 = vmax.f32 %v274, 1e-24
      %v307 = vrsqrt.pop %v275
      %v308 = vrsqrt.pop %v276
      %v309 = vrsqrt.pop %v277
      %v310 = vrsqrt.pop %v278
      %v311 = vrsqrt.pop %v279
      %v312 = vrsqrt.pop %v280
      %v313 = vrsqrt.pop %v281
      %v314 = vrsqrt.pop %v282
      %v315 = vrsqrt.pop %v283
      %v316 = vrsqrt.pop %v284
      %v317 = vrsqrt.pop %v285
      %v318 = vrsqrt.pop %v286
      %v319 = vrsqrt.pop %v287
      %v320 = vrsqrt.pop %v288
      %v321 = vrsqrt.pop %v289
      %v322 = vrsqrt.pop %v290
      %v323 = vrsqrt.pop %v291
      %v324 = vrsqrt.pop %v292
      %v325 = vrsqrt.pop %v293
      %v326 = vrsqrt.pop %v294
      %v327 = vrsqrt.pop %v295
      %v328 = vrsqrt.pop %v296
      %v329 = vrsqrt.pop %v297
      %v330 = vrsqrt.pop %v298
      %v331 = vrsqrt.pop %v299
      %v332 = vrsqrt.pop %v300
      %v333 = vrsqrt.pop %v301
      %v334 = vrsqrt.pop %v302
      %v335 = vrsqrt.pop %v303
      %v336 = vrsqrt.pop %v304
      %v337 = vrsqrt.pop %v305
      %v338 = vrsqrt.pop %v306
      %v339 = vmul.f32 %v147, %v307
      %v340 = vmul.f32 %v148, %v308
      %v341 = vmul.f32 %v149, %v309
      %v342 = vmul.f32 %v150, %v310
      %v343 = vmul.f32 %v151, %v311
      %v344 = vmul.f32 %v152, %v312
      %v345 = vmul.f32 %v153, %v313
      %v346 = vmul.f32 %v154, %v314
      %v347 = vmul.f32 %v155, %v315
      %v348 = vmul.f32 %v156, %v316
      %v349 = vmul.f32 %v157, %v317
      %v350 = vmul.f32 %v158, %v318
      %v351 = vmul.f32 %v159, %v319
      %v352 = vmul.f32 %v160, %v320
      %v353 = vmul.f32 %v161, %v321
      %v354 = vmul.f32 %v162, %v322
      %v355 = vmul.f32 %v163, %v323
      %v356 = vmul.f32 %v164, %v324
      %v357 = vmul.f32 %v165, %v325
      %v358 = vmul.f32 %v166, %v326
      %v359 = vmul.f32 %v167, %v327
      %v360 = vmul.f32 %v168, %v328
      %v361 = vmul.f32 %v169, %v329
      %v362 = vmul.f32 %v170, %v330
      %v363 = vmul.f32 %v171, %v331
      %v364 = vmul.f32 %v172, %v332
      %v365 = vmul.f32 %v173, %v333
      %v366 = vmul.f32 %v174, %v334
      %v367 = vmul.f32 %v175, %v335
      %v368 = vmul.f32 %v176, %v336
      %v369 = vmul.f32 %v177, %v337
      %v370 = vmul.f32 %v178, %v338
      %v371 = vld [vmem:[%s1] sm:$0xff]
      %v372 = vld [vmem:[%s1 + $0x8] sm:$0xff]
      %v373 = vld [vmem:[%s1 + $0x10] sm:$0xff]
      %v374 = vld [vmem:[%s1 + $0x18] sm:$0xff]
      %v375 = vld [vmem:[%s1 + $0x20] sm:$0xff]
      %v376 = vld [vmem:[%s1 + $0x28] sm:$0xff]
      %v377 = vld [vmem:[%s1 + $0x30] sm:$0xff]
      %v378 = vld [vmem:[%s1 + $0x38] sm:$0xff]
      %v379 = vld [vmem:[%s1 + $0x40] sm:$0xff]
      %v380 = vld [vmem:[%s1 + $0x48] sm:$0xff]
      %v381 = vld [vmem:[%s1 + $0x50] sm:$0xff]
      %v382 = vld [vmem:[%s1 + $0x58] sm:$0xff]
      %v383 = vld [vmem:[%s1 + $0x60] sm:$0xff]
      %v384 = vld [vmem:[%s1 + $0x68] sm:$0xff]
      %v385 = vld [vmem:[%s1 + $0x70] sm:$0xff]
      %v386 = vld [vmem:[%s1 + $0x78] sm:$0xff]
      %v387 = vld [vmem:[%s1 + $0x80] sm:$0xff]
      %v388 = vld [vmem:[%s1 + $0x88] sm:$0xff]
      %v389 = vld [vmem:[%s1 + $0x90] sm:$0xff]
      %v390 = vld [vmem:[%s1 + $0x98] sm:$0xff]
      %v391 = vld [vmem:[%s1 + $0xa0] sm:$0xff]
      %v392 = vld [vmem:[%s1 + $0xa8] sm:$0xff]
      %v393 = vld [vmem:[%s1 + $0xb0] sm:$0xff]
      %v394 = vld [vmem:[%s1 + $0xb8] sm:$0xff]
      %v395 = vld [vmem:[%s1 + $0xc0] sm:$0xff]
      %v396 = vld [vmem:[%s1 + $0xc8] sm:$0xff]
      %v397 = vld [vmem:[%s1 + $0xd0] sm:$0xff]
      %v398 = vld [vmem:[%s1 + $0xd8] sm:$0xff]
      %v399 = vld [vmem:[%s1 + $0xe0] sm:$0xff]
      %v400 = vld [vmem:[%s1 + $0xe8] sm:$0xff]
      %v401 = vld [vmem:[%s1 + $0xf0] sm:$0xff]
      %v402 = vld [vmem:[%s1 + $0xf8] sm:$0xff]
      %403 = vmatprep.subr.mxu0 %v402
      %404 = vmatpush1.msra.mxu0 %v401
      %405 = vmatprep.subr.mxu0 %v400
      %406 = vmatpush1.msra.mxu0 %v399
      %407 = vmatprep.subr.mxu0 %v398
      %408 = vmatpush1.msra.mxu0 %v397
      %409 = vmatprep.subr.mxu0 %v396
      %410 = vmatpush1.msra.mxu0 %v395
      %411 = vmatprep.subr.mxu0 %v394
      %412 = vmatpush1.msra.mxu0 %v393
      %413 = vmatprep.subr.mxu0 %v392
      %414 = vmatpush1.msra.mxu0 %v391
      %415 = vmatprep.subr.mxu0 %v390
      %416 = vmatpush1.msra.mxu0 %v389
      %417 = vmatprep.subr.mxu0 %v388
      %418 = vmatpush1.msra.mxu0 %v387
      %419 = vmatprep.subr.mxu0 %v386
      %420 = vmatpush1.msra.mxu0 %v385
      %421 = vmatprep.subr.mxu0 %v384
      %422 = vmatpush1.msra.mxu0 %v383
      %423 = vmatprep.subr.mxu0 %v382
      %424 = vmatpush1.msra.mxu0 %v381
      %425 = vmatprep.subr.mxu0 %v380
      %426 = vmatpush1.msra.mxu0 %v379
      %427 = vmatprep.subr.mxu0 %v378
      %428 = vmatpush1.msra.mxu0 %v377
      %429 = vmatprep.subr.mxu0 %v376
      %430 = vmatpush1.msra.mxu0 %v375
      %431 = vmatprep.subr.mxu0 %v374
      %432 = vmatpush1.msra.mxu0 %v373
      %433 = vmatprep.subr.mxu0 %v372
      %434 = vmatpush1.msra.mxu0 %v371
      %435 = vmatprep.subr.mxu0 0.0
      %436 = vmatpush2.msra.mxu0 0.0
      %437 = vmatprep.subr.mxu0 0.0
      %438 = vmatpush2.msra.mxu0 0.0
      %439 = vmatprep.subr.mxu0 0.0
      %440 = vmatpush2.msra.mxu0 0.0
      %441 = vmatprep.subr.mxu0 0.0
      %442 = vmatpush2.msra.mxu0 0.0
      %443 = vmatprep.subr.mxu0 0.0
      %444 = vmatpush2.msra.mxu0 0.0
      %445 = vmatprep.subr.mxu0 0.0
      %446 = vmatpush2.msra.mxu0 0.0
      %447 = vmatprep.subr.mxu0 0.0
      %448 = vmatpush2.msra.mxu0 0.0
      %449 = vmatprep.subr.mxu0 0.0
      %450 = vmatpush2.msra.mxu0 0.0
      %451 = vmatprep.subr.mxu0 0.0
      %452 = vmatpush2.msra.mxu0 0.0
      %453 = vmatprep.subr.mxu0 0.0
      %454 = vmatpush2.msra.mxu0 0.0
      %455 = vmatprep.subr.mxu0 0.0
      %456 = vmatpush2.msra.mxu0 0.0
      %457 = vmatprep.subr.mxu0 0.0
      %458 = vmatpush2.msra.mxu0 0.0
      %459 = vmatprep.subr.mxu0 0.0
      %460 = vmatpush2.msra.mxu0 0.0
      %461 = vmatprep.subr.mxu0 0.0
      %462 = vmatpush2.msra.mxu0 0.0
      %463 = vmatprep.subr.mxu0 0.0
      %464 = vmatpush2.msra.mxu0 0.0
      %465 = vmatprep.subr.mxu0 0.0
      %466 = vmatpush2.msra.mxu0 0.0
      %467 = vmatprep.mubr.f32.mxu0 0.0
      %468 = vmatmul.mubr.f32.gmra.mxu0 %v339
      %v469 = vpop.f32.mrf.mxu0
      %v470 = vadd.f32 0.0, %v469
      %v471 = vpop.f32.mrf.mxu0
      %v472 = vadd.f32 0.0, %v471
      %473 = vmatprep.mubr.f32.mxu0 0.0
      %474 = vmatmul.mubr.f32.gmra.mxu0 %v340
      %v475 = vpop.f32.mrf.mxu0
      %v476 = vadd.f32 0.0, %v475
      %v477 = vpop.f32.mrf.mxu0
      %v478 = vadd.f32 0.0, %v477
      %479 = vmatprep.mubr.f32.mxu0 0.0
      %480 = vmatmul.mubr.f32.gmra.mxu0 %v341
      %v481 = vpop.f32.mrf.mxu0
      %v482 = vadd.f32 0.0, %v481
      %v483 = vpop.f32.mrf.mxu0
      %v484 = vadd.f32 0.0, %v483
      %485 = vmatprep.mubr.f32.mxu0 0.0
      %486 = vmatmul.mubr.f32.gmra.mxu0 %v342
      %v487 = vpop.f32.mrf.mxu0
      %v488 = vadd.f32 0.0, %v487
      %v489 = vpop.f32.mrf.mxu0
      %v490 = vadd.f32 0.0, %v489
      %491 = vmatprep.mubr.f32.mxu0 0.0
      %492 = vmatmul.mubr.f32.gmra.mxu0 %v343
      %v493 = vpop.f32.mrf.mxu0
      %v494 = vadd.f32 0.0, %v493
      %v495 = vpop.f32.mrf.mxu0
      %v496 = vadd.f32 0.0, %v495
      %497 = vmatprep.mubr.f32.mxu0 0.0
      %498 = vmatmul.mubr.f32.gmra.mxu0 %v344
      %v499 = vpop.f32.mrf.mxu0
      %v500 = vadd.f32 0.0, %v499
      %v501 = vpop.f32.mrf.mxu0
      %v502 = vadd.f32 0.0, %v501
      %503 = vmatprep.mubr.f32.mxu0 0.0
      %504 = vmatmul.mubr.f32.gmra.mxu0 %v345
      %v505 = vpop.f32.mrf.mxu0
      %v506 = vadd.f32 0.0, %v505
      %v507 = vpop.f32.mrf.mxu0
      %v508 = vadd.f32 0.0, %v507
      %509 = vmatprep.mubr.f32.mxu0 0.0
      %510 = vmatmul.mubr.f32.gmra.mxu0 %v346
      %v511 = vpop.f32.mrf.mxu0
      %v512 = vadd.f32 0.0, %v511
      %v513 = vpop.f32.mrf.mxu0
      %v514 = vadd.f32 0.0, %v513
      %515 = vmatprep.mubr.f32.mxu0 0.0
      %516 = vmatmul.mubr.f32.gmra.mxu0 %v347
      %v517 = vpop.f32.mrf.mxu0
      %v518 = vadd.f32 0.0, %v517
      %v519 = vpop.f32.mrf.mxu0
      %v520 = vadd.f32 0.0, %v519
      %521 = vmatprep.mubr.f32.mxu0 0.0
      %522 = vmatmul.mubr.f32.gmra.mxu0 %v348
      %v523 = vpop.f32.mrf.mxu0
      %v524 = vadd.f32 0.0, %v523
      %v525 = vpop.f32.mrf.mxu0
      %v526 = vadd.f32 0.0, %v525
      %527 = vmatprep.mubr.f32.mxu0 0.0
      %528 = vmatmul.mubr.f32.gmra.mxu0 %v349
      %v529 = vpop.f32.mrf.mxu0
      %v530 = vadd.f32 0.0, %v529
      %v531 = vpop.f32.mrf.mxu0
      %v532 = vadd.f32 0.0, %v531
      %533 = vmatprep.mubr.f32.mxu0 0.0
      %534 = vmatmul.mubr.f32.gmra.mxu0 %v350
      %v535 = vpop.f32.mrf.mxu0
      %v536 = vadd.f32 0.0, %v535
      %v537 = vpop.f32.mrf.mxu0
      %v538 = vadd.f32 0.0, %v537
      %539 = vmatprep.mubr.f32.mxu0 0.0
      %540 = vmatmul.mubr.f32.gmra.mxu0 %v351
      %v541 = vpop.f32.mrf.mxu0
      %v542 = vadd.f32 0.0, %v541
      %v543 = vpop.f32.mrf.mxu0
      %v544 = vadd.f32 0.0, %v543
      %545 = vmatprep.mubr.f32.mxu0 0.0
      %546 = vmatmul.mubr.f32.gmra.mxu0 %v352
      %v547 = vpop.f32.mrf.mxu0
      %v548 = vadd.f32 0.0, %v547
      %v549 = vpop.f32.mrf.mxu0
      %v550 = vadd.f32 0.0, %v549
      %551 = vmatprep.mubr.f32.mxu0 0.0
      %552 = vmatmul.mubr.f32.gmra.mxu0 %v353
      %v553 = vpop.f32.mrf.mxu0
      %v554 = vadd.f32 0.0, %v553
      %v555 = vpop.f32.mrf.mxu0
      %v556 = vadd.f32 0.0, %v555
      %557 = vmatprep.mubr.f32.mxu0 0.0
      %558 = vmatmul.mubr.f32.gmra.mxu0 %v354
      %v559 = vpop.f32.mrf.mxu0
      %v560 = vadd.f32 0.0, %v559
      %v561 = vpop.f32.mrf.mxu0
      %v562 = vadd.f32 0.0, %v561
      %563 = vmatprep.mubr.f32.mxu0 0.0
      %564 = vmatmul.mubr.f32.gmra.mxu0 %v355
      %v565 = vpop.f32.mrf.mxu0
      %v566 = vadd.f32 0.0, %v565
      %v567 = vpop.f32.mrf.mxu0
      %v568 = vadd.f32 0.0, %v567
      %569 = vmatprep.mubr.f32.mxu0 0.0
      %570 = vmatmul.mubr.f32.gmra.mxu0 %v356
      %v571 = vpop.f32.mrf.mxu0
      %v572 = vadd.f32 0.0, %v571
      %v573 = vpop.f32.mrf.mxu0
      %v574 = vadd.f32 0.0, %v573
      %575 = vmatprep.mubr.f32.mxu0 0.0
      %576 = vmatmul.mubr.f32.gmra.mxu0 %v357
      %v577 = vpop.f32.mrf.mxu0
      %v578 = vadd.f32 0.0, %v577
      %v579 = vpop.f32.mrf.mxu0
      %v580 = vadd.f32 0.0, %v579
      %581 = vmatprep.mubr.f32.mxu0 0.0
      %582 = vmatmul.mubr.f32.gmra.mxu0 %v358
      %v583 = vpop.f32.mrf.mxu0
      %v584 = vadd.f32 0.0, %v583
      %v585 = vpop.f32.mrf.mxu0
      %v586 = vadd.f32 0.0, %v585
      %587 = vmatprep.mubr.f32.mxu0 0.0
      %588 = vmatmul.mubr.f32.gmra.mxu0 %v359
      %v589 = vpop.f32.mrf.mxu0
      %v590 = vadd.f32 0.0, %v589
      %v591 = vpop.f32.mrf.mxu0
      %v592 = vadd.f32 0.0, %v591
      %593 = vmatprep.mubr.f32.mxu0 0.0
      %594 = vmatmul.mubr.f32.gmra.mxu0 %v360
      %v595 = vpop.f32.mrf.mxu0
      %v596 = vadd.f32 0.0, %v595
      %v597 = vpop.f32.mrf.mxu0
      %v598 = vadd.f32 0.0, %v597
      %599 = vmatprep.mubr.f32.mxu0 0.0
      %600 = vmatmul.mubr.f32.gmra.mxu0 %v361
      %v601 = vpop.f32.mrf.mxu0
      %v602 = vadd.f32 0.0, %v601
      %v603 = vpop.f32.mrf.mxu0
      %v604 = vadd.f32 0.0, %v603
      %605 = vmatprep.mubr.f32.mxu0 0.0
      %606 = vmatmul.mubr.f32.gmra.mxu0 %v362
      %v607 = vpop.f32.mrf.mxu0
      %v608 = vadd.f32 0.0, %v607
      %v609 = vpop.f32.mrf.mxu0
      %v610 = vadd.f32 0.0, %v609
      %611 = vmatprep.mubr.f32.mxu0 0.0
      %612 = vmatmul.mubr.f32.gmra.mxu0 %v363
      %v613 = vpop.f32.mrf.mxu0
      %v614 = vadd.f32 0.0, %v613
      %v615 = vpop.f32.mrf.mxu0
      %v616 = vadd.f32 0.0, %v615
      %617 = vmatprep.mubr.f32.mxu0 0.0
      %618 = vmatmul.mubr.f32.gmra.mxu0 %v364
      %v619 = vpop.f32.mrf.mxu0
      %v620 = vadd.f32 0.0, %v619
      %v621 = vpop.f32.mrf.mxu0
      %v622 = vadd.f32 0.0, %v621
      %623 = vmatprep.mubr.f32.mxu0 0.0
      %624 = vmatmul.mubr.f32.gmra.mxu0 %v365
      %v625 = vpop.f32.mrf.mxu0
      %v626 = vadd.f32 0.0, %v625
      %v627 = vpop.f32.mrf.mxu0
      %v628 = vadd.f32 0.0, %v627
      %629 = vmatprep.mubr.f32.mxu0 0.0
      %630 = vmatmul.mubr.f32.gmra.mxu0 %v366
      %v631 = vpop.f32.mrf.mxu0
      %v632 = vadd.f32 0.0, %v631
      %v633 = vpop.f32.mrf.mxu0
      %v634 = vadd.f32 0.0, %v633
      %635 = vmatprep.mubr.f32.mxu0 0.0
      %636 = vmatmul.mubr.f32.gmra.mxu0 %v367
      %v637 = vpop.f32.mrf.mxu0
      %v638 = vadd.f32 0.0, %v637
      %v639 = vpop.f32.mrf.mxu0
      %v640 = vadd.f32 0.0, %v639
      %641 = vmatprep.mubr.f32.mxu0 0.0
      %642 = vmatmul.mubr.f32.gmra.mxu0 %v368
      %v643 = vpop.f32.mrf.mxu0
      %v644 = vadd.f32 0.0, %v643
      %v645 = vpop.f32.mrf.mxu0
      %v646 = vadd.f32 0.0, %v645
      %647 = vmatprep.mubr.f32.mxu0 0.0
      %648 = vmatmul.mubr.f32.gmra.mxu0 %v369
      %v649 = vpop.f32.mrf.mxu0
      %v650 = vadd.f32 0.0, %v649
      %v651 = vpop.f32.mrf.mxu0
      %v652 = vadd.f32 0.0, %v651
      %653 = vmatprep.mubr.f32.mxu0 0.0
      %654 = vmatmul.mubr.f32.gmra.mxu0 %v370
      %v655 = vpop.f32.mrf.mxu0
      %v656 = vadd.f32 0.0, %v655
      %v657 = vpop.f32.mrf.mxu0
      %v658 = vadd.f32 0.0, %v657
      %659 = vdwg.mxu0
      %v660 = vmax.f32 %v470, %v472
      %661 = vmax.xlane.f32.xlu0 %v660
      %v662 = vpop.xlane.xlu0 %661
      %v663 = vmax.f32 %v476, %v478
      %664 = vmax.xlane.f32.xlu0 %v663
      %v665 = vpop.xlane.xlu0 %664
      %v666 = vmax.f32 %v482, %v484
      %667 = vmax.xlane.f32.xlu0 %v666
      %v668 = vpop.xlane.xlu0 %667
      %v669 = vmax.f32 %v488, %v490
      %670 = vmax.xlane.f32.xlu0 %v669
      %v671 = vpop.xlane.xlu0 %670
      %v672 = vmax.f32 %v494, %v496
      %673 = vmax.xlane.f32.xlu0 %v672
      %v674 = vpop.xlane.xlu0 %673
      %v675 = vmax.f32 %v500, %v502
      %676 = vmax.xlane.f32.xlu0 %v675
      %v677 = vpop.xlane.xlu0 %676
      %v678 = vmax.f32 %v506, %v508
      %679 = vmax.xlane.f32.xlu0 %v678
      %v680 = vpop.xlane.xlu0 %679
      %v681 = vmax.f32 %v512, %v514
      %682 = vmax.xlane.f32.xlu0 %v681
      %v683 = vpop.xlane.xlu0 %682
      %v684 = vmax.f32 %v518, %v520
      %685 = vmax.xlane.f32.xlu0 %v684
      %v686 = vpop.xlane.xlu0 %685
      %v687 = vmax.f32 %v524, %v526
      %688 = vmax.xlane.f32.xlu0 %v687
      %v689 = vpop.xlane.xlu0 %688
      %v690 = vmax.f32 %v530, %v532
      %691 = vmax.xlane.f32.xlu0 %v690
      %v692 = vpop.xlane.xlu0 %691
      %v693 = vmax.f32 %v536, %v538
      %694 = vmax.xlane.f32.xlu0 %v693
      %v695 = vpop.xlane.xlu0 %694
      %v696 = vmax.f32 %v542, %v544
      %697 = vmax.xlane.f32.xlu0 %v696
      %v698 = vpop.xlane.xlu0 %697
      %v699 = vmax.f32 %v548, %v550
      %700 = vmax.xlane.f32.xlu0 %v699
      %v701 = vpop.xlane.xlu0 %700
      %v702 = vmax.f32 %v554, %v556
      %703 = vmax.xlane.f32.xlu0 %v702
      %v704 = vpop.xlane.xlu0 %703
      %v705 = vmax.f32 %v560, %v562
      %706 = vmax.xlane.f32.xlu0 %v705
      %v707 = vpop.xlane.xlu0 %706
      %v708 = vmax.f32 %v566, %v568
      %709 = vmax.xlane.f32.xlu0 %v708
      %v710 = vpop.xlane.xlu0 %709
      %v711 = vmax.f32 %v572, %v574
      %712 = vmax.xlane.f32.xlu0 %v711
      %v713 = vpop.xlane.xlu0 %712
      %v714 = vmax.f32 %v578, %v580
      %715 = vmax.xlane.f32.xlu0 %v714
      %v716 = vpop.xlane.xlu0 %715
      %v717 = vmax.f32 %v584, %v586
      %718 = vmax.xlane.f32.xlu0 %v717
      %v719 = vpop.xlane.xlu0 %718
      %v720 = vmax.f32 %v590, %v592
      %721 = vmax.xlane.f32.xlu0 %v720
      %v722 = vpop.xlane.xlu0 %721
      %v723 = vmax.f32 %v596, %v598
      %724 = vmax.xlane.f32.xlu0 %v723
      %v725 = vpop.xlane.xlu0 %724
      %v726 = vmax.f32 %v602, %v604
      %727 = vmax.xlane.f32.xlu0 %v726
      %v728 = vpop.xlane.xlu0 %727
      %v729 = vmax.f32 %v608, %v610
      %730 = vmax.xlane.f32.xlu0 %v729
      %v731 = vpop.xlane.xlu0 %730
      %v732 = vmax.f32 %v614, %v616
      %733 = vmax.xlane.f32.xlu0 %v732
      %v734 = vpop.xlane.xlu0 %733
      %v735 = vmax.f32 %v620, %v622
      %736 = vmax.xlane.f32.xlu0 %v735
      %v737 = vpop.xlane.xlu0 %736
      %v738 = vmax.f32 %v626, %v628
      %739 = vmax.xlane.f32.xlu0 %v738
      %v740 = vpop.xlane.xlu0 %739
      %v741 = vmax.f32 %v632, %v634
      %742 = vmax.xlane.f32.xlu0 %v741
      %v743 = vpop.xlane.xlu0 %742
      %v744 = vmax.f32 %v638, %v640
      %745 = vmax.xlane.f32.xlu0 %v744
      %v746 = vpop.xlane.xlu0 %745
      %v747 = vmax.f32 %v644, %v646
      %748 = vmax.xlane.f32.xlu0 %v747
      %v749 = vpop.xlane.xlu0 %748
      %v750 = vmax.f32 %v650, %v652
      %751 = vmax.xlane.f32.xlu0 %v750
      %v752 = vpop.xlane.xlu0 %751
      %v753 = vmax.f32 %v656, %v658
      %754 = vmax.xlane.f32.xlu0 %v753
      %v755 = vpop.xlane.xlu0 %754
      %v756 = vlaneseq
      %v757 = vand.u32 %v756, 127
      %v758 = vadd.s32 %v757, 128
      %vm759 = vcmp.ge.f32.partialorder %v470, %v662
      %vm760 = vcmp.ge.f32.partialorder %v472, %v662
      %vm761 = vcmp.ge.f32.partialorder %v476, %v665
      %vm762 = vcmp.ge.f32.partialorder %v478, %v665
      %vm763 = vcmp.ge.f32.partialorder %v482, %v668
      %vm764 = vcmp.ge.f32.partialorder %v484, %v668
      %vm765 = vcmp.ge.f32.partialorder %v488, %v671
      %vm766 = vcmp.ge.f32.partialorder %v490, %v671
      %vm767 = vcmp.ge.f32.partialorder %v494, %v674
      %vm768 = vcmp.ge.f32.partialorder %v496, %v674
      %vm769 = vcmp.ge.f32.partialorder %v500, %v677
      %vm770 = vcmp.ge.f32.partialorder %v502, %v677
      %vm771 = vcmp.ge.f32.partialorder %v506, %v680
      %vm772 = vcmp.ge.f32.partialorder %v508, %v680
      %vm773 = vcmp.ge.f32.partialorder %v512, %v683
      %vm774 = vcmp.ge.f32.partialorder %v514, %v683
      %vm775 = vcmp.ge.f32.partialorder %v518, %v686
      %vm776 = vcmp.ge.f32.partialorder %v520, %v686
      %vm777 = vcmp.ge.f32.partialorder %v524, %v689
      %vm778 = vcmp.ge.f32.partialorder %v526, %v689
      %vm779 = vcmp.ge.f32.partialorder %v530, %v692
      %vm780 = vcmp.ge.f32.partialorder %v532, %v692
      %vm781 = vcmp.ge.f32.partialorder %v536, %v695
      %vm782 = vcmp.ge.f32.partialorder %v538, %v695
      %vm783 = vcmp.ge.f32.partialorder %v542, %v698
      %vm784 = vcmp.ge.f32.partialorder %v544, %v698
      %vm785 = vcmp.ge.f32.partialorder %v548, %v701
      %vm786 = vcmp.ge.f32.partialorder %v550, %v701
      %vm787 = vcmp.ge.f32.partialorder %v554, %v704
      %vm788 = vcmp.ge.f32.partialorder %v556, %v704
      %vm789 = vcmp.ge.f32.partialorder %v560, %v707
      %vm790 = vcmp.ge.f32.partialorder %v562, %v707
      %vm791 = vcmp.ge.f32.partialorder %v566, %v710
      %vm792 = vcmp.ge.f32.partialorder %v568, %v710
      %vm793 = vcmp.ge.f32.partialorder %v572, %v713
      %vm794 = vcmp.ge.f32.partialorder %v574, %v713
      %vm795 = vcmp.ge.f32.partialorder %v578, %v716
      %vm796 = vcmp.ge.f32.partialorder %v580, %v716
      %vm797 = vcmp.ge.f32.partialorder %v584, %v719
      %vm798 = vcmp.ge.f32.partialorder %v586, %v719
      %vm799 = vcmp.ge.f32.partialorder %v590, %v722
      %vm800 = vcmp.ge.f32.partialorder %v592, %v722
      %vm801 = vcmp.ge.f32.partialorder %v596, %v725
      %vm802 = vcmp.ge.f32.partialorder %v598, %v725
      %vm803 = vcmp.ge.f32.partialorder %v602, %v728
      %vm804 = vcmp.ge.f32.partialorder %v604, %v728
      %vm805 = vcmp.ge.f32.partialorder %v608, %v731
      %vm806 = vcmp.ge.f32.partialorder %v610, %v731
      %vm807 = vcmp.ge.f32.partialorder %v614, %v734
      %vm808 = vcmp.ge.f32.partialorder %v616, %v734
      %vm809 = vcmp.ge.f32.partialorder %v620, %v737
      %vm810 = vcmp.ge.f32.partialorder %v622, %v737
      %vm811 = vcmp.ge.f32.partialorder %v626, %v740
      %vm812 = vcmp.ge.f32.partialorder %v628, %v740
      %vm813 = vcmp.ge.f32.partialorder %v632, %v743
      %vm814 = vcmp.ge.f32.partialorder %v634, %v743
      %vm815 = vcmp.ge.f32.partialorder %v638, %v746
      %vm816 = vcmp.ge.f32.partialorder %v640, %v746
      %vm817 = vcmp.ge.f32.partialorder %v644, %v749
      %vm818 = vcmp.ge.f32.partialorder %v646, %v749
      %vm819 = vcmp.ge.f32.partialorder %v650, %v752
      %vm820 = vcmp.ge.f32.partialorder %v652, %v752
      %vm821 = vcmp.ge.f32.partialorder %v656, %v755
      %vm822 = vcmp.ge.f32.partialorder %v658, %v755
      %v823 = vsel %vm759, %v757, 256
      %v824 = vsel %vm760, %v758, 256
      %v825 = vsel %vm761, %v757, 256
      %v826 = vsel %vm762, %v758, 256
      %v827 = vsel %vm763, %v757, 256
      %v828 = vsel %vm764, %v758, 256
      %v829 = vsel %vm765, %v757, 256
      %v830 = vsel %vm766, %v758, 256
      %v831 = vsel %vm767, %v757, 256
      %v832 = vsel %vm768, %v758, 256
      %v833 = vsel %vm769, %v757, 256
      %v834 = vsel %vm770, %v758, 256
      %v835 = vsel %vm771, %v757, 256
      %v836 = vsel %vm772, %v758, 256
      %v837 = vsel %vm773, %v757, 256
      %v838 = vsel %vm774, %v758, 256
      %v839 = vsel %vm775, %v757, 256
      %v840 = vsel %vm776, %v758, 256
      %v841 = vsel %vm777, %v757, 256
      %v842 = vsel %vm778, %v758, 256
      %v843 = vsel %vm779, %v757, 256
      %v844 = vsel %vm780, %v758, 256
      %v845 = vsel %vm781, %v757, 256
      %v846 = vsel %vm782, %v758, 256
      %v847 = vsel %vm783, %v757, 256
      %v848 = vsel %vm784, %v758, 256
      %v849 = vsel %vm785, %v757, 256
      %v850 = vsel %vm786, %v758, 256
      %v851 = vsel %vm787, %v757, 256
      %v852 = vsel %vm788, %v758, 256
      %v853 = vsel %vm789, %v757, 256
      %v854 = vsel %vm790, %v758, 256
      %v855 = vsel %vm791, %v757, 256
      %v856 = vsel %vm792, %v758, 256
      %v857 = vsel %vm793, %v757, 256
      %v858 = vsel %vm794, %v758, 256
      %v859 = vsel %vm795, %v757, 256
      %v860 = vsel %vm796, %v758, 256
      %v861 = vsel %vm797, %v757, 256
      %v862 = vsel %vm798, %v758, 256
      %v863 = vsel %vm799, %v757, 256
      %v864 = vsel %vm800, %v758, 256
      %v865 = vsel %vm801, %v757, 256
      %v866 = vsel %vm802, %v758, 256
      %v867 = vsel %vm803, %v757, 256
      %v868 = vsel %vm804, %v758, 256
      %v869 = vsel %vm805, %v757, 256
      %v870 = vsel %vm806, %v758, 256
      %v871 = vsel %vm807, %v757, 256
      %v872 = vsel %vm808, %v758, 256
      %v873 = vsel %vm809, %v757, 256
      %v874 = vsel %vm810, %v758, 256
      %v875 = vsel %vm811, %v757, 256
      %v876 = vsel %vm812, %v758, 256
      %v877 = vsel %vm813, %v757, 256
      %v878 = vsel %vm814, %v758, 256
      %v879 = vsel %vm815, %v757, 256
      %v880 = vsel %vm816, %v758, 256
      %v881 = vsel %vm817, %v757, 256
      %v882 = vsel %vm818, %v758, 256
      %v883 = vsel %vm819, %v757, 256
      %v884 = vsel %vm820, %v758, 256
      %v885 = vsel %vm821, %v757, 256
      %v886 = vsel %vm822, %v758, 256
      %vm887 = vcmp.lt.s32.totalorder %v823, %v824
      %v888 = vsel %vm887, %v823, %v824
      %v889 = vand.u32 %v888, 65535
      %v890 = vshra.s32 %v888, 16
      %v891 = vcvt.s32.f32 %v889
      %v892 = vcvt.s32.f32 %v890
      %893 = vmin.xlane.f32.xlu0 %v892
      %v894 = vpop.xlane.xlu0 %893
      %vm895 = vcmp.eq.f32.partialorder %v892, %v894
      %v896 = vsel %vm895, %v891, inf
      %897 = vmin.xlane.f32.xlu0 %v896
      %v898 = vpop.xlane.xlu0 %897
      %v899 = vcvt.f32.s32 %v898
      %v900 = vcvt.f32.s32 %v894
      %v901 = vshll.u32 %v900, 16
      %v902 = vadd.s32 %v901, %v899
      %vm903 = vcmp.lt.s32.totalorder %v825, %v826
      %v904 = vsel %vm903, %v825, %v826
      %v905 = vand.u32 %v904, 65535
      %v906 = vshra.s32 %v904, 16
      %v907 = vcvt.s32.f32 %v905
      %v908 = vcvt.s32.f32 %v906
      %909 = vmin.xlane.f32.xlu0 %v908
      %v910 = vpop.xlane.xlu0 %909
      %vm911 = vcmp.eq.f32.partialorder %v908, %v910
      %v912 = vsel %vm911, %v907, inf
      %913 = vmin.xlane.f32.xlu0 %v912
      %v914 = vpop.xlane.xlu0 %913
      %v915 = vcvt.f32.s32 %v914
      %v916 = vcvt.f32.s32 %v910
      %v917 = vshll.u32 %v916, 16
      %v918 = vadd.s32 %v917, %v915
      %vm919 = vcmp.lt.s32.totalorder %v827, %v828
      %v920 = vsel %vm919, %v827, %v828
      %v921 = vand.u32 %v920, 65535
      %v922 = vshra.s32 %v920, 16
      %v923 = vcvt.s32.f32 %v921
      %v924 = vcvt.s32.f32 %v922
      %925 = vmin.xlane.f32.xlu0 %v924
      %v926 = vpop.xlane.xlu0 %925
      %vm927 = vcmp.eq.f32.partialorder %v924, %v926
      %v928 = vsel %vm927, %v923, inf
      %929 = vmin.xlane.f32.xlu0 %v928
      %v930 = vpop.xlane.xlu0 %929
      %v931 = vcvt.f32.s32 %v930
      %v932 = vcvt.f32.s32 %v926
      %v933 = vshll.u32 %v932, 16
      %v934 = vadd.s32 %v933, %v931
      %vm935 = vcmp.lt.s32.totalorder %v829, %v830
      %v936 = vsel %vm935, %v829, %v830
      %v937 = vand.u32 %v936, 65535
      %v938 = vshra.s32 %v936, 16
      %v939 = vcvt.s32.f32 %v937
      %v940 = vcvt.s32.f32 %v938
      %941 = vmin.xlane.f32.xlu0 %v940
      %v942 = vpop.xlane.xlu0 %941
      %vm943 = vcmp.eq.f32.partialorder %v940, %v942
      %v944 = vsel %vm943, %v939, inf
      %945 = vmin.xlane.f32.xlu0 %v944
      %v946 = vpop.xlane.xlu0 %945
      %v947 = vcvt.f32.s32 %v946
      %v948 = vcvt.f32.s32 %v942
      %v949 = vshll.u32 %v948, 16
      %v950 = vadd.s32 %v949, %v947
      %vm951 = vcmp.lt.s32.totalorder %v831, %v832
      %v952 = vsel %vm951, %v831, %v832
      %v953 = vand.u32 %v952, 65535
      %v954 = vshra.s32 %v952, 16
      %v955 = vcvt.s32.f32 %v953
      %v956 = vcvt.s32.f32 %v954
      %957 = vmin.xlane.f32.xlu0 %v956
      %v958 = vpop.xlane.xlu0 %957
      %vm959 = vcmp.eq.f32.partialorder %v956, %v958
      %v960 = vsel %vm959, %v955, inf
      %961 = vmin.xlane.f32.xlu0 %v960
      %v962 = vpop.xlane.xlu0 %961
      %v963 = vcvt.f32.s32 %v962
      %v964 = vcvt.f32.s32 %v958
      %v965 = vshll.u32 %v964, 16
      %v966 = vadd.s32 %v965, %v963
      %vm967 = vcmp.lt.s32.totalorder %v833, %v834
      %v968 = vsel %vm967, %v833, %v834
      %v969 = vand.u32 %v968, 65535
      %v970 = vshra.s32 %v968, 16
      %v971 = vcvt.s32.f32 %v969
      %v972 = vcvt.s32.f32 %v970
      %973 = vmin.xlane.f32.xlu0 %v972
      %v974 = vpop.xlane.xlu0 %973
      %vm975 = vcmp.eq.f32.partialorder %v972, %v974
      %v976 = vsel %vm975, %v971, inf
      %977 = vmin.xlane.f32.xlu0 %v976
      %v978 = vpop.xlane.xlu0 %977
      %v979 = vcvt.f32.s32 %v978
      %v980 = vcvt.f32.s32 %v974
      %v981 = vshll.u32 %v980, 16
      %v982 = vadd.s32 %v981, %v979
      %vm983 = vcmp.lt.s32.totalorder %v835, %v836
      %v984 = vsel %vm983, %v835, %v836
      %v985 = vand.u32 %v984, 65535
      %v986 = vshra.s32 %v984, 16
      %v987 = vcvt.s32.f32 %v985
      %v988 = vcvt.s32.f32 %v986
      %989 = vmin.xlane.f32.xlu0 %v988
      %v990 = vpop.xlane.xlu0 %989
      %vm991 = vcmp.eq.f32.partialorder %v988, %v990
      %v992 = vsel %vm991, %v987, inf
      %993 = vmin.xlane.f32.xlu0 %v992
      %v994 = vpop.xlane.xlu0 %993
      %v995 = vcvt.f32.s32 %v994
      %v996 = vcvt.f32.s32 %v990
      %v997 = vshll.u32 %v996, 16
      %v998 = vadd.s32 %v997, %v995
      %vm999 = vcmp.lt.s32.totalorder %v837, %v838
      %v1000 = vsel %vm999, %v837, %v838
      %v1001 = vand.u32 %v1000, 65535
      %v1002 = vshra.s32 %v1000, 16
      %v1003 = vcvt.s32.f32 %v1001
      %v1004 = vcvt.s32.f32 %v1002
      %1005 = vmin.xlane.f32.xlu0 %v1004
      %v1006 = vpop.xlane.xlu0 %1005
      %vm1007 = vcmp.eq.f32.partialorder %v1004, %v1006
      %v1008 = vsel %vm1007, %v1003, inf
      %1009 = vmin.xlane.f32.xlu0 %v1008
      %v1010 = vpop.xlane.xlu0 %1009
      %v1011 = vcvt.f32.s32 %v1010
      %v1012 = vcvt.f32.s32 %v1006
      %v1013 = vshll.u32 %v1012, 16
      %v1014 = vadd.s32 %v1013, %v1011
      %vm1015 = vcmp.lt.s32.totalorder %v839, %v840
      %v1016 = vsel %vm1015, %v839, %v840
      %v1017 = vand.u32 %v1016, 65535
      %v1018 = vshra.s32 %v1016, 16
      %v1019 = vcvt.s32.f32 %v1017
      %v1020 = vcvt.s32.f32 %v1018
      %1021 = vmin.xlane.f32.xlu0 %v1020
      %v1022 = vpop.xlane.xlu0 %1021
      %vm1023 = vcmp.eq.f32.partialorder %v1020, %v1022
      %v1024 = vsel %vm1023, %v1019, inf
      %1025 = vmin.xlane.f32.xlu0 %v1024
      %v1026 = vpop.xlane.xlu0 %1025
      %v1027 = vcvt.f32.s32 %v1026
      %v1028 = vcvt.f32.s32 %v1022
      %v1029 = vshll.u32 %v1028, 16
      %v1030 = vadd.s32 %v1029, %v1027
      %vm1031 = vcmp.lt.s32.totalorder %v841, %v842
      %v1032 = vsel %vm1031, %v841, %v842
      %v1033 = vand.u32 %v1032, 65535
      %v1034 = vshra.s32 %v1032, 16
      %v1035 = vcvt.s32.f32 %v1033
      %v1036 = vcvt.s32.f32 %v1034
      %1037 = vmin.xlane.f32.xlu0 %v1036
      %v1038 = vpop.xlane.xlu0 %1037
      %vm1039 = vcmp.eq.f32.partialorder %v1036, %v1038
      %v1040 = vsel %vm1039, %v1035, inf
      %1041 = vmin.xlane.f32.xlu0 %v1040
      %v1042 = vpop.xlane.xlu0 %1041
      %v1043 = vcvt.f32.s32 %v1042
      %v1044 = vcvt.f32.s32 %v1038
      %v1045 = vshll.u32 %v1044, 16
      %v1046 = vadd.s32 %v1045, %v1043
      %vm1047 = vcmp.lt.s32.totalorder %v843, %v844
      %v1048 = vsel %vm1047, %v843, %v844
      %v1049 = vand.u32 %v1048, 65535
      %v1050 = vshra.s32 %v1048, 16
      %v1051 = vcvt.s32.f32 %v1049
      %v1052 = vcvt.s32.f32 %v1050
      %1053 = vmin.xlane.f32.xlu0 %v1052
      %v1054 = vpop.xlane.xlu0 %1053
      %vm1055 = vcmp.eq.f32.partialorder %v1052, %v1054
      %v1056 = vsel %vm1055, %v1051, inf
      %1057 = vmin.xlane.f32.xlu0 %v1056
      %v1058 = vpop.xlane.xlu0 %1057
      %v1059 = vcvt.f32.s32 %v1058
      %v1060 = vcvt.f32.s32 %v1054
      %v1061 = vshll.u32 %v1060, 16
      %v1062 = vadd.s32 %v1061, %v1059
      %vm1063 = vcmp.lt.s32.totalorder %v845, %v846
      %v1064 = vsel %vm1063, %v845, %v846
      %v1065 = vand.u32 %v1064, 65535
      %v1066 = vshra.s32 %v1064, 16
      %v1067 = vcvt.s32.f32 %v1065
      %v1068 = vcvt.s32.f32 %v1066
      %1069 = vmin.xlane.f32.xlu0 %v1068
      %v1070 = vpop.xlane.xlu0 %1069
      %vm1071 = vcmp.eq.f32.partialorder %v1068, %v1070
      %v1072 = vsel %vm1071, %v1067, inf
      %1073 = vmin.xlane.f32.xlu0 %v1072
      %v1074 = vpop.xlane.xlu0 %1073
      %v1075 = vcvt.f32.s32 %v1074
      %v1076 = vcvt.f32.s32 %v1070
      %v1077 = vshll.u32 %v1076, 16
      %v1078 = vadd.s32 %v1077, %v1075
      %vm1079 = vcmp.lt.s32.totalorder %v847, %v848
      %v1080 = vsel %vm1079, %v847, %v848
      %v1081 = vand.u32 %v1080, 65535
      %v1082 = vshra.s32 %v1080, 16
      %v1083 = vcvt.s32.f32 %v1081
      %v1084 = vcvt.s32.f32 %v1082
      %1085 = vmin.xlane.f32.xlu0 %v1084
      %v1086 = vpop.xlane.xlu0 %1085
      %vm1087 = vcmp.eq.f32.partialorder %v1084, %v1086
      %v1088 = vsel %vm1087, %v1083, inf
      %1089 = vmin.xlane.f32.xlu0 %v1088
      %v1090 = vpop.xlane.xlu0 %1089
      %v1091 = vcvt.f32.s32 %v1090
      %v1092 = vcvt.f32.s32 %v1086
      %v1093 = vshll.u32 %v1092, 16
      %v1094 = vadd.s32 %v1093, %v1091
      %vm1095 = vcmp.lt.s32.totalorder %v849, %v850
      %v1096 = vsel %vm1095, %v849, %v850
      %v1097 = vand.u32 %v1096, 65535
      %v1098 = vshra.s32 %v1096, 16
      %v1099 = vcvt.s32.f32 %v1097
      %v1100 = vcvt.s32.f32 %v1098
      %1101 = vmin.xlane.f32.xlu0 %v1100
      %v1102 = vpop.xlane.xlu0 %1101
      %vm1103 = vcmp.eq.f32.partialorder %v1100, %v1102
      %v1104 = vsel %vm1103, %v1099, inf
      %1105 = vmin.xlane.f32.xlu0 %v1104
      %v1106 = vpop.xlane.xlu0 %1105
      %v1107 = vcvt.f32.s32 %v1106
      %v1108 = vcvt.f32.s32 %v1102
      %v1109 = vshll.u32 %v1108, 16
      %v1110 = vadd.s32 %v1109, %v1107
      %vm1111 = vcmp.lt.s32.totalorder %v851, %v852
      %v1112 = vsel %vm1111, %v851, %v852
      %v1113 = vand.u32 %v1112, 65535
      %v1114 = vshra.s32 %v1112, 16
      %v1115 = vcvt.s32.f32 %v1113
      %v1116 = vcvt.s32.f32 %v1114
      %1117 = vmin.xlane.f32.xlu0 %v1116
      %v1118 = vpop.xlane.xlu0 %1117
      %vm1119 = vcmp.eq.f32.partialorder %v1116, %v1118
      %v1120 = vsel %vm1119, %v1115, inf
      %1121 = vmin.xlane.f32.xlu0 %v1120
      %v1122 = vpop.xlane.xlu0 %1121
      %v1123 = vcvt.f32.s32 %v1122
      %v1124 = vcvt.f32.s32 %v1118
      %v1125 = vshll.u32 %v1124, 16
      %v1126 = vadd.s32 %v1125, %v1123
      %vm1127 = vcmp.lt.s32.totalorder %v853, %v854
      %v1128 = vsel %vm1127, %v853, %v854
      %v1129 = vand.u32 %v1128, 65535
      %v1130 = vshra.s32 %v1128, 16
      %v1131 = vcvt.s32.f32 %v1129
      %v1132 = vcvt.s32.f32 %v1130
      %1133 = vmin.xlane.f32.xlu0 %v1132
      %v1134 = vpop.xlane.xlu0 %1133
      %vm1135 = vcmp.eq.f32.partialorder %v1132, %v1134
      %v1136 = vsel %vm1135, %v1131, inf
      %1137 = vmin.xlane.f32.xlu0 %v1136
      %v1138 = vpop.xlane.xlu0 %1137
      %v1139 = vcvt.f32.s32 %v1138
      %v1140 = vcvt.f32.s32 %v1134
      %v1141 = vshll.u32 %v1140, 16
      %v1142 = vadd.s32 %v1141, %v1139
      %vm1143 = vcmp.lt.s32.totalorder %v855, %v856
      %v1144 = vsel %vm1143, %v855, %v856
      %v1145 = vand.u32 %v1144, 65535
      %v1146 = vshra.s32 %v1144, 16
      %v1147 = vcvt.s32.f32 %v1145
      %v1148 = vcvt.s32.f32 %v1146
      %1149 = vmin.xlane.f32.xlu0 %v1148
      %v1150 = vpop.xlane.xlu0 %1149
      %vm1151 = vcmp.eq.f32.partialorder %v1148, %v1150
      %v1152 = vsel %vm1151, %v1147, inf
      %1153 = vmin.xlane.f32.xlu0 %v1152
      %v1154 = vpop.xlane.xlu0 %1153
      %v1155 = vcvt.f32.s32 %v1154
      %v1156 = vcvt.f32.s32 %v1150
      %v1157 = vshll.u32 %v1156, 16
      %v1158 = vadd.s32 %v1157, %v1155
      %vm1159 = vcmp.lt.s32.totalorder %v857, %v858
      %v1160 = vsel %vm1159, %v857, %v858
      %v1161 = vand.u32 %v1160, 65535
      %v1162 = vshra.s32 %v1160, 16
      %v1163 = vcvt.s32.f32 %v1161
      %v1164 = vcvt.s32.f32 %v1162
      %1165 = vmin.xlane.f32.xlu0 %v1164
      %v1166 = vpop.xlane.xlu0 %1165
      %vm1167 = vcmp.eq.f32.partialorder %v1164, %v1166
      %v1168 = vsel %vm1167, %v1163, inf
      %1169 = vmin.xlane.f32.xlu0 %v1168
      %v1170 = vpop.xlane.xlu0 %1169
      %v1171 = vcvt.f32.s32 %v1170
      %v1172 = vcvt.f32.s32 %v1166
      %v1173 = vshll.u32 %v1172, 16
      %v1174 = vadd.s32 %v1173, %v1171
      %vm1175 = vcmp.lt.s32.totalorder %v859, %v860
      %v1176 = vsel %vm1175, %v859, %v860
      %v1177 = vand.u32 %v1176, 65535
      %v1178 = vshra.s32 %v1176, 16
      %v1179 = vcvt.s32.f32 %v1177
      %v1180 = vcvt.s32.f32 %v1178
      %1181 = vmin.xlane.f32.xlu0 %v1180
      %v1182 = vpop.xlane.xlu0 %1181
      %vm1183 = vcmp.eq.f32.partialorder %v1180, %v1182
      %v1184 = vsel %vm1183, %v1179, inf
      %1185 = vmin.xlane.f32.xlu0 %v1184
      %v1186 = vpop.xlane.xlu0 %1185
      %v1187 = vcvt.f32.s32 %v1186
      %v1188 = vcvt.f32.s32 %v1182
      %v1189 = vshll.u32 %v1188, 16
      %v1190 = vadd.s32 %v1189, %v1187
      %vm1191 = vcmp.lt.s32.totalorder %v861, %v862
      %v1192 = vsel %vm1191, %v861, %v862
      %v1193 = vand.u32 %v1192, 65535
      %v1194 = vshra.s32 %v1192, 16
      %v1195 = vcvt.s32.f32 %v1193
      %v1196 = vcvt.s32.f32 %v1194
      %1197 = vmin.xlane.f32.xlu0 %v1196
      %v1198 = vpop.xlane.xlu0 %1197
      %vm1199 = vcmp.eq.f32.partialorder %v1196, %v1198
      %v1200 = vsel %vm1199, %v1195, inf
      %1201 = vmin.xlane.f32.xlu0 %v1200
      %v1202 = vpop.xlane.xlu0 %1201
      %v1203 = vcvt.f32.s32 %v1202
      %v1204 = vcvt.f32.s32 %v1198
      %v1205 = vshll.u32 %v1204, 16
      %v1206 = vadd.s32 %v1205, %v1203
      %vm1207 = vcmp.lt.s32.totalorder %v863, %v864
      %v1208 = vsel %vm1207, %v863, %v864
      %v1209 = vand.u32 %v1208, 65535
      %v1210 = vshra.s32 %v1208, 16
      %v1211 = vcvt.s32.f32 %v1209
      %v1212 = vcvt.s32.f32 %v1210
      %1213 = vmin.xlane.f32.xlu0 %v1212
      %v1214 = vpop.xlane.xlu0 %1213
      %vm1215 = vcmp.eq.f32.partialorder %v1212, %v1214
      %v1216 = vsel %vm1215, %v1211, inf
      %1217 = vmin.xlane.f32.xlu0 %v1216
      %v1218 = vpop.xlane.xlu0 %1217
      %v1219 = vcvt.f32.s32 %v1218
      %v1220 = vcvt.f32.s32 %v1214
      %v1221 = vshll.u32 %v1220, 16
      %v1222 = vadd.s32 %v1221, %v1219
      %vm1223 = vcmp.lt.s32.totalorder %v865, %v866
      %v1224 = vsel %vm1223, %v865, %v866
      %v1225 = vand.u32 %v1224, 65535
      %v1226 = vshra.s32 %v1224, 16
      %v1227 = vcvt.s32.f32 %v1225
      %v1228 = vcvt.s32.f32 %v1226
      %1229 = vmin.xlane.f32.xlu0 %v1228
      %v1230 = vpop.xlane.xlu0 %1229
      %vm1231 = vcmp.eq.f32.partialorder %v1228, %v1230
      %v1232 = vsel %vm1231, %v1227, inf
      %1233 = vmin.xlane.f32.xlu0 %v1232
      %v1234 = vpop.xlane.xlu0 %1233
      %v1235 = vcvt.f32.s32 %v1234
      %v1236 = vcvt.f32.s32 %v1230
      %v1237 = vshll.u32 %v1236, 16
      %v1238 = vadd.s32 %v1237, %v1235
      %vm1239 = vcmp.lt.s32.totalorder %v867, %v868
      %v1240 = vsel %vm1239, %v867, %v868
      %v1241 = vand.u32 %v1240, 65535
      %v1242 = vshra.s32 %v1240, 16
      %v1243 = vcvt.s32.f32 %v1241
      %v1244 = vcvt.s32.f32 %v1242
      %1245 = vmin.xlane.f32.xlu0 %v1244
      %v1246 = vpop.xlane.xlu0 %1245
      %vm1247 = vcmp.eq.f32.partialorder %v1244, %v1246
      %v1248 = vsel %vm1247, %v1243, inf
      %1249 = vmin.xlane.f32.xlu0 %v1248
      %v1250 = vpop.xlane.xlu0 %1249
      %v1251 = vcvt.f32.s32 %v1250
      %v1252 = vcvt.f32.s32 %v1246
      %v1253 = vshll.u32 %v1252, 16
      %v1254 = vadd.s32 %v1253, %v1251
      %vm1255 = vcmp.lt.s32.totalorder %v869, %v870
      %v1256 = vsel %vm1255, %v869, %v870
      %v1257 = vand.u32 %v1256, 65535
      %v1258 = vshra.s32 %v1256, 16
      %v1259 = vcvt.s32.f32 %v1257
      %v1260 = vcvt.s32.f32 %v1258
      %1261 = vmin.xlane.f32.xlu0 %v1260
      %v1262 = vpop.xlane.xlu0 %1261
      %vm1263 = vcmp.eq.f32.partialorder %v1260, %v1262
      %v1264 = vsel %vm1263, %v1259, inf
      %1265 = vmin.xlane.f32.xlu0 %v1264
      %v1266 = vpop.xlane.xlu0 %1265
      %v1267 = vcvt.f32.s32 %v1266
      %v1268 = vcvt.f32.s32 %v1262
      %v1269 = vshll.u32 %v1268, 16
      %v1270 = vadd.s32 %v1269, %v1267
      %vm1271 = vcmp.lt.s32.totalorder %v871, %v872
      %v1272 = vsel %vm1271, %v871, %v872
      %v1273 = vand.u32 %v1272, 65535
      %v1274 = vshra.s32 %v1272, 16
      %v1275 = vcvt.s32.f32 %v1273
      %v1276 = vcvt.s32.f32 %v1274
      %1277 = vmin.xlane.f32.xlu0 %v1276
      %v1278 = vpop.xlane.xlu0 %1277
      %vm1279 = vcmp.eq.f32.partialorder %v1276, %v1278
      %v1280 = vsel %vm1279, %v1275, inf
      %1281 = vmin.xlane.f32.xlu0 %v1280
      %v1282 = vpop.xlane.xlu0 %1281
      %v1283 = vcvt.f32.s32 %v1282
      %v1284 = vcvt.f32.s32 %v1278
      %v1285 = vshll.u32 %v1284, 16
      %v1286 = vadd.s32 %v1285, %v1283
      %vm1287 = vcmp.lt.s32.totalorder %v873, %v874
      %v1288 = vsel %vm1287, %v873, %v874
      %v1289 = vand.u32 %v1288, 65535
      %v1290 = vshra.s32 %v1288, 16
      %v1291 = vcvt.s32.f32 %v1289
      %v1292 = vcvt.s32.f32 %v1290
      %1293 = vmin.xlane.f32.xlu0 %v1292
      %v1294 = vpop.xlane.xlu0 %1293
      %vm1295 = vcmp.eq.f32.partialorder %v1292, %v1294
      %v1296 = vsel %vm1295, %v1291, inf
      %1297 = vmin.xlane.f32.xlu0 %v1296
      %v1298 = vpop.xlane.xlu0 %1297
      %v1299 = vcvt.f32.s32 %v1298
      %v1300 = vcvt.f32.s32 %v1294
      %v1301 = vshll.u32 %v1300, 16
      %v1302 = vadd.s32 %v1301, %v1299
      %vm1303 = vcmp.lt.s32.totalorder %v875, %v876
      %v1304 = vsel %vm1303, %v875, %v876
      %v1305 = vand.u32 %v1304, 65535
      %v1306 = vshra.s32 %v1304, 16
      %v1307 = vcvt.s32.f32 %v1305
      %v1308 = vcvt.s32.f32 %v1306
      %1309 = vmin.xlane.f32.xlu0 %v1308
      %v1310 = vpop.xlane.xlu0 %1309
      %vm1311 = vcmp.eq.f32.partialorder %v1308, %v1310
      %v1312 = vsel %vm1311, %v1307, inf
      %1313 = vmin.xlane.f32.xlu0 %v1312
      %v1314 = vpop.xlane.xlu0 %1313
      %v1315 = vcvt.f32.s32 %v1314
      %v1316 = vcvt.f32.s32 %v1310
      %v1317 = vshll.u32 %v1316, 16
      %v1318 = vadd.s32 %v1317, %v1315
      %vm1319 = vcmp.lt.s32.totalorder %v877, %v878
      %v1320 = vsel %vm1319, %v877, %v878
      %v1321 = vand.u32 %v1320, 65535
      %v1322 = vshra.s32 %v1320, 16
      %v1323 = vcvt.s32.f32 %v1321
      %v1324 = vcvt.s32.f32 %v1322
      %1325 = vmin.xlane.f32.xlu0 %v1324
      %v1326 = vpop.xlane.xlu0 %1325
      %vm1327 = vcmp.eq.f32.partialorder %v1324, %v1326
      %v1328 = vsel %vm1327, %v1323, inf
      %1329 = vmin.xlane.f32.xlu0 %v1328
      %v1330 = vpop.xlane.xlu0 %1329
      %v1331 = vcvt.f32.s32 %v1330
      %v1332 = vcvt.f32.s32 %v1326
      %v1333 = vshll.u32 %v1332, 16
      %v1334 = vadd.s32 %v1333, %v1331
      %vm1335 = vcmp.lt.s32.totalorder %v879, %v880
      %v1336 = vsel %vm1335, %v879, %v880
      %v1337 = vand.u32 %v1336, 65535
      %v1338 = vshra.s32 %v1336, 16
      %v1339 = vcvt.s32.f32 %v1337
      %v1340 = vcvt.s32.f32 %v1338
      %1341 = vmin.xlane.f32.xlu0 %v1340
      %v1342 = vpop.xlane.xlu0 %1341
      %vm1343 = vcmp.eq.f32.partialorder %v1340, %v1342
      %v1344 = vsel %vm1343, %v1339, inf
      %1345 = vmin.xlane.f32.xlu0 %v1344
      %v1346 = vpop.xlane.xlu0 %1345
      %v1347 = vcvt.f32.s32 %v1346
      %v1348 = vcvt.f32.s32 %v1342
      %v1349 = vshll.u32 %v1348, 16
      %v1350 = vadd.s32 %v1349, %v1347
      %vm1351 = vcmp.lt.s32.totalorder %v881, %v882
      %v1352 = vsel %vm1351, %v881, %v882
      %v1353 = vand.u32 %v1352, 65535
      %v1354 = vshra.s32 %v1352, 16
      %v1355 = vcvt.s32.f32 %v1353
      %v1356 = vcvt.s32.f32 %v1354
      %1357 = vmin.xlane.f32.xlu0 %v1356
      %v1358 = vpop.xlane.xlu0 %1357
      %vm1359 = vcmp.eq.f32.partialorder %v1356, %v1358
      %v1360 = vsel %vm1359, %v1355, inf
      %1361 = vmin.xlane.f32.xlu0 %v1360
      %v1362 = vpop.xlane.xlu0 %1361
      %v1363 = vcvt.f32.s32 %v1362
      %v1364 = vcvt.f32.s32 %v1358
      %v1365 = vshll.u32 %v1364, 16
      %v1366 = vadd.s32 %v1365, %v1363
      %vm1367 = vcmp.lt.s32.totalorder %v883, %v884
      %v1368 = vsel %vm1367, %v883, %v884
      %v1369 = vand.u32 %v1368, 65535
      %v1370 = vshra.s32 %v1368, 16
      %v1371 = vcvt.s32.f32 %v1369
      %v1372 = vcvt.s32.f32 %v1370
      %1373 = vmin.xlane.f32.xlu0 %v1372
      %v1374 = vpop.xlane.xlu0 %1373
      %vm1375 = vcmp.eq.f32.partialorder %v1372, %v1374
      %v1376 = vsel %vm1375, %v1371, inf
      %1377 = vmin.xlane.f32.xlu0 %v1376
      %v1378 = vpop.xlane.xlu0 %1377
      %v1379 = vcvt.f32.s32 %v1378
      %v1380 = vcvt.f32.s32 %v1374
      %v1381 = vshll.u32 %v1380, 16
      %v1382 = vadd.s32 %v1381, %v1379
      %vm1383 = vcmp.lt.s32.totalorder %v885, %v886
      %v1384 = vsel %vm1383, %v885, %v886
      %v1385 = vand.u32 %v1384, 65535
      %v1386 = vshra.s32 %v1384, 16
      %v1387 = vcvt.s32.f32 %v1385
      %v1388 = vcvt.s32.f32 %v1386
      %1389 = vmin.xlane.f32.xlu0 %v1388
      %v1390 = vpop.xlane.xlu0 %1389
      %vm1391 = vcmp.eq.f32.partialorder %v1388, %v1390
      %v1392 = vsel %vm1391, %v1387, inf
      %1393 = vmin.xlane.f32.xlu0 %v1392
      %v1394 = vpop.xlane.xlu0 %1393
      %v1395 = vcvt.f32.s32 %v1394
      %v1396 = vcvt.f32.s32 %v1390
      %v1397 = vshll.u32 %v1396, 16
      %v1398 = vadd.s32 %v1397, %v1395
      %vm1399 = vcmp.lt.s32.totalorder %v902, 255
      %v1400 = vsel %vm1399, %v902, 255
      %vm1401 = vcmp.lt.s32.totalorder %v918, 255
      %v1402 = vsel %vm1401, %v918, 255
      %vm1403 = vcmp.lt.s32.totalorder %v934, 255
      %v1404 = vsel %vm1403, %v934, 255
      %vm1405 = vcmp.lt.s32.totalorder %v950, 255
      %v1406 = vsel %vm1405, %v950, 255
      %vm1407 = vcmp.lt.s32.totalorder %v966, 255
      %v1408 = vsel %vm1407, %v966, 255
      %vm1409 = vcmp.lt.s32.totalorder %v982, 255
      %v1410 = vsel %vm1409, %v982, 255
      %vm1411 = vcmp.lt.s32.totalorder %v998, 255
      %v1412 = vsel %vm1411, %v998, 255
      %vm1413 = vcmp.lt.s32.totalorder %v1014, 255
      %v1414 = vsel %vm1413, %v1014, 255
      %vm1415 = vcmp.lt.s32.totalorder %v1030, 255
      %v1416 = vsel %vm1415, %v1030, 255
      %vm1417 = vcmp.lt.s32.totalorder %v1046, 255
      %v1418 = vsel %vm1417, %v1046, 255
      %vm1419 = vcmp.lt.s32.totalorder %v1062, 255
      %v1420 = vsel %vm1419, %v1062, 255
      %vm1421 = vcmp.lt.s32.totalorder %v1078, 255
      %v1422 = vsel %vm1421, %v1078, 255
      %vm1423 = vcmp.lt.s32.totalorder %v1094, 255
      %v1424 = vsel %vm1423, %v1094, 255
      %vm1425 = vcmp.lt.s32.totalorder %v1110, 255
      %v1426 = vsel %vm1425, %v1110, 255
      %vm1427 = vcmp.lt.s32.totalorder %v1126, 255
      %v1428 = vsel %vm1427, %v1126, 255
      %vm1429 = vcmp.lt.s32.totalorder %v1142, 255
      %v1430 = vsel %vm1429, %v1142, 255
      %vm1431 = vcmp.lt.s32.totalorder %v1158, 255
      %v1432 = vsel %vm1431, %v1158, 255
      %vm1433 = vcmp.lt.s32.totalorder %v1174, 255
      %v1434 = vsel %vm1433, %v1174, 255
      %vm1435 = vcmp.lt.s32.totalorder %v1190, 255
      %v1436 = vsel %vm1435, %v1190, 255
      %vm1437 = vcmp.lt.s32.totalorder %v1206, 255
      %v1438 = vsel %vm1437, %v1206, 255
      %vm1439 = vcmp.lt.s32.totalorder %v1222, 255
      %v1440 = vsel %vm1439, %v1222, 255
      %vm1441 = vcmp.lt.s32.totalorder %v1238, 255
      %v1442 = vsel %vm1441, %v1238, 255
      %vm1443 = vcmp.lt.s32.totalorder %v1254, 255
      %v1444 = vsel %vm1443, %v1254, 255
      %vm1445 = vcmp.lt.s32.totalorder %v1270, 255
      %v1446 = vsel %vm1445, %v1270, 255
      %vm1447 = vcmp.lt.s32.totalorder %v1286, 255
      %v1448 = vsel %vm1447, %v1286, 255
      %vm1449 = vcmp.lt.s32.totalorder %v1302, 255
      %v1450 = vsel %vm1449, %v1302, 255
      %vm1451 = vcmp.lt.s32.totalorder %v1318, 255
      %v1452 = vsel %vm1451, %v1318, 255
      %vm1453 = vcmp.lt.s32.totalorder %v1334, 255
      %v1454 = vsel %vm1453, %v1334, 255
      %vm1455 = vcmp.lt.s32.totalorder %v1350, 255
      %v1456 = vsel %vm1455, %v1350, 255
      %vm1457 = vcmp.lt.s32.totalorder %v1366, 255
      %v1458 = vsel %vm1457, %v1366, 255
      %vm1459 = vcmp.lt.s32.totalorder %v1382, 255
      %v1460 = vsel %vm1459, %v1382, 255
      %vm1461 = vcmp.lt.s32.totalorder %v1398, 255
      %v1462 = vsel %vm1461, %v1398, 255
      %vm1463 = vcmask 7168
      %1464 = vst.msk [vmem:[%s145] sm:$0xff] %vm1463, %v1400
      %1465 = vst.msk [vmem:[%s145 + $0x8] sm:$0xff] %vm1463, %v1402
      %1466 = vst.msk [vmem:[%s145 + $0x10] sm:$0xff] %vm1463, %v1404
      %1467 = vst.msk [vmem:[%s145 + $0x18] sm:$0xff] %vm1463, %v1406
      %1468 = vst.msk [vmem:[%s145 + $0x20] sm:$0xff] %vm1463, %v1408
      %1469 = vst.msk [vmem:[%s145 + $0x28] sm:$0xff] %vm1463, %v1410
      %1470 = vst.msk [vmem:[%s145 + $0x30] sm:$0xff] %vm1463, %v1412
      %1471 = vst.msk [vmem:[%s145 + $0x38] sm:$0xff] %vm1463, %v1414
      %1472 = vst.msk [vmem:[%s145 + $0x40] sm:$0xff] %vm1463, %v1416
      %1473 = vst.msk [vmem:[%s145 + $0x48] sm:$0xff] %vm1463, %v1418
      %1474 = vst.msk [vmem:[%s145 + $0x50] sm:$0xff] %vm1463, %v1420
      %1475 = vst.msk [vmem:[%s145 + $0x58] sm:$0xff] %vm1463, %v1422
      %1476 = vst.msk [vmem:[%s145 + $0x60] sm:$0xff] %vm1463, %v1424
      %1477 = vst.msk [vmem:[%s145 + $0x68] sm:$0xff] %vm1463, %v1426
      %1478 = vst.msk [vmem:[%s145 + $0x70] sm:$0xff] %vm1463, %v1428
      %1479 = vst.msk [vmem:[%s145 + $0x78] sm:$0xff] %vm1463, %v1430
      %1480 = vst.msk [vmem:[%s145 + $0x80] sm:$0xff] %vm1463, %v1432
      %1481 = vst.msk [vmem:[%s145 + $0x88] sm:$0xff] %vm1463, %v1434
      %1482 = vst.msk [vmem:[%s145 + $0x90] sm:$0xff] %vm1463, %v1436
      %1483 = vst.msk [vmem:[%s145 + $0x98] sm:$0xff] %vm1463, %v1438
      %1484 = vst.msk [vmem:[%s145 + $0xa0] sm:$0xff] %vm1463, %v1440
      %1485 = vst.msk [vmem:[%s145 + $0xa8] sm:$0xff] %vm1463, %v1442
      %1486 = vst.msk [vmem:[%s145 + $0xb0] sm:$0xff] %vm1463, %v1444
      %1487 = vst.msk [vmem:[%s145 + $0xb8] sm:$0xff] %vm1463, %v1446
      %1488 = vst.msk [vmem:[%s145 + $0xc0] sm:$0xff] %vm1463, %v1448
      %1489 = vst.msk [vmem:[%s145 + $0xc8] sm:$0xff] %vm1463, %v1450
      %1490 = vst.msk [vmem:[%s145 + $0xd0] sm:$0xff] %vm1463, %v1452
      %1491 = vst.msk [vmem:[%s145 + $0xd8] sm:$0xff] %vm1463, %v1454
      %1492 = vst.msk [vmem:[%s145 + $0xe0] sm:$0xff] %vm1463, %v1456
      %1493 = vst.msk [vmem:[%s145 + $0xe8] sm:$0xff] %vm1463, %v1458
      %1494 = vst.msk [vmem:[%s145 + $0xf0] sm:$0xff] %vm1463, %v1460
      %1495 = vst.msk [vmem:[%s145 + $0xf8] sm:$0xff] %vm1463, %v1462
      %s1496 = smul.u32 32, %s13
      %p1497 = scmp.lt.s32.totalorder %s1496, 63
      %s1498 = scalar_select %p1497, %s1496, 63
      %s1499 = smul.addr %s1498, 8
      %s1500 = scalar_lea.vmem %s2, %s1499
      // Predicated region
      $region29: #{_lambda_.5} parent=27 // pred_check
        %p1501 = pneg %p78
      $region30: #{_lambda_.5} parent=27 // pred_check_branch
        %1503 = sbr.rel (%p1501) target = $region32
      $region31: #{_lambda_.5} parent=27 // pred_region
        %s1504 = smul.u32 32, %s13
      $region32: #{_lambda_.5} parent=27 // pred_fallthru
        _
    $region28: #{_lambda_.5} parent=5 // pred_fallthru
      _
    %p1505 = scmp.le.s32.totalorder 2, %s8
    // Predicated region
    $region33: #{_lambda_.5} parent=5 // pred_check
      %p1506 = pneg %p1505
    $region34: #{_lambda_.5} parent=5 // pred_check_branch
      %1508 = sbr.rel (%p1506) target = $region36
    $region35: #{_lambda_.5} parent=5 // pred_region
      %s1509 = ssub.s32 %s8, 2
      // Predicated region
      $region37: #{_lambda_.5} parent=35 // pred_check
        %p1510 = pneg %p84
      $region38: #{_lambda_.5} parent=35 // pred_check_branch
        %1512 = sbr.rel (%p1510) target = $region40
      $region39: #{_lambda_.5} parent=35 // pred_region
        %s1513 = smul.u32 32, %s14
        %p1514 = scmp.lt.s32.totalorder %s1513, 63
        %s1515 = scalar_select %p1514, %s1513, 63
        %s1516 = smul.addr %s1515, 8
        %s1517 = scalar_lea.vmem %s2, %s1516
      $region40: #{_lambda_.5} parent=35 // pred_fallthru
        _
    $region36: #{_lambda_.5} parent=5 // pred_fallthru
      _
  $region6: #{_lambda_.5} parent=0 // loop_footer
    %s12 = sadd.s32 1, %s8
  $region7: #{_lambda_.5} parent=0 // loop_footer_branch
    %7 = sbr.rel target = $region3
  $region8: #{_lambda_.5} parent=0 // loop_exit
    _

</llo_original>
